<compile_context>
chip_gen: v7x
topology: tpu7x:2x2x1
jax: 0.10.0
libtpu: 0.0.40
codegen_flags: <defaults>
</compile_context>

<pallas_src>
import functools

import jax
import jax.numpy as jnp
from jax import lax
from jax.experimental import pallas as pl
from jax.experimental.pallas import tpu as pltpu


def _round_up(x, m):
    return ((x + m - 1) // m) * m


def _choose_tile(n, tile_n):
    """Lane tile: multiple of 512; capped so the grid has >=2 steps (v7x)."""
    tile = max(512, _round_up(tile_n, 512))
    if n > 512:
        tile = min(tile, _round_up(-(-n // 2), 512))
    return tile


def _encoder_kernel(x_ref, w1_ref, b1_ref, w2_ref, b2_ref, ot_ref, *, x_is_soa):
    """Fused MLP on one tile of particles.

    x_ref:  (d_in, tile)  if x_is_soa else (tile, d_in)
    w1_ref: (hidden, d_in)   -- whole array, VMEM resident
    b1_ref: (hidden, 1)      -- f32
    w2_ref: (d_out, hidden)  -- whole array, VMEM resident
    b2_ref: (d_out, 1)       -- f32
    ot_ref: (d_out, tile)    -- lane-dense output tile
    """
    if x_is_soa:
        # Particles already on lanes.
        h = jnp.dot(w1_ref[...], x_ref[...],
                    preferred_element_type=jnp.float32)          # (hidden, tile)
    else:
        # User row layout: contract feature axis of both operands so the RHS
        # "transpose" happens in-VMEM (MXU trans_b / XLU), not as an HBM copy.
        h = lax.dot_general(
            w1_ref[...], x_ref[...],
            dimension_numbers=(((1,), (1,)), ((), ())),
            preferred_element_type=jnp.float32)                  # (hidden, tile)
    h = jnp.maximum(h + b1_ref[...], 0.0)                        # f32 bias + ReLU
    h = h.astype(w2_ref.dtype)                                   # native MXU dtype path
    y = jnp.dot(w2_ref[...], h, preferred_element_type=jnp.float32)  # (d_out, tile)
    y = jnp.maximum(y + b2_ref[...], 0.0)
    ot_ref[...] = y.astype(ot_ref.dtype)                         # unmasked lane-dense store


def _encoder_call(x_operand, w1, b1, w2, b2, *, tile_n, x_is_soa):
    if x_is_soa:
        d_in, n = x_operand.shape
    else:
        n, d_in = x_operand.shape
    hidden, _ = w1.shape
    d_out, _ = w2.shape

    tile = _choose_tile(n, tile_n)
    grid = (pl.cdiv(n, tile),)

    b1c = b1.astype(jnp.float32).reshape(hidden, 1)
    b2c = b2.astype(jnp.float32).reshape(d_out, 1)

    if x_is_soa:
        x_spec = pl.BlockSpec((d_in, tile), lambda i: (0, i))
    else:
        x_spec = pl.BlockSpec((tile, d_in), lambda i: (i, 0))

    out_dtype = x_operand.dtype
    itemsize = x_operand.dtype.itemsize
    bytes_accessed = (
        n * d_in * itemsize                      # x in (unpadded)
        + n * d_out * itemsize                   # y out (unpadded)
        + w1.size * w1.dtype.itemsize + w2.size * w2.dtype.itemsize
        + b1c.size * 4 + b2c.size * 4)
    flops = 2 * n * (d_in * hidden + hidden * d_out)

    kernel = functools.partial(_encoder_kernel, x_is_soa=x_is_soa)

    return pl.pallas_call(
        kernel,
        out_shape=jax.ShapeDtypeStruct((d_out, n), out_dtype),
        grid_spec=pltpu.PrefetchScalarGridSpec(
            num_scalar_prefetch=0,
            grid=grid,
            in_specs=[
                x_spec,
                # Constant weights/biases: whole-array VMEM residents, loaded
                # once (no per-grid-step double-buffered DMA).
                pl.BlockSpec(memory_space=pltpu.MemorySpace.VMEM),   # W1
                pl.BlockSpec(memory_space=pltpu.MemorySpace.VMEM),   # b1
                pl.BlockSpec(memory_space=pltpu.MemorySpace.VMEM),   # W2
                pl.BlockSpec(memory_space=pltpu.MemorySpace.VMEM),   # b2
            ],
            out_specs=pl.BlockSpec((d_out, tile), lambda i: (0, i)),
        ),
        compiler_params=pltpu.CompilerParams(
            dimension_semantics=("parallel",),
            vmem_limit_bytes=32 * 1024 * 1024,
        ),
        cost_estimate=pl.CostEstimate(
            flops=flops, transcendentals=0, bytes_accessed=bytes_accessed),
    )(x_operand, w1, b1c, w2, b2c)


@functools.partial(jax.jit, static_argnames=("tile_n",))
def particle_encoder(x, w1, b1, w2, b2, *, tile_n=4096):
    """PyTorch-contract entry point.

    Args:
        x:  [n_particles, input_size]
        w1: [hidden_size, input_size]   (PyTorch nn.Linear weight layout)
        b1: [hidden_size]
        w2: [output_size, hidden_size]
        b2: [output_size]
    Returns:
        [n_particles, output_size]  (same dtype as x)
    """
    yt = _encoder_call(x, w1, b1, w2, b2, tile_n=tile_n, x_is_soa=False)
    # Single output-sized transpose; the input is read in its native layout.
    return yt.T


@functools.partial(jax.jit, static_argnames=("tile_n",))
def particle_encoder_soa(xt, w1, b1, w2, b2, *, tile_n=4096):
    """Copy-free SoA entry point: xt [input_size, n] -> [output_size, n].

    Use this when the particle array can persist in transposed (SoA) layout
    across the pipeline -- no wrapper-side HBM copies at all.
    """
    return _encoder_call(xt, w1, b1, w2, b2, tile_n=tile_n, x_is_soa=True)


def init_linear_params(key, in_features, out_features, dtype=jnp.float32):
    """torch.nn.Linear-style init; weight stored as (out_features, in_features)."""
    k_w, k_b = jax.random.split(key)
    bound = 1.0 / float(in_features) ** 0.5
    w = jax.random.uniform(k_w, (out_features, in_features), dtype,
                           minval=-bound, maxval=bound)
    b = jax.random.uniform(k_b, (out_features,), dtype,
                           minval=-bound, maxval=bound)
    return w, b


def reference_forward(x, w1, b1, w2, b2):
    h = jnp.maximum(x @ w1.T + b1, 0.0)
    return jnp.maximum(h @ w2.T + b2, 0.0)


if __name__ == "__main__":
    key = jax.random.PRNGKey(0)
    k_x1, k_x2, k_l1, k_l2 = jax.random.split(key, 4)

    input_size, hidden_size, output_size = 16, 32, 16
    w1, b1 = init_linear_params(k_l1, input_size, hidden_size)
    w2, b2 = init_linear_params(k_l2, hidden_size, output_size)

    # 1) Small f32 case: single partial block (100 rows in a 512-wide tile).
    n_small = 100
    x = jax.random.normal(k_x1, (n_small, input_size), jnp.float32)
    out = jax.block_until_ready(particle_encoder(x, w1, b1, w2, b2))
    ref = reference_forward(x, w1, b1, w2, b2)
    assert out.shape == (n_small, output_size)
    assert jnp.allclose(out, ref, atol=1e-5, rtol=1e-5), "f32 small mismatch"

    # 2) Multi-step grid with a partial final block (1000 -> 2 tiles of 512).
    n_big = 1000
    x_big = jax.random.normal(k_x2, (n_big, input_size), jnp.float32)
    out_big = jax.block_until_ready(particle_encoder(x_big, w1, b1, w2, b2))
    ref_big = reference_forward(x_big, w1, b1, w2, b2)
    assert out_big.shape == (n_big, output_size)
    assert jnp.allclose(out_big, ref_big, atol=1e-5, rtol=1e-5), "f32 tiled mismatch"

    # 3) Copy-free SoA path ([d_in, n] -> [d_out, n]).
    out_soa = jax.block_until_ready(particle_encoder_soa(x_big.T, w1, b1, w2, b2))
    assert out_soa.shape == (output_size, n_big)
    assert jnp.allclose(out_soa.T, ref_big, atol=1e-5, rtol=1e-5), "SoA mismatch"

    # 4) bf16 particles/weights (halved HBM traffic, native bf16 MXU path with
    #    f32 accumulation and f32 bias adds), loose tolerance.
    out_bf16 = jax.block_until_ready(
        particle_encoder(x.astype(jnp.bfloat16),
                         w1.astype(jnp.bfloat16), b1,
                         w2.astype(jnp.bfloat16), b2))
    assert out_bf16.dtype == jnp.bfloat16
    assert jnp.allclose(out_bf16.astype(jnp.float32), ref, atol=5e-2, rtol=5e-2), \
        "bf16 mismatch"

    print("KERNEL_OK")
</pallas_src>

<mosaic_0001>
module attributes {stable_mosaic.version = 11 : i64} {
  func.func @_encoder_kernel(%arg0: i32, %arg1: memref<4096x16xf32, #tpu.memory_space<vmem>>, %arg2: memref<32x16xf32, #tpu.memory_space<vmem>>, %arg3: memref<32x1xf32, #tpu.memory_space<vmem>>, %arg4: memref<16x32xf32, #tpu.memory_space<vmem>>, %arg5: memref<16x1xf32, #tpu.memory_space<vmem>>, %arg6: memref<16x4096xf32, #tpu.memory_space<vmem>>) attributes {dimension_semantics = [#tpu.dimension_semantics<parallel>], iteration_bounds = array<i64: 1>, scalar_prefetch = 0 : i64, scratch_operands = 0 : i64, tpu.core_type = #tpu.core_type<tc>, window_params = [{transform_indices = @transform_0, window_bounds = array<i64: 4096, 16>}, {pipeline_mode = #tpu.pipeline_mode<synchronous>, transform_indices = @transform_1, window_bounds = array<i64: 32, 16>}, {pipeline_mode = #tpu.pipeline_mode<synchronous>, transform_indices = @transform_2, window_bounds = array<i64: 32, 1>}, {pipeline_mode = #tpu.pipeline_mode<synchronous>, transform_indices = @transform_3, window_bounds = array<i64: 16, 32>}, {pipeline_mode = #tpu.pipeline_mode<synchronous>, transform_indices = @transform_4, window_bounds = array<i64: 16, 1>}, {transform_indices = @transform_5, window_bounds = array<i64: 16, 4096>}]} {
    %c0 = arith.constant 0 : index
    %c0_0 = arith.constant 0 : index
    %0 = vector.load %arg2[%c0, %c0_0] : memref<32x16xf32, #tpu.memory_space<vmem>>, vector<32x16xf32>
    %c0_1 = arith.constant 0 : index
    %c0_2 = arith.constant 0 : index
    %1 = vector.load %arg1[%c0_1, %c0_2] : memref<4096x16xf32, #tpu.memory_space<vmem>>, vector<4096x16xf32>
    %cst = arith.constant dense<0.000000e+00> : vector<32x4096xf32>
    %2 = tpu.matmul %0, %1, %cst {dimension_numbers = #tpu.dot_dimension_numbers<[1], [1], [0], [0], [0, 0, 1, 0], [], []>} : vector<32x16xf32>, vector<4096x16xf32>, vector<32x4096xf32> -> vector<32x4096xf32>
    %c0_3 = arith.constant 0 : index
    %c0_4 = arith.constant 0 : index
    %3 = vector.load %arg3[%c0_3, %c0_4] : memref<32x1xf32, #tpu.memory_space<vmem>>, vector<32x1xf32>
    %4 = vector.broadcast %3 : vector<32x1xf32> to vector<32x4096xf32>
    %5 = arith.addf %2, %4 : vector<32x4096xf32>
    %cst_5 = arith.constant 0.000000e+00 : f32
    %6 = vector.broadcast %cst_5 : f32 to vector<32x4096xf32>
    %7 = arith.maximumf %5, %6 : vector<32x4096xf32>
    %c0_6 = arith.constant 0 : index
    %c0_7 = arith.constant 0 : index
    %8 = vector.load %arg4[%c0_6, %c0_7] : memref<16x32xf32, #tpu.memory_space<vmem>>, vector<16x32xf32>
    %cst_8 = arith.constant dense<0.000000e+00> : vector<16x4096xf32>
    %9 = tpu.matmul %8, %7, %cst_8 {dimension_numbers = #tpu.dot_dimension_numbers<[1], [0], [0], [1], [0, 0, 1, 1], [], []>} : vector<16x32xf32>, vector<32x4096xf32>, vector<16x4096xf32> -> vector<16x4096xf32>
    %c0_9 = arith.constant 0 : index
    %c0_10 = arith.constant 0 : index
    %10 = vector.load %arg5[%c0_9, %c0_10] : memref<16x1xf32, #tpu.memory_space<vmem>>, vector<16x1xf32>
    %11 = vector.broadcast %10 : vector<16x1xf32> to vector<16x4096xf32>
    %12 = arith.addf %9, %11 : vector<16x4096xf32>
    %cst_11 = arith.constant 0.000000e+00 : f32
    %13 = vector.broadcast %cst_11 : f32 to vector<16x4096xf32>
    %14 = arith.maximumf %12, %13 : vector<16x4096xf32>
    %c0_12 = arith.constant 0 : index
    %c0_13 = arith.constant 0 : index
    %15 = vector.load %arg6[%c0_12, %c0_13] : memref<16x4096xf32, #tpu.memory_space<vmem>>, vector<16x4096xf32>
    tpu.vector_store %arg6[%c0_12, %c0_13], %14 {strides = array<i32>} : memref<16x4096xf32, #tpu.memory_space<vmem>>, vector<16x4096xf32>,
    return
  }
  func.func @transform_0(%arg0: i32) -> (i32, i32) {
    %c0_i32 = arith.constant 0 : i32
    %c0_i32_0 = arith.constant 0 : i32
    return %arg0, %c0_i32 : i32, i32
  }
  func.func @transform_1(%arg0: i32) -> (i32, i32) {
    %c0_i32 = arith.constant 0 : i32
    %c0_i32_0 = arith.constant 0 : i32
    %c0_i32_1 = arith.constant 0 : i32
    return %c0_i32, %c0_i32_0 : i32, i32
  }
  func.func @transform_2(%arg0: i32) -> (i32, i32) {
    %c0_i32 = arith.constant 0 : i32
    %c0_i32_0 = arith.constant 0 : i32
    %c0_i32_1 = arith.constant 0 : i32
    return %c0_i32, %c0_i32_0 : i32, i32
  }
  func.func @transform_3(%arg0: i32) -> (i32, i32) {
    %c0_i32 = arith.constant 0 : i32
    %c0_i32_0 = arith.constant 0 : i32
    %c0_i32_1 = arith.constant 0 : i32
    return %c0_i32, %c0_i32_0 : i32, i32
  }
  func.func @transform_4(%arg0: i32) -> (i32, i32) {
    %c0_i32 = arith.constant 0 : i32
    %c0_i32_0 = arith.constant 0 : i32
    %c0_i32_1 = arith.constant 0 : i32
    return %c0_i32, %c0_i32_0 : i32, i32
  }
  func.func @transform_5(%arg0: i32) -> (i32, i32) {
    %c0_i32 = arith.constant 0 : i32
    %c0_i32_0 = arith.constant 0 : i32
    return %c0_i32, %arg0 : i32, i32
  }
}

</mosaic_0001>

<llo_original>
// kernel: particle_encoder.1
$region0: #{particle_encoder.1}
  #allocation0 [shape = 'u32[]', space=smem, size = 0x4, offset = 0x4, fixed_abs, tag = 'smem constant byte address 0x4 - core index']
  #allocation1 [shape = 'u32[144,128]{1,0:T(1,128)}', space=vmem, size = 0x12000, scoped, tag = 'internal scratch']
  %s0 = inlined_call_operand.vmem [shape: f32[100,16], index: 0, kind: input, shape index: {}]
  %s1 = inlined_call_operand.vmem [shape: f32[32,16], index: 1, kind: input, shape index: {}]
  %s2 = inlined_call_operand.vmem [shape: f32[32,1], index: 2, kind: input, shape index: {}]
  %s3 = inlined_call_operand.vmem [shape: f32[16,32], index: 3, kind: input, shape index: {}]
  %s4 = inlined_call_operand.vmem [shape: f32[16,1], index: 4, kind: input, shape index: {}]
  %s5 = inlined_call_operand.hbm [shape: f32[16,100], index: 5, kind: output, shape index: {}]
  %s6 = sld [smem:[#allocation0]]
  $region30: #{particle_encoder.1} parent=0
    _
  %s8 = ssub.s32 1, %s6
  %s9 = scalar_select 0, %s8, %s6
  $region1: #{particle_encoder.1} parent=0
    #allocation2 [shape = 'u8[262144]{0}', space=vmem, size = 0x40000, scoped, tag = 'output window, operand 0, single buffered']
    #allocation3 [shape = 's32[1]{0}', space=sflag, size = 0x4, scoped, tag = 'scoped memory for particle_encoder.1']
    %10 = vsyncpa [#allocation3], 0
    // Predicated region
    $region2: #{particle_encoder.1} parent=1 // pred_check
      _
    $region3: #{particle_encoder.1} parent=1 // pred_check_branch
      %12 = sbr.rel (0) target = $region5
    $region4: #{particle_encoder.1} parent=1 // pred_region
      _
    $region5: #{particle_encoder.1} parent=1 // pred_fallthru
      _
    // Predicated region
    $region6: #{particle_encoder.1} parent=1 // pred_check
      _
    $region7: #{particle_encoder.1} parent=1 // pred_check_branch
      %14 = sbr.rel (0) target = $region9
    $region8: #{particle_encoder.1} parent=1 // pred_region
      _
    $region9: #{particle_encoder.1} parent=1 // pred_fallthru
      _
    // Predicated region
    $region10: #{particle_encoder.1} parent=1 // pred_check
      _
    $region11: #{particle_encoder.1} parent=1 // pred_check_branch
      %16 = sbr.rel (0) target = $region13
    $region12: #{particle_encoder.1} parent=1 // pred_region
      _
    $region13: #{particle_encoder.1} parent=1 // pred_fallthru
      _
    // Predicated region
    $region14: #{particle_encoder.1} parent=1 // pred_check
      _
    $region15: #{particle_encoder.1} parent=1 // pred_check_branch
      %18 = sbr.rel (0) target = $region17
    $region16: #{particle_encoder.1} parent=1 // pred_region
      _
    $region17: #{particle_encoder.1} parent=1 // pred_fallthru
      _
    // Predicated region
    $region18: #{particle_encoder.1} parent=1 // pred_check
      _
    $region19: #{particle_encoder.1} parent=1 // pred_check_branch
      %20 = sbr.rel (0) target = $region21
    $region20: #{particle_encoder.1} parent=1 // pred_region
      _
    $region21: #{particle_encoder.1} parent=1 // pred_fallthru
      _
    %v21 = vld [vmem:[%s1] sm:$0xff]
    %v22 = vld [vmem:[%s1 + $0x8] sm:$0xff]
    %v23 = vld [vmem:[%s1 + $0x10] sm:$0xff]
    %v24 = vld [vmem:[%s1 + $0x18] sm:$0xff]
    %v25 = vld [vmem:[%s0] sm:$0xff]
    %v26 = vld [vmem:[%s0 + $0x8] sm:$0xff]
    %v27 = vld [vmem:[%s0 + $0x10] sm:$0xff]
    %v28 = vld [vmem:[%s0 + $0x18] sm:$0xff]
    %v29 = vld [vmem:[%s0 + $0x20] sm:$0xff]
    %v30 = vld [vmem:[%s0 + $0x28] sm:$0xff]
    %v31 = vld [vmem:[%s0 + $0x30] sm:$0xff]
    %v32 = vld [vmem:[%s0 + $0x38] sm:$0xff]
    %v33 = vld [vmem:[%s0 + $0x40] sm:$0xff]
    %v34 = vld [vmem:[%s0 + $0x48] sm:$0xff]
    %v35 = vld [vmem:[%s0 + $0x50] sm:$0xff]
    %v36 = vld [vmem:[%s0 + $0x58] sm:$0xff]
    %v37 = vld [vmem:[%s0 + $0x60] sm:$0xff]
    %v38 = vld [vmem:[%s0 + $0x68] sm:$0xff]
    %v39 = vld [vmem:[%s0 + $0x70] sm:$0xff]
    %v40 = vld [vmem:[%s0 + $0x78] sm:$0xff]
    %v41 = vld [vmem:[%s0 + $0x80] sm:$0xff]
    %v42 = vld [vmem:[%s0 + $0x88] sm:$0xff]
    %v43 = vld [vmem:[%s0 + $0x90] sm:$0xff]
    %v44 = vld [vmem:[%s0 + $0x98] sm:$0xff]
    %v45 = vld [vmem:[%s0 + $0xa0] sm:$0xff]
    %v46 = vld [vmem:[%s0 + $0xa8] sm:$0xff]
    %v47 = vld [vmem:[%s0 + $0xb0] sm:$0xff]
    %v48 = vld [vmem:[%s0 + $0xb8] sm:$0xff]
    %v49 = vld [vmem:[%s0 + $0xc0] sm:$0xff]
    %v50 = vld [vmem:[%s0 + $0xc8] sm:$0xff]
    %v51 = vld [vmem:[%s0 + $0xd0] sm:$0xff]
    %v52 = vld [vmem:[%s0 + $0xd8] sm:$0xff]
    %v53 = vld [vmem:[%s0 + $0xe0] sm:$0xff]
    %v54 = vld [vmem:[%s0 + $0xe8] sm:$0xff]
    %v55 = vld [vmem:[%s0 + $0xf0] sm:$0xff]
    %v56 = vld [vmem:[%s0 + $0xf8] sm:$0xff]
    %v57 = vld [vmem:[%s0 + $0x100] sm:$0xff]
    %v58 = vld [vmem:[%s0 + $0x108] sm:$0xff]
    %v59 = vld [vmem:[%s0 + $0x110] sm:$0xff]
    %v60 = vld [vmem:[%s0 + $0x118] sm:$0xff]
    %v61 = vld [vmem:[%s0 + $0x120] sm:$0xff]
    %v62 = vld [vmem:[%s0 + $0x128] sm:$0xff]
    %v63 = vld [vmem:[%s0 + $0x130] sm:$0xff]
    %v64 = vld [vmem:[%s0 + $0x138] sm:$0xff]
    %v65 = vld [vmem:[%s0 + $0x140] sm:$0xff]
    %v66 = vld [vmem:[%s0 + $0x148] sm:$0xff]
    %v67 = vld [vmem:[%s0 + $0x150] sm:$0xff]
    %v68 = vld [vmem:[%s0 + $0x158] sm:$0xff]
    %v69 = vld [vmem:[%s0 + $0x160] sm:$0xff]
    %v70 = vld [vmem:[%s0 + $0x168] sm:$0xff]
    %v71 = vld [vmem:[%s0 + $0x170] sm:$0xff]
    %v72 = vld [vmem:[%s0 + $0x178] sm:$0xff]
    %v73 = vld [vmem:[%s0 + $0x180] sm:$0xff]
    %v74 = vld [vmem:[%s0 + $0x188] sm:$0xff]
    %v75 = vld [vmem:[%s0 + $0x190] sm:$0xff]
    %v76 = vld [vmem:[%s0 + $0x198] sm:$0xff]
    %v77 = vld [vmem:[%s0 + $0x1a0] sm:$0xff]
    %v78 = vld [vmem:[%s0 + $0x1a8] sm:$0xff]
    %v79 = vld [vmem:[%s0 + $0x1b0] sm:$0xff]
    %v80 = vld [vmem:[%s0 + $0x1b8] sm:$0xff]
    %v81 = vld [vmem:[%s0 + $0x1c0] sm:$0xff]
    %v82 = vld [vmem:[%s0 + $0x1c8] sm:$0xff]
    %v83 = vld [vmem:[%s0 + $0x1d0] sm:$0xff]
    %v84 = vld [vmem:[%s0 + $0x1d8] sm:$0xff]
    %v85 = vld [vmem:[%s0 + $0x1e0] sm:$0xff]
    %v86 = vld [vmem:[%s0 + $0x1e8] sm:$0xff]
    %v87 = vld [vmem:[%s0 + $0x1f0] sm:$0xff]
    %v88 = vld [vmem:[%s0 + $0x1f8] sm:$0xff]
    %v89 = vld [vmem:[%s0 + $0x200] sm:$0xff]
    %v90 = vld [vmem:[%s0 + $0x208] sm:$0xff]
    %v91 = vld [vmem:[%s0 + $0x210] sm:$0xff]
    %v92 = vld [vmem:[%s0 + $0x218] sm:$0xff]
    %v93 = vld [vmem:[%s0 + $0x220] sm:$0xff]
    %v94 = vld [vmem:[%s0 + $0x228] sm:$0xff]
    %v95 = vld [vmem:[%s0 + $0x230] sm:$0xff]
    %v96 = vld [vmem:[%s0 + $0x238] sm:$0xff]
    %v97 = vld [vmem:[%s0 + $0x240] sm:$0xff]
    %v98 = vld [vmem:[%s0 + $0x248] sm:$0xff]
    %v99 = vld [vmem:[%s0 + $0x250] sm:$0xff]
    %v100 = vld [vmem:[%s0 + $0x258] sm:$0xff]
    %v101 = vld [vmem:[%s0 + $0x260] sm:$0xff]
    %v102 = vld [vmem:[%s0 + $0x268] sm:$0xff]
    %v103 = vld [vmem:[%s0 + $0x270] sm:$0xff]
    %v104 = vld [vmem:[%s0 + $0x278] sm:$0xff]
    %v105 = vld [vmem:[%s0 + $0x280] sm:$0xff]
    %v106 = vld [vmem:[%s0 + $0x288] sm:$0xff]
    %v107 = vld [vmem:[%s0 + $0x290] sm:$0xff]
    %v108 = vld [vmem:[%s0 + $0x298] sm:$0xff]
    %v109 = vld [vmem:[%s0 + $0x2a0] sm:$0xff]
    %v110 = vld [vmem:[%s0 + $0x2a8] sm:$0xff]
    %v111 = vld [vmem:[%s0 + $0x2b0] sm:$0xff]
    %v112 = vld [vmem:[%s0 + $0x2b8] sm:$0xff]
    %v113 = vld [vmem:[%s0 + $0x2c0] sm:$0xff]
    %v114 = vld [vmem:[%s0 + $0x2c8] sm:$0xff]
    %v115 = vld [vmem:[%s0 + $0x2d0] sm:$0xff]
    %v116 = vld [vmem:[%s0 + $0x2d8] sm:$0xff]
    %v117 = vld [vmem:[%s0 + $0x2e0] sm:$0xff]
    %v118 = vld [vmem:[%s0 + $0x2e8] sm:$0xff]
    %v119 = vld [vmem:[%s0 + $0x2f0] sm:$0xff]
    %v120 = vld [vmem:[%s0 + $0x2f8] sm:$0xff]
    %v121 = vld [vmem:[%s0 + $0x300] sm:$0xff]
    %v122 = vld [vmem:[%s0 + $0x308] sm:$0xff]
    %v123 = vld [vmem:[%s0 + $0x310] sm:$0xff]
    %v124 = vld [vmem:[%s0 + $0x318] sm:$0xff]
    %v125 = vld [vmem:[%s0 + $0x320] sm:$0xff]
    %v126 = vld [vmem:[%s0 + $0x328] sm:$0xff]
    %v127 = vld [vmem:[%s0 + $0x330] sm:$0xff]
    %v128 = vld [vmem:[%s0 + $0x338] sm:$0xff]
    %v129 = vld [vmem:[%s0 + $0x340] sm:$0xff]
    %v130 = vld [vmem:[%s0 + $0x348] sm:$0xff]
    %v131 = vld [vmem:[%s0 + $0x350] sm:$0xff]
    %v132 = vld [vmem:[%s0 + $0x358] sm:$0xff]
    %v133 = vld [vmem:[%s0 + $0x360] sm:$0xff]
    %v134 = vld [vmem:[%s0 + $0x368] sm:$0xff]
    %v135 = vld [vmem:[%s0 + $0x370] sm:$0xff]
    %v136 = vld [vmem:[%s0 + $0x378] sm:$0xff]
    %v137 = vld [vmem:[%s0 + $0x380] sm:$0xff]
    %v138 = vld [vmem:[%s0 + $0x388] sm:$0xff]
    %v139 = vld [vmem:[%s0 + $0x390] sm:$0xff]
    %v140 = vld [vmem:[%s0 + $0x398] sm:$0xff]
    %v141 = vld [vmem:[%s0 + $0x3a0] sm:$0xff]
    %v142 = vld [vmem:[%s0 + $0x3a8] sm:$0xff]
    %v143 = vld [vmem:[%s0 + $0x3b0] sm:$0xff]
    %v144 = vld [vmem:[%s0 + $0x3b8] sm:$0xff]
    %v145 = vld [vmem:[%s0 + $0x3c0] sm:$0xff]
    %v146 = vld [vmem:[%s0 + $0x3c8] sm:$0xff]
    %v147 = vld [vmem:[%s0 + $0x3d0] sm:$0xff]
    %v148 = vld [vmem:[%s0 + $0x3d8] sm:$0xff]
    %v149 = vld [vmem:[%s0 + $0x3e0] sm:$0xff]
    %v150 = vld [vmem:[%s0 + $0x3e8] sm:$0xff]
    %v151 = vld [vmem:[%s0 + $0x3f0] sm:$0xff]
    %v152 = vld [vmem:[%s0 + $0x3f8] sm:$0xff]
    %v153 = vld [vmem:[%s0 + $0x400] sm:$0xff]
    %v154 = vld [vmem:[%s0 + $0x408] sm:$0xff]
    %v155 = vld [vmem:[%s0 + $0x410] sm:$0xff]
    %v156 = vld [vmem:[%s0 + $0x418] sm:$0xff]
    %v157 = vld [vmem:[%s0 + $0x420] sm:$0xff]
    %v158 = vld [vmem:[%s0 + $0x428] sm:$0xff]
    %v159 = vld [vmem:[%s0 + $0x430] sm:$0xff]
    %v160 = vld [vmem:[%s0 + $0x438] sm:$0xff]
    %v161 = vld [vmem:[%s0 + $0x440] sm:$0xff]
    %v162 = vld [vmem:[%s0 + $0x448] sm:$0xff]
    %v163 = vld [vmem:[%s0 + $0x450] sm:$0xff]
    %v164 = vld [vmem:[%s0 + $0x458] sm:$0xff]
    %v165 = vld [vmem:[%s0 + $0x460] sm:$0xff]
    %v166 = vld [vmem:[%s0 + $0x468] sm:$0xff]
    %v167 = vld [vmem:[%s0 + $0x470] sm:$0xff]
    %v168 = vld [vmem:[%s0 + $0x478] sm:$0xff]
    %v169 = vld [vmem:[%s0 + $0x480] sm:$0xff]
    %v170 = vld [vmem:[%s0 + $0x488] sm:$0xff]
    %v171 = vld [vmem:[%s0 + $0x490] sm:$0xff]
    %v172 = vld [vmem:[%s0 + $0x498] sm:$0xff]
    %v173 = vld [vmem:[%s0 + $0x4a0] sm:$0xff]
    %v174 = vld [vmem:[%s0 + $0x4a8] sm:$0xff]
    %v175 = vld [vmem:[%s0 + $0x4b0] sm:$0xff]
    %v176 = vld [vmem:[%s0 + $0x4b8] sm:$0xff]
    %v177 = vld [vmem:[%s0 + $0x4c0] sm:$0xff]
    %v178 = vld [vmem:[%s0 + $0x4c8] sm:$0xff]
    %v179 = vld [vmem:[%s0 + $0x4d0] sm:$0xff]
    %v180 = vld [vmem:[%s0 + $0x4d8] sm:$0xff]
    %v181 = vld [vmem:[%s0 + $0x4e0] sm:$0xff]
    %v182 = vld [vmem:[%s0 + $0x4e8] sm:$0xff]
    %v183 = vld [vmem:[%s0 + $0x4f0] sm:$0xff]
    %v184 = vld [vmem:[%s0 + $0x4f8] sm:$0xff]
    %v185 = vld [vmem:[%s0 + $0x500] sm:$0xff]
    %v186 = vld [vmem:[%s0 + $0x508] sm:$0xff]
    %v187 = vld [vmem:[%s0 + $0x510] sm:$0xff]
    %v188 = vld [vmem:[%s0 + $0x518] sm:$0xff]
    %v189 = vld [vmem:[%s0 + $0x520] sm:$0xff]
    %v190 = vld [vmem:[%s0 + $0x528] sm:$0xff]
    %v191 = vld [vmem:[%s0 + $0x530] sm:$0xff]
    %v192 = vld [vmem:[%s0 + $0x538] sm:$0xff]
    %v193 = vld [vmem:[%s0 + $0x540] sm:$0xff]
    %v194 = vld [vmem:[%s0 + $0x548] sm:$0xff]
    %v195 = vld [vmem:[%s0 + $0x550] sm:$0xff]
    %v196 = vld [vmem:[%s0 + $0x558] sm:$0xff]
    %v197 = vld [vmem:[%s0 + $0x560] sm:$0xff]
    %v198 = vld [vmem:[%s0 + $0x568] sm:$0xff]
    %v199 = vld [vmem:[%s0 + $0x570] sm:$0xff]
    %v200 = vld [vmem:[%s0 + $0x578] sm:$0xff]
    %v201 = vld [vmem:[%s0 + $0x580] sm:$0xff]
    %v202 = vld [vmem:[%s0 + $0x588] sm:$0xff]
    %v203 = vld [vmem:[%s0 + $0x590] sm:$0xff]
    %v204 = vld [vmem:[%s0 + $0x598] sm:$0xff]
    %v205 = vld [vmem:[%s0 + $0x5a0] sm:$0xff]
    %v206 = vld [vmem:[%s0 + $0x5a8] sm:$0xff]
    %v207 = vld [vmem:[%s0 + $0x5b0] sm:$0xff]
    %v208 = vld [vmem:[%s0 + $0x5b8] sm:$0xff]
    %v209 = vld [vmem:[%s0 + $0x5c0] sm:$0xff]
    %v210 = vld [vmem:[%s0 + $0x5c8] sm:$0xff]
    %v211 = vld [vmem:[%s0 + $0x5d0] sm:$0xff]
    %v212 = vld [vmem:[%s0 + $0x5d8] sm:$0xff]
    %v213 = vld [vmem:[%s0 + $0x5e0] sm:$0xff]
    %v214 = vld [vmem:[%s0 + $0x5e8] sm:$0xff]
    %v215 = vld [vmem:[%s0 + $0x5f0] sm:$0xff]
    %v216 = vld [vmem:[%s0 + $0x5f8] sm:$0xff]
    %v217 = vld [vmem:[%s0 + $0x600] sm:$0xff]
    %v218 = vld [vmem:[%s0 + $0x608] sm:$0xff]
    %v219 = vld [vmem:[%s0 + $0x610] sm:$0xff]
    %v220 = vld [vmem:[%s0 + $0x618] sm:$0xff]
    %v221 = vld [vmem:[%s0 + $0x620] sm:$0xff]
    %v222 = vld [vmem:[%s0 + $0x628] sm:$0xff]
    %v223 = vld [vmem:[%s0 + $0x630] sm:$0xff]
    %v224 = vld [vmem:[%s0 + $0x638] sm:$0xff]
    %v225 = vld [vmem:[%s0 + $0x640] sm:$0xff]
    %v226 = vld [vmem:[%s0 + $0x648] sm:$0xff]
    %v227 = vld [vmem:[%s0 + $0x650] sm:$0xff]
    %v228 = vld [vmem:[%s0 + $0x658] sm:$0xff]
    %v229 = vld [vmem:[%s0 + $0x660] sm:$0xff]
    %v230 = vld [vmem:[%s0 + $0x668] sm:$0xff]
    %v231 = vld [vmem:[%s0 + $0x670] sm:$0xff]
    %v232 = vld [vmem:[%s0 + $0x678] sm:$0xff]
    %v233 = vld [vmem:[%s0 + $0x680] sm:$0xff]
    %v234 = vld [vmem:[%s0 + $0x688] sm:$0xff]
    %v235 = vld [vmem:[%s0 + $0x690] sm:$0xff]
    %v236 = vld [vmem:[%s0 + $0x698] sm:$0xff]
    %v237 = vld [vmem:[%s0 + $0x6a0] sm:$0xff]
    %v238 = vld [vmem:[%s0 + $0x6a8] sm:$0xff]
    %v239 = vld [vmem:[%s0 + $0x6b0] sm:$0xff]
    %v240 = vld [vmem:[%s0 + $0x6b8] sm:$0xff]
    %v241 = vld [vmem:[%s0 + $0x6c0] sm:$0xff]
    %v242 = vld [vmem:[%s0 + $0x6c8] sm:$0xff]
    %v243 = vld [vmem:[%s0 + $0x6d0] sm:$0xff]
    %v244 = vld [vmem:[%s0 + $0x6d8] sm:$0xff]
    %v245 = vld [vmem:[%s0 + $0x6e0] sm:$0xff]
    %v246 = vld [vmem:[%s0 + $0x6e8] sm:$0xff]
    %v247 = vld [vmem:[%s0 + $0x6f0] sm:$0xff]
    %v248 = vld [vmem:[%s0 + $0x6f8] sm:$0xff]
    %v249 = vld [vmem:[%s0 + $0x700] sm:$0xff]
    %v250 = vld [vmem:[%s0 + $0x708] sm:$0xff]
    %v251 = vld [vmem:[%s0 + $0x710] sm:$0xff]
    %v252 = vld [vmem:[%s0 + $0x718] sm:$0xff]
    %v253 = vld [vmem:[%s0 + $0x720] sm:$0xff]
    %v254 = vld [vmem:[%s0 + $0x728] sm:$0xff]
    %v255 = vld [vmem:[%s0 + $0x730] sm:$0xff]
    %v256 = vld [vmem:[%s0 + $0x738] sm:$0xff]
    %v257 = vld [vmem:[%s0 + $0x740] sm:$0xff]
    %v258 = vld [vmem:[%s0 + $0x748] sm:$0xff]
    %v259 = vld [vmem:[%s0 + $0x750] sm:$0xff]
    %v260 = vld [vmem:[%s0 + $0x758] sm:$0xff]
    %v261 = vld [vmem:[%s0 + $0x760] sm:$0xff]
    %v262 = vld [vmem:[%s0 + $0x768] sm:$0xff]
    %v263 = vld [vmem:[%s0 + $0x770] sm:$0xff]
    %v264 = vld [vmem:[%s0 + $0x778] sm:$0xff]
    %v265 = vld [vmem:[%s0 + $0x780] sm:$0xff]
    %v266 = vld [vmem:[%s0 + $0x788] sm:$0xff]
    %v267 = vld [vmem:[%s0 + $0x790] sm:$0xff]
    %v268 = vld [vmem:[%s0 + $0x798] sm:$0xff]
    %v269 = vld [vmem:[%s0 + $0x7a0] sm:$0xff]
    %v270 = vld [vmem:[%s0 + $0x7a8] sm:$0xff]
    %v271 = vld [vmem:[%s0 + $0x7b0] sm:$0xff]
    %v272 = vld [vmem:[%s0 + $0x7b8] sm:$0xff]
    %v273 = vld [vmem:[%s0 + $0x7c0] sm:$0xff]
    %v274 = vld [vmem:[%s0 + $0x7c8] sm:$0xff]
    %v275 = vld [vmem:[%s0 + $0x7d0] sm:$0xff]
    %v276 = vld [vmem:[%s0 + $0x7d8] sm:$0xff]
    %v277 = vld [vmem:[%s0 + $0x7e0] sm:$0xff]
    %v278 = vld [vmem:[%s0 + $0x7e8] sm:$0xff]
    %v279 = vld [vmem:[%s0 + $0x7f0] sm:$0xff]
    %v280 = vld [vmem:[%s0 + $0x7f8] sm:$0xff]
    %v281 = vld [vmem:[%s0 + $0x800] sm:$0xff]
    %v282 = vld [vmem:[%s0 + $0x808] sm:$0xff]
    %v283 = vld [vmem:[%s0 + $0x810] sm:$0xff]
    %v284 = vld [vmem:[%s0 + $0x818] sm:$0xff]
    %v285 = vld [vmem:[%s0 + $0x820] sm:$0xff]
    %v286 = vld [vmem:[%s0 + $0x828] sm:$0xff]
    %v287 = vld [vmem:[%s0 + $0x830] sm:$0xff]
    %v288 = vld [vmem:[%s0 + $0x838] sm:$0xff]
    %v289 = vld [vmem:[%s0 + $0x840] sm:$0xff]
    %v290 = vld [vmem:[%s0 + $0x848] sm:$0xff]
    %v291 = vld [vmem:[%s0 + $0x850] sm:$0xff]
    %v292 = vld [vmem:[%s0 + $0x858] sm:$0xff]
    %v293 = vld [vmem:[%s0 + $0x860] sm:$0xff]
    %v294 = vld [vmem:[%s0 + $0x868] sm:$0xff]
    %v295 = vld [vmem:[%s0 + $0x870] sm:$0xff]
    %v296 = vld [vmem:[%s0 + $0x878] sm:$0xff]
    %v297 = vld [vmem:[%s0 + $0x880] sm:$0xff]
    %v298 = vld [vmem:[%s0 + $0x888] sm:$0xff]
    %v299 = vld [vmem:[%s0 + $0x890] sm:$0xff]
    %v300 = vld [vmem:[%s0 + $0x898] sm:$0xff]
    %v301 = vld [vmem:[%s0 + $0x8a0] sm:$0xff]
    %v302 = vld [vmem:[%s0 + $0x8a8] sm:$0xff]
    %v303 = vld [vmem:[%s0 + $0x8b0] sm:$0xff]
    %v304 = vld [vmem:[%s0 + $0x8b8] sm:$0xff]
    %v305 = vld [vmem:[%s0 + $0x8c0] sm:$0xff]
    %v306 = vld [vmem:[%s0 + $0x8c8] sm:$0xff]
    %v307 = vld [vmem:[%s0 + $0x8d0] sm:$0xff]
    %v308 = vld [vmem:[%s0 + $0x8d8] sm:$0xff]
    %v309 = vld [vmem:[%s0 + $0x8e0] sm:$0xff]
    %v310 = vld [vmem:[%s0 + $0x8e8] sm:$0xff]
    %v311 = vld [vmem:[%s0 + $0x8f0] sm:$0xff]
    %v312 = vld [vmem:[%s0 + $0x8f8] sm:$0xff]
    %v313 = vld [vmem:[%s0 + $0x900] sm:$0xff]
    %v314 = vld [vmem:[%s0 + $0x908] sm:$0xff]
    %v315 = vld [vmem:[%s0 + $0x910] sm:$0xff]
    %v316 = vld [vmem:[%s0 + $0x918] sm:$0xff]
    %v317 = vld [vmem:[%s0 + $0x920] sm:$0xff]
    %v318 = vld [vmem:[%s0 + $0x928] sm:$0xff]
    %v319 = vld [vmem:[%s0 + $0x930] sm:$0xff]
    %v320 = vld [vmem:[%s0 + $0x938] sm:$0xff]
    %v321 = vld [vmem:[%s0 + $0x940] sm:$0xff]
    %v322 = vld [vmem:[%s0 + $0x948] sm:$0xff]
    %v323 = vld [vmem:[%s0 + $0x950] sm:$0xff]
    %v324 = vld [vmem:[%s0 + $0x958] sm:$0xff]
    %v325 = vld [vmem:[%s0 + $0x960] sm:$0xff]
    %v326 = vld [vmem:[%s0 + $0x968] sm:$0xff]
    %v327 = vld [vmem:[%s0 + $0x970] sm:$0xff]
    %v328 = vld [vmem:[%s0 + $0x978] sm:$0xff]
    %v329 = vld [vmem:[%s0 + $0x980] sm:$0xff]
    %v330 = vld [vmem:[%s0 + $0x988] sm:$0xff]
    %v331 = vld [vmem:[%s0 + $0x990] sm:$0xff]
    %v332 = vld [vmem:[%s0 + $0x998] sm:$0xff]
    %v333 = vld [vmem:[%s0 + $0x9a0] sm:$0xff]
    %v334 = vld [vmem:[%s0 + $0x9a8] sm:$0xff]
    %v335 = vld [vmem:[%s0 + $0x9b0] sm:$0xff]
    %v336 = vld [vmem:[%s0 + $0x9b8] sm:$0xff]
    %v337 = vld [vmem:[%s0 + $0x9c0] sm:$0xff]
    %v338 = vld [vmem:[%s0 + $0x9c8] sm:$0xff]
    %v339 = vld [vmem:[%s0 + $0x9d0] sm:$0xff]
    %v340 = vld [vmem:[%s0 + $0x9d8] sm:$0xff]
    %v341 = vld [vmem:[%s0 + $0x9e0] sm:$0xff]
    %v342 = vld [vmem:[%s0 + $0x9e8] sm:$0xff]
    %v343 = vld [vmem:[%s0 + $0x9f0] sm:$0xff]
    %v344 = vld [vmem:[%s0 + $0x9f8] sm:$0xff]
    %v345 = vld [vmem:[%s0 + $0xa00] sm:$0xff]
    %v346 = vld [vmem:[%s0 + $0xa08] sm:$0xff]
    %v347 = vld [vmem:[%s0 + $0xa10] sm:$0xff]
    %v348 = vld [vmem:[%s0 + $0xa18] sm:$0xff]
    %v349 = vld [vmem:[%s0 + $0xa20] sm:$0xff]
    %v350 = vld [vmem:[%s0 + $0xa28] sm:$0xff]
    %v351 = vld [vmem:[%s0 + $0xa30] sm:$0xff]
    %v352 = vld [vmem:[%s0 + $0xa38] sm:$0xff]
    %v353 = vld [vmem:[%s0 + $0xa40] sm:$0xff]
    %v354 = vld [vmem:[%s0 + $0xa48] sm:$0xff]
    %v355 = vld [vmem:[%s0 + $0xa50] sm:$0xff]
    %v356 = vld [vmem:[%s0 + $0xa58] sm:$0xff]
    %v357 = vld [vmem:[%s0 + $0xa60] sm:$0xff]
    %v358 = vld [vmem:[%s0 + $0xa68] sm:$0xff]
    %v359 = vld [vmem:[%s0 + $0xa70] sm:$0xff]
    %v360 = vld [vmem:[%s0 + $0xa78] sm:$0xff]
    %v361 = vld [vmem:[%s0 + $0xa80] sm:$0xff]
    %v362 = vld [vmem:[%s0 + $0xa88] sm:$0xff]
    %v363 = vld [vmem:[%s0 + $0xa90] sm:$0xff]
    %v364 = vld [vmem:[%s0 + $0xa98] sm:$0xff]
    %v365 = vld [vmem:[%s0 + $0xaa0] sm:$0xff]
    %v366 = vld [vmem:[%s0 + $0xaa8] sm:$0xff]
    %v367 = vld [vmem:[%s0 + $0xab0] sm:$0xff]
    %v368 = vld [vmem:[%s0 + $0xab8] sm:$0xff]
    %v369 = vld [vmem:[%s0 + $0xac0] sm:$0xff]
    %v370 = vld [vmem:[%s0 + $0xac8] sm:$0xff]
    %v371 = vld [vmem:[%s0 + $0xad0] sm:$0xff]
    %v372 = vld [vmem:[%s0 + $0xad8] sm:$0xff]
    %v373 = vld [vmem:[%s0 + $0xae0] sm:$0xff]
    %v374 = vld [vmem:[%s0 + $0xae8] sm:$0xff]
    %v375 = vld [vmem:[%s0 + $0xaf0] sm:$0xff]
    %v376 = vld [vmem:[%s0 + $0xaf8] sm:$0xff]
    %v377 = vld [vmem:[%s0 + $0xb00] sm:$0xff]
    %v378 = vld [vmem:[%s0 + $0xb08] sm:$0xff]
    %v379 = vld [vmem:[%s0 + $0xb10] sm:$0xff]
    %v380 = vld [vmem:[%s0 + $0xb18] sm:$0xff]
    %v381 = vld [vmem:[%s0 + $0xb20] sm:$0xff]
    %v382 = vld [vmem:[%s0 + $0xb28] sm:$0xff]
    %v383 = vld [vmem:[%s0 + $0xb30] sm:$0xff]
    %v384 = vld [vmem:[%s0 + $0xb38] sm:$0xff]
    %v385 = vld [vmem:[%s0 + $0xb40] sm:$0xff]
    %v386 = vld [vmem:[%s0 + $0xb48] sm:$0xff]
    %v387 = vld [vmem:[%s0 + $0xb50] sm:$0xff]
    %v388 = vld [vmem:[%s0 + $0xb58] sm:$0xff]
    %v389 = vld [vmem:[%s0 + $0xb60] sm:$0xff]
    %v390 = vld [vmem:[%s0 + $0xb68] sm:$0xff]
    %v391 = vld [vmem:[%s0 + $0xb70] sm:$0xff]
    %v392 = vld [vmem:[%s0 + $0xb78] sm:$0xff]
    %v393 = vld [vmem:[%s0 + $0xb80] sm:$0xff]
    %v394 = vld [vmem:[%s0 + $0xb88] sm:$0xff]
    %v395 = vld [vmem:[%s0 + $0xb90] sm:$0xff]
    %v396 = vld [vmem:[%s0 + $0xb98] sm:$0xff]
    %v397 = vld [vmem:[%s0 + $0xba0] sm:$0xff]
    %v398 = vld [vmem:[%s0 + $0xba8] sm:$0xff]
    %v399 = vld [vmem:[%s0 + $0xbb0] sm:$0xff]
    %v400 = vld [vmem:[%s0 + $0xbb8] sm:$0xff]
    %v401 = vld [vmem:[%s0 + $0xbc0] sm:$0xff]
    %v402 = vld [vmem:[%s0 + $0xbc8] sm:$0xff]
    %v403 = vld [vmem:[%s0 + $0xbd0] sm:$0xff]
    %v404 = vld [vmem:[%s0 + $0xbd8] sm:$0xff]
    %v405 = vld [vmem:[%s0 + $0xbe0] sm:$0xff]
    %v406 = vld [vmem:[%s0 + $0xbe8] sm:$0xff]
    %v407 = vld [vmem:[%s0 + $0xbf0] sm:$0xff]
    %v408 = vld [vmem:[%s0 + $0xbf8] sm:$0xff]
    %v409 = vld [vmem:[%s0 + $0xc00] sm:$0xff]
    %v410 = vld [vmem:[%s0 + $0xc08] sm:$0xff]
    %v411 = vld [vmem:[%s0 + $0xc10] sm:$0xff]
    %v412 = vld [vmem:[%s0 + $0xc18] sm:$0xff]
    %v413 = vld [vmem:[%s0 + $0xc20] sm:$0xff]
    %v414 = vld [vmem:[%s0 + $0xc28] sm:$0xff]
    %v415 = vld [vmem:[%s0 + $0xc30] sm:$0xff]
    %v416 = vld [vmem:[%s0 + $0xc38] sm:$0xff]
    %v417 = vld [vmem:[%s0 + $0xc40] sm:$0xff]
    %v418 = vld [vmem:[%s0 + $0xc48] sm:$0xff]
    %v419 = vld [vmem:[%s0 + $0xc50] sm:$0xff]
    %v420 = vld [vmem:[%s0 + $0xc58] sm:$0xff]
    %v421 = vld [vmem:[%s0 + $0xc60] sm:$0xff]
    %v422 = vld [vmem:[%s0 + $0xc68] sm:$0xff]
    %v423 = vld [vmem:[%s0 + $0xc70] sm:$0xff]
    %v424 = vld [vmem:[%s0 + $0xc78] sm:$0xff]
    %v425 = vld [vmem:[%s0 + $0xc80] sm:$0xff]
    %v426 = vld [vmem:[%s0 + $0xc88] sm:$0xff]
    %v427 = vld [vmem:[%s0 + $0xc90] sm:$0xff]
    %v428 = vld [vmem:[%s0 + $0xc98] sm:$0xff]
    %v429 = vld [vmem:[%s0 + $0xca0] sm:$0xff]
    %v430 = vld [vmem:[%s0 + $0xca8] sm:$0xff]
    %v431 = vld [vmem:[%s0 + $0xcb0] sm:$0xff]
    %v432 = vld [vmem:[%s0 + $0xcb8] sm:$0xff]
    %v433 = vld [vmem:[%s0 + $0xcc0] sm:$0xff]
    %v434 = vld [vmem:[%s0 + $0xcc8] sm:$0xff]
    %v435 = vld [vmem:[%s0 + $0xcd0] sm:$0xff]
    %v436 = vld [vmem:[%s0 + $0xcd8] sm:$0xff]
    %v437 = vld [vmem:[%s0 + $0xce0] sm:$0xff]
    %v438 = vld [vmem:[%s0 + $0xce8] sm:$0xff]
    %v439 = vld [vmem:[%s0 + $0xcf0] sm:$0xff]
    %v440 = vld [vmem:[%s0 + $0xcf8] sm:$0xff]
    %v441 = vld [vmem:[%s0 + $0xd00] sm:$0xff]
    %v442 = vld [vmem:[%s0 + $0xd08] sm:$0xff]
    %v443 = vld [vmem:[%s0 + $0xd10] sm:$0xff]
    %v444 = vld [vmem:[%s0 + $0xd18] sm:$0xff]
    %v445 = vld [vmem:[%s0 + $0xd20] sm:$0xff]
    %v446 = vld [vmem:[%s0 + $0xd28] sm:$0xff]
    %v447 = vld [vmem:[%s0 + $0xd30] sm:$0xff]
    %v448 = vld [vmem:[%s0 + $0xd38] sm:$0xff]
    %v449 = vld [vmem:[%s0 + $0xd40] sm:$0xff]
    %v450 = vld [vmem:[%s0 + $0xd48] sm:$0xff]
    %v451 = vld [vmem:[%s0 + $0xd50] sm:$0xff]
    %v452 = vld [vmem:[%s0 + $0xd58] sm:$0xff]
    %v453 = vld [vmem:[%s0 + $0xd60] sm:$0xff]
    %v454 = vld [vmem:[%s0 + $0xd68] sm:$0xff]
    %v455 = vld [vmem:[%s0 + $0xd70] sm:$0xff]
    %v456 = vld [vmem:[%s0 + $0xd78] sm:$0xff]
    %v457 = vld [vmem:[%s0 + $0xd80] sm:$0xff]
    %v458 = vld [vmem:[%s0 + $0xd88] sm:$0xff]
    %v459 = vld [vmem:[%s0 + $0xd90] sm:$0xff]
    %v460 = vld [vmem:[%s0 + $0xd98] sm:$0xff]
    %v461 = vld [vmem:[%s0 + $0xda0] sm:$0xff]
    %v462 = vld [vmem:[%s0 + $0xda8] sm:$0xff]
    %v463 = vld [vmem:[%s0 + $0xdb0] sm:$0xff]
    %v464 = vld [vmem:[%s0 + $0xdb8] sm:$0xff]
    %v465 = vld [vmem:[%s0 + $0xdc0] sm:$0xff]
    %v466 = vld [vmem:[%s0 + $0xdc8] sm:$0xff]
    %v467 = vld [vmem:[%s0 + $0xdd0] sm:$0xff]
    %v468 = vld [vmem:[%s0 + $0xdd8] sm:$0xff]
    %v469 = vld [vmem:[%s0 + $0xde0] sm:$0xff]
    %v470 = vld [vmem:[%s0 + $0xde8] sm:$0xff]
    %v471 = vld [vmem:[%s0 + $0xdf0] sm:$0xff]
    %v472 = vld [vmem:[%s0 + $0xdf8] sm:$0xff]
    %v473 = vld [vmem:[%s0 + $0xe00] sm:$0xff]
    %v474 = vld [vmem:[%s0 + $0xe08] sm:$0xff]
    %v475 = vld [vmem:[%s0 + $0xe10] sm:$0xff]
    %v476 = vld [vmem:[%s0 + $0xe18] sm:$0xff]
    %v477 = vld [vmem:[%s0 + $0xe20] sm:$0xff]
    %v478 = vld [vmem:[%s0 + $0xe28] sm:$0xff]
    %v479 = vld [vmem:[%s0 + $0xe30] sm:$0xff]
    %v480 = vld [vmem:[%s0 + $0xe38] sm:$0xff]
    %v481 = vld [vmem:[%s0 + $0xe40] sm:$0xff]
    %v482 = vld [vmem:[%s0 + $0xe48] sm:$0xff]
    %v483 = vld [vmem:[%s0 + $0xe50] sm:$0xff]
    %v484 = vld [vmem:[%s0 + $0xe58] sm:$0xff]
    %v485 = vld [vmem:[%s0 + $0xe60] sm:$0xff]
    %v486 = vld [vmem:[%s0 + $0xe68] sm:$0xff]
    %v487 = vld [vmem:[%s0 + $0xe70] sm:$0xff]
    %v488 = vld [vmem:[%s0 + $0xe78] sm:$0xff]
    %v489 = vld [vmem:[%s0 + $0xe80] sm:$0xff]
    %v490 = vld [vmem:[%s0 + $0xe88] sm:$0xff]
    %v491 = vld [vmem:[%s0 + $0xe90] sm:$0xff]
    %v492 = vld [vmem:[%s0 + $0xe98] sm:$0xff]
    %v493 = vld [vmem:[%s0 + $0xea0] sm:$0xff]
    %v494 = vld [vmem:[%s0 + $0xea8] sm:$0xff]
    %v495 = vld [vmem:[%s0 + $0xeb0] sm:$0xff]
    %v496 = vld [vmem:[%s0 + $0xeb8] sm:$0xff]
    %v497 = vld [vmem:[%s0 + $0xec0] sm:$0xff]
    %v498 = vld [vmem:[%s0 + $0xec8] sm:$0xff]
    %v499 = vld [vmem:[%s0 + $0xed0] sm:$0xff]
    %v500 = vld [vmem:[%s0 + $0xed8] sm:$0xff]
    %v501 = vld [vmem:[%s0 + $0xee0] sm:$0xff]
    %v502 = vld [vmem:[%s0 + $0xee8] sm:$0xff]
    %v503 = vld [vmem:[%s0 + $0xef0] sm:$0xff]
    %v504 = vld [vmem:[%s0 + $0xef8] sm:$0xff]
    %v505 = vld [vmem:[%s0 + $0xf00] sm:$0xff]
    %v506 = vld [vmem:[%s0 + $0xf08] sm:$0xff]
    %v507 = vld [vmem:[%s0 + $0xf10] sm:$0xff]
    %v508 = vld [vmem:[%s0 + $0xf18] sm:$0xff]
    %v509 = vld [vmem:[%s0 + $0xf20] sm:$0xff]
    %v510 = vld [vmem:[%s0 + $0xf28] sm:$0xff]
    %v511 = vld [vmem:[%s0 + $0xf30] sm:$0xff]
    %v512 = vld [vmem:[%s0 + $0xf38] sm:$0xff]
    %v513 = vld [vmem:[%s0 + $0xf40] sm:$0xff]
    %v514 = vld [vmem:[%s0 + $0xf48] sm:$0xff]
    %v515 = vld [vmem:[%s0 + $0xf50] sm:$0xff]
    %v516 = vld [vmem:[%s0 + $0xf58] sm:$0xff]
    %v517 = vld [vmem:[%s0 + $0xf60] sm:$0xff]
    %v518 = vld [vmem:[%s0 + $0xf68] sm:$0xff]
    %v519 = vld [vmem:[%s0 + $0xf70] sm:$0xff]
    %v520 = vld [vmem:[%s0 + $0xf78] sm:$0xff]
    %v521 = vld [vmem:[%s0 + $0xf80] sm:$0xff]
    %v522 = vld [vmem:[%s0 + $0xf88] sm:$0xff]
    %v523 = vld [vmem:[%s0 + $0xf90] sm:$0xff]
    %v524 = vld [vmem:[%s0 + $0xf98] sm:$0xff]
    %v525 = vld [vmem:[%s0 + $0xfa0] sm:$0xff]
    %v526 = vld [vmem:[%s0 + $0xfa8] sm:$0xff]
    %v527 = vld [vmem:[%s0 + $0xfb0] sm:$0xff]
    %v528 = vld [vmem:[%s0 + $0xfb8] sm:$0xff]
    %v529 = vld [vmem:[%s0 + $0xfc0] sm:$0xff]
    %v530 = vld [vmem:[%s0 + $0xfc8] sm:$0xff]
    %v531 = vld [vmem:[%s0 + $0xfd0] sm:$0xff]
    %v532 = vld [vmem:[%s0 + $0xfd8] sm:$0xff]
    %v533 = vld [vmem:[%s0 + $0xfe0] sm:$0xff]
    %v534 = vld [vmem:[%s0 + $0xfe8] sm:$0xff]
    %v535 = vld [vmem:[%s0 + $0xff0] sm:$0xff]
    %v536 = vld [vmem:[%s0 + $0xff8] sm:$0xff]
    %v537 = vld [vmem:[%s2] sm:$0xff]
    %v538 = vld [vmem:[%s2 + $0x8] sm:$0xff]
    %v539 = vld [vmem:[%s2 + $0x10] sm:$0xff]
    %v540 = vld [vmem:[%s2 + $0x18] sm:$0xff]
    %542 = vset.pattern.permute.xlu0 0
    %543 = vperm.xlu0 %542, %v537
    %v544 = vpop.permute.xlu0 %543
    %547 = vset.pattern.permute.xlu0 0
    %548 = vperm.xlu0 %547, %v538
    %v549 = vpop.permute.xlu0 %548
    %552 = vset.pattern.permute.xlu0 0
    %553 = vperm.xlu0 %552, %v539
    %v554 = vpop.permute.xlu0 %553
    %557 = vset.pattern.permute.xlu0 0
    %558 = vperm.xlu0 %557, %v540
    %v559 = vpop.permute.xlu0 %558
    %vm561 = vcmask 130048
    %v563 = vsel %vm561, %v21, 0
    %v566 = vsel %vm561, %v22, 0
    %v569 = vsel %vm561, %v23, 0
    %v572 = vsel %vm561, %v24, 0
    %v575 = vsel %vm561, %v25, 0
    %v578 = vsel %vm561, %v26, 0
    %v581 = vsel %vm561, %v27, 0
    %v584 = vsel %vm561, %v28, 0
    %v587 = vsel %vm561, %v29, 0
    %v590 = vsel %vm561, %v30, 0
    %v593 = vsel %vm561, %v31, 0
    %v596 = vsel %vm561, %v32, 0
    %v599 = vsel %vm561, %v33, 0
    %v602 = vsel %vm561, %v34, 0
    %v605 = vsel %vm561, %v35, 0
    %v608 = vsel %vm561, %v36, 0
    %v611 = vsel %vm561, %v37, 0
    %v614 = vsel %vm561, %v38, 0
    %v617 = vsel %vm561, %v39, 0
    %v620 = vsel %vm561, %v40, 0
    %v623 = vsel %vm561, %v41, 0
    %v626 = vsel %vm561, %v42, 0
    %v629 = vsel %vm561, %v43, 0
    %v632 = vsel %vm561, %v44, 0
    %v635 = vsel %vm561, %v45, 0
    %v638 = vsel %vm561, %v46, 0
    %v641 = vsel %vm561, %v47, 0
    %v644 = vsel %vm561, %v48, 0
    %v647 = vsel %vm561, %v49, 0
    %v650 = vsel %vm561, %v50, 0
    %v653 = vsel %vm561, %v51, 0
    %v656 = vsel %vm561, %v52, 0
    %v659 = vsel %vm561, %v53, 0
    %v662 = vsel %vm561, %v54, 0
    %v665 = vsel %vm561, %v55, 0
    %v668 = vsel %vm561, %v56, 0
    %v671 = vsel %vm561, %v57, 0
    %v674 = vsel %vm561, %v58, 0
    %v677 = vsel %vm561, %v59, 0
    %v680 = vsel %vm561, %v60, 0
    %v683 = vsel %vm561, %v61, 0
    %v686 = vsel %vm561, %v62, 0
    %v689 = vsel %vm561, %v63, 0
    %v692 = vsel %vm561, %v64, 0
    %v695 = vsel %vm561, %v65, 0
    %v698 = vsel %vm561, %v66, 0
    %v701 = vsel %vm561, %v67, 0
    %v704 = vsel %vm561, %v68, 0
    %v707 = vsel %vm561, %v69, 0
    %v710 = vsel %vm561, %v70, 0
    %v713 = vsel %vm561, %v71, 0
    %v716 = vsel %vm561, %v72, 0
    %v719 = vsel %vm561, %v73, 0
    %v722 = vsel %vm561, %v74, 0
    %v725 = vsel %vm561, %v75, 0
    %v728 = vsel %vm561, %v76, 0
    %v731 = vsel %vm561, %v77, 0
    %v734 = vsel %vm561, %v78, 0
    %v737 = vsel %vm561, %v79, 0
    %v740 = vsel %vm561, %v80, 0
    %v743 = vsel %vm561, %v81, 0
    %v746 = vsel %vm561, %v82, 0
    %v749 = vsel %vm561, %v83, 0
    %v752 = vsel %vm561, %v84, 0
    %v755 = vsel %vm561, %v85, 0
    %v758 = vsel %vm561, %v86, 0
    %v761 = vsel %vm561, %v87, 0
    %v764 = vsel %vm561, %v88, 0
    %v767 = vsel %vm561, %v89, 0
    %v770 = vsel %vm561, %v90, 0
    %v773 = vsel %vm561, %v91, 0
    %v776 = vsel %vm561, %v92, 0
    %v779 = vsel %vm561, %v93, 0
    %v782 = vsel %vm561, %v94, 0
    %v785 = vsel %vm561, %v95, 0
    %v788 = vsel %vm561, %v96, 0
    %v791 = vsel %vm561, %v97, 0
    %v794 = vsel %vm561, %v98, 0
    %v797 = vsel %vm561, %v99, 0
    %v800 = vsel %vm561, %v100, 0
    %v803 = vsel %vm561, %v101, 0
    %v806 = vsel %vm561, %v102, 0
    %v809 = vsel %vm561, %v103, 0
    %v812 = vsel %vm561, %v104, 0
    %v815 = vsel %vm561, %v105, 0
    %v818 = vsel %vm561, %v106, 0
    %v821 = vsel %vm561, %v107, 0
    %v824 = vsel %vm561, %v108, 0
    %v827 = vsel %vm561, %v109, 0
    %v830 = vsel %vm561, %v110, 0
    %v833 = vsel %vm561, %v111, 0
    %v836 = vsel %vm561, %v112, 0
    %v839 = vsel %vm561, %v113, 0
    %v842 = vsel %vm561, %v114, 0
    %v845 = vsel %vm561, %v115, 0
    %v848 = vsel %vm561, %v116, 0
    %v851 = vsel %vm561, %v117, 0
    %v854 = vsel %vm561, %v118, 0
    %v857 = vsel %vm561, %v119, 0
    %v860 = vsel %vm561, %v120, 0
    %v863 = vsel %vm561, %v121, 0
    %v866 = vsel %vm561, %v122, 0
    %v869 = vsel %vm561, %v123, 0
    %v872 = vsel %vm561, %v124, 0
    %v875 = vsel %vm561, %v125, 0
    %v878 = vsel %vm561, %v126, 0
    %v881 = vsel %vm561, %v127, 0
    %v884 = vsel %vm561, %v128, 0
    %v887 = vsel %vm561, %v129, 0
    %v890 = vsel %vm561, %v130, 0
    %v893 = vsel %vm561, %v131, 0
    %v896 = vsel %vm561, %v132, 0
    %v899 = vsel %vm561, %v133, 0
    %v902 = vsel %vm561, %v134, 0
    %v905 = vsel %vm561, %v135, 0
    %v908 = vsel %vm561, %v136, 0
    %v911 = vsel %vm561, %v137, 0
    %v914 = vsel %vm561, %v138, 0
    %v917 = vsel %vm561, %v139, 0
    %v920 = vsel %vm561, %v140, 0
    %v923 = vsel %vm561, %v141, 0
    %v926 = vsel %vm561, %v142, 0
    %v929 = vsel %vm561, %v143, 0
    %v932 = vsel %vm561, %v144, 0
    %v935 = vsel %vm561, %v145, 0
    %v938 = vsel %vm561, %v146, 0
    %v941 = vsel %vm561, %v147, 0
    %v944 = vsel %vm561, %v148, 0
    %v947 = vsel %vm561, %v149, 0
    %v950 = vsel %vm561, %v150, 0
    %v953 = vsel %vm561, %v151, 0
    %v956 = vsel %vm561, %v152, 0
    %v959 = vsel %vm561, %v153, 0
    %v962 = vsel %vm561, %v154, 0
    %v965 = vsel %vm561, %v155, 0
    %v968 = vsel %vm561, %v156, 0
    %v971 = vsel %vm561, %v157, 0
    %v974 = vsel %vm561, %v158, 0
    %v977 = vsel %vm561, %v159, 0
    %v980 = vsel %vm561, %v160, 0
    %v983 = vsel %vm561, %v161, 0
    %v986 = vsel %vm561, %v162, 0
    %v989 = vsel %vm561, %v163, 0
    %v992 = vsel %vm561, %v164, 0
    %v995 = vsel %vm561, %v165, 0
    %v998 = vsel %vm561, %v166, 0
    %v1001 = vsel %vm561, %v167, 0
    %v1004 = vsel %vm561, %v168, 0
    %v1007 = vsel %vm561, %v169, 0
    %v1010 = vsel %vm561, %v170, 0
    %v1013 = vsel %vm561, %v171, 0
    %v1016 = vsel %vm561, %v172, 0
    %v1019 = vsel %vm561, %v173, 0
    %v1022 = vsel %vm561, %v174, 0
    %v1025 = vsel %vm561, %v175, 0
    %v1028 = vsel %vm561, %v176, 0
    %v1031 = vsel %vm561, %v177, 0
    %v1034 = vsel %vm561, %v178, 0
    %v1037 = vsel %vm561, %v179, 0
    %v1040 = vsel %vm561, %v180, 0
    %v1043 = vsel %vm561, %v181, 0
    %v1046 = vsel %vm561, %v182, 0
    %v1049 = vsel %vm561, %v183, 0
    %v1052 = vsel %vm561, %v184, 0
    %v1055 = vsel %vm561, %v185, 0
    %v1058 = vsel %vm561, %v186, 0
    %v1061 = vsel %vm561, %v187, 0
    %v1064 = vsel %vm561, %v188, 0
    %v1067 = vsel %vm561, %v189, 0
    %v1070 = vsel %vm561, %v190, 0
    %v1073 = vsel %vm561, %v191, 0
    %v1076 = vsel %vm561, %v192, 0
    %v1079 = vsel %vm561, %v193, 0
    %v1082 = vsel %vm561, %v194, 0
    %v1085 = vsel %vm561, %v195, 0
    %v1088 = vsel %vm561, %v196, 0
    %v1091 = vsel %vm561, %v197, 0
    %v1094 = vsel %vm561, %v198, 0
    %v1097 = vsel %vm561, %v199, 0
    %v1100 = vsel %vm561, %v200, 0
    %v1103 = vsel %vm561, %v201, 0
    %v1106 = vsel %vm561, %v202, 0
    %v1109 = vsel %vm561, %v203, 0
    %v1112 = vsel %vm561, %v204, 0
    %v1115 = vsel %vm561, %v205, 0
    %v1118 = vsel %vm561, %v206, 0
    %v1121 = vsel %vm561, %v207, 0
    %v1124 = vsel %vm561, %v208, 0
    %v1127 = vsel %vm561, %v209, 0
    %v1130 = vsel %vm561, %v210, 0
    %v1133 = vsel %vm561, %v211, 0
    %v1136 = vsel %vm561, %v212, 0
    %v1139 = vsel %vm561, %v213, 0
    %v1142 = vsel %vm561, %v214, 0
    %v1145 = vsel %vm561, %v215, 0
    %v1148 = vsel %vm561, %v216, 0
    %v1151 = vsel %vm561, %v217, 0
    %v1154 = vsel %vm561, %v218, 0
    %v1157 = vsel %vm561, %v219, 0
    %v1160 = vsel %vm561, %v220, 0
    %v1163 = vsel %vm561, %v221, 0
    %v1166 = vsel %vm561, %v222, 0
    %v1169 = vsel %vm561, %v223, 0
    %v1172 = vsel %vm561, %v224, 0
    %v1175 = vsel %vm561, %v225, 0
    %v1178 = vsel %vm561, %v226, 0
    %v1181 = vsel %vm561, %v227, 0
    %v1184 = vsel %vm561, %v228, 0
    %v1187 = vsel %vm561, %v229, 0
    %v1190 = vsel %vm561, %v230, 0
    %v1193 = vsel %vm561, %v231, 0
    %v1196 = vsel %vm561, %v232, 0
    %v1199 = vsel %vm561, %v233, 0
    %v1202 = vsel %vm561, %v234, 0
    %v1205 = vsel %vm561, %v235, 0
    %v1208 = vsel %vm561, %v236, 0
    %v1211 = vsel %vm561, %v237, 0
    %v1214 = vsel %vm561, %v238, 0
    %v1217 = vsel %vm561, %v239, 0
    %v1220 = vsel %vm561, %v240, 0
    %v1223 = vsel %vm561, %v241, 0
    %v1226 = vsel %vm561, %v242, 0
    %v1229 = vsel %vm561, %v243, 0
    %v1232 = vsel %vm561, %v244, 0
    %v1235 = vsel %vm561, %v245, 0
    %v1238 = vsel %vm561, %v246, 0
    %v1241 = vsel %vm561, %v247, 0
    %v1244 = vsel %vm561, %v248, 0
    %v1247 = vsel %vm561, %v249, 0
    %v1250 = vsel %vm561, %v250, 0
    %v1253 = vsel %vm561, %v251, 0
    %v1256 = vsel %vm561, %v252, 0
    %v1259 = vsel %vm561, %v253, 0
    %v1262 = vsel %vm561, %v254, 0
    %v1265 = vsel %vm561, %v255, 0
    %v1268 = vsel %vm561, %v256, 0
    %v1271 = vsel %vm561, %v257, 0
    %v1274 = vsel %vm561, %v258, 0
    %v1277 = vsel %vm561, %v259, 0
    %v1280 = vsel %vm561, %v260, 0
    %v1283 = vsel %vm561, %v261, 0
    %v1286 = vsel %vm561, %v262, 0
    %v1289 = vsel %vm561, %v263, 0
    %v1292 = vsel %vm561, %v264, 0
    %v1295 = vsel %vm561, %v265, 0
    %v1298 = vsel %vm561, %v266, 0
    %v1301 = vsel %vm561, %v267, 0
    %v1304 = vsel %vm561, %v268, 0
    %v1307 = vsel %vm561, %v269, 0
    %v1310 = vsel %vm561, %v270, 0
    %v1313 = vsel %vm561, %v271, 0
    %v1316 = vsel %vm561, %v272, 0
    %v1319 = vsel %vm561, %v273, 0
    %v1322 = vsel %vm561, %v274, 0
    %v1325 = vsel %vm561, %v275, 0
    %v1328 = vsel %vm561, %v276, 0
    %v1331 = vsel %vm561, %v277, 0
    %v1334 = vsel %vm561, %v278, 0
    %v1337 = vsel %vm561, %v279, 0
    %v1340 = vsel %vm561, %v280, 0
    %v1343 = vsel %vm561, %v281, 0
    %v1346 = vsel %vm561, %v282, 0
    %v1349 = vsel %vm561, %v283, 0
    %v1352 = vsel %vm561, %v284, 0
    %v1355 = vsel %vm561, %v285, 0
    %v1358 = vsel %vm561, %v286, 0
    %v1361 = vsel %vm561, %v287, 0
    %v1364 = vsel %vm561, %v288, 0
    %v1367 = vsel %vm561, %v289, 0
    %v1370 = vsel %vm561, %v290, 0
    %v1373 = vsel %vm561, %v291, 0
    %v1376 = vsel %vm561, %v292, 0
    %v1379 = vsel %vm561, %v293, 0
    %v1382 = vsel %vm561, %v294, 0
    %v1385 = vsel %vm561, %v295, 0
    %v1388 = vsel %vm561, %v296, 0
    %v1391 = vsel %vm561, %v297, 0
    %v1394 = vsel %vm561, %v298, 0
    %v1397 = vsel %vm561, %v299, 0
    %v1400 = vsel %vm561, %v300, 0
    %v1403 = vsel %vm561, %v301, 0
    %v1406 = vsel %vm561, %v302, 0
    %v1409 = vsel %vm561, %v303, 0
    %v1412 = vsel %vm561, %v304, 0
    %v1415 = vsel %vm561, %v305, 0
    %v1418 = vsel %vm561, %v306, 0
    %v1421 = vsel %vm561, %v307, 0
    %v1424 = vsel %vm561, %v308, 0
    %v1427 = vsel %vm561, %v309, 0
    %v1430 = vsel %vm561, %v310, 0
    %v1433 = vsel %vm561, %v311, 0
    %v1436 = vsel %vm561, %v312, 0
    %v1439 = vsel %vm561, %v313, 0
    %v1442 = vsel %vm561, %v314, 0
    %v1445 = vsel %vm561, %v315, 0
    %v1448 = vsel %vm561, %v316, 0
    %v1451 = vsel %vm561, %v317, 0
    %v1454 = vsel %vm561, %v318, 0
    %v1457 = vsel %vm561, %v319, 0
    %v1460 = vsel %vm561, %v320, 0
    %v1463 = vsel %vm561, %v321, 0
    %v1466 = vsel %vm561, %v322, 0
    %v1469 = vsel %vm561, %v323, 0
    %v1472 = vsel %vm561, %v324, 0
    %v1475 = vsel %vm561, %v325, 0
    %v1478 = vsel %vm561, %v326, 0
    %v1481 = vsel %vm561, %v327, 0
    %v1484 = vsel %vm561, %v328, 0
    %v1487 = vsel %vm561, %v329, 0
    %v1490 = vsel %vm561, %v330, 0
    %v1493 = vsel %vm561, %v331, 0
    %v1496 = vsel %vm561, %v332, 0
    %v1499 = vsel %vm561, %v333, 0
    %v1502 = vsel %vm561, %v334, 0
    %v1505 = vsel %vm561, %v335, 0
    %v1508 = vsel %vm561, %v336, 0
    %v1511 = vsel %vm561, %v337, 0
    %v1514 = vsel %vm561, %v338, 0
    %v1517 = vsel %vm561, %v339, 0
    %v1520 = vsel %vm561, %v340, 0
    %v1523 = vsel %vm561, %v341, 0
    %v1526 = vsel %vm561, %v342, 0
    %v1529 = vsel %vm561, %v343, 0
    %v1532 = vsel %vm561, %v344, 0
    %v1535 = vsel %vm561, %v345, 0
    %v1538 = vsel %vm561, %v346, 0
    %v1541 = vsel %vm561, %v347, 0
    %v1544 = vsel %vm561, %v348, 0
    %v1547 = vsel %vm561, %v349, 0
    %v1550 = vsel %vm561, %v350, 0
    %v1553 = vsel %vm561, %v351, 0
    %v1556 = vsel %vm561, %v352, 0
    %v1559 = vsel %vm561, %v353, 0
    %v1562 = vsel %vm561, %v354, 0
    %v1565 = vsel %vm561, %v355, 0
    %v1568 = vsel %vm561, %v356, 0
    %v1571 = vsel %vm561, %v357, 0
    %v1574 = vsel %vm561, %v358, 0
    %v1577 = vsel %vm561, %v359, 0
    %v1580 = vsel %vm561, %v360, 0
    %v1583 = vsel %vm561, %v361, 0
    %v1586 = vsel %vm561, %v362, 0
    %v1589 = vsel %vm561, %v363, 0
    %v1592 = vsel %vm561, %v364, 0
    %v1595 = vsel %vm561, %v365, 0
    %v1598 = vsel %vm561, %v366, 0
    %v1601 = vsel %vm561, %v367, 0
    %v1604 = vsel %vm561, %v368, 0
    %v1607 = vsel %vm561, %v369, 0
    %v1610 = vsel %vm561, %v370, 0
    %v1613 = vsel %vm561, %v371, 0
    %v1616 = vsel %vm561, %v372, 0
    %v1619 = vsel %vm561, %v373, 0
    %v1622 = vsel %vm561, %v374, 0
    %v1625 = vsel %vm561, %v375, 0
    %v1628 = vsel %vm561, %v376, 0
    %v1631 = vsel %vm561, %v377, 0
    %v1634 = vsel %vm561, %v378, 0
    %v1637 = vsel %vm561, %v379, 0
    %v1640 = vsel %vm561, %v380, 0
    %v1643 = vsel %vm561, %v381, 0
    %v1646 = vsel %vm561, %v382, 0
    %v1649 = vsel %vm561, %v383, 0
    %v1652 = vsel %vm561, %v384, 0
    %v1655 = vsel %vm561, %v385, 0
    %v1658 = vsel %vm561, %v386, 0
    %v1661 = vsel %vm561, %v387, 0
    %v1664 = vsel %vm561, %v388, 0
    %v1667 = vsel %vm561, %v389, 0
    %v1670 = vsel %vm561, %v390, 0
    %v1673 = vsel %vm561, %v391, 0
    %v1676 = vsel %vm561, %v392, 0
    %v1679 = vsel %vm561, %v393, 0
    %v1682 = vsel %vm561, %v394, 0
    %v1685 = vsel %vm561, %v395, 0
    %v1688 = vsel %vm561, %v396, 0
    %v1691 = vsel %vm561, %v397, 0
    %v1694 = vsel %vm561, %v398, 0
    %v1697 = vsel %vm561, %v399, 0
    %v1700 = vsel %vm561, %v400, 0
    %v1703 = vsel %vm561, %v401, 0
    %v1706 = vsel %vm561, %v402, 0
    %v1709 = vsel %vm561, %v403, 0
    %v1712 = vsel %vm561, %v404, 0
    %v1715 = vsel %vm561, %v405, 0
    %v1718 = vsel %vm561, %v406, 0
    %v1721 = vsel %vm561, %v407, 0
    %v1724 = vsel %vm561, %v408, 0
    %v1727 = vsel %vm561, %v409, 0
    %v1730 = vsel %vm561, %v410, 0
    %v1733 = vsel %vm561, %v411, 0
    %v1736 = vsel %vm561, %v412, 0
    %v1739 = vsel %vm561, %v413, 0
    %v1742 = vsel %vm561, %v414, 0
    %v1745 = vsel %vm561, %v415, 0
    %v1748 = vsel %vm561, %v416, 0
    %v1751 = vsel %vm561, %v417, 0
    %v1754 = vsel %vm561, %v418, 0
    %v1757 = vsel %vm561, %v419, 0
    %v1760 = vsel %vm561, %v420, 0
    %v1763 = vsel %vm561, %v421, 0
    %v1766 = vsel %vm561, %v422, 0
    %v1769 = vsel %vm561, %v423, 0
    %v1772 = vsel %vm561, %v424, 0
    %v1775 = vsel %vm561, %v425, 0
    %v1778 = vsel %vm561, %v426, 0
    %v1781 = vsel %vm561, %v427, 0
    %v1784 = vsel %vm561, %v428, 0
    %v1787 = vsel %vm561, %v429, 0
    %v1790 = vsel %vm561, %v430, 0
    %v1793 = vsel %vm561, %v431, 0
    %v1796 = vsel %vm561, %v432, 0
    %v1799 = vsel %vm561, %v433, 0
    %v1802 = vsel %vm561, %v434, 0
    %v1805 = vsel %vm561, %v435, 0
    %v1808 = vsel %vm561, %v436, 0
    %v1811 = vsel %vm561, %v437, 0
    %v1814 = vsel %vm561, %v438, 0
    %v1817 = vsel %vm561, %v439, 0
    %v1820 = vsel %vm561, %v440, 0
    %v1823 = vsel %vm561, %v441, 0
    %v1826 = vsel %vm561, %v442, 0
    %v1829 = vsel %vm561, %v443, 0
    %v1832 = vsel %vm561, %v444, 0
    %v1835 = vsel %vm561, %v445, 0
    %v1838 = vsel %vm561, %v446, 0
    %v1841 = vsel %vm561, %v447, 0
    %v1844 = vsel %vm561, %v448, 0
    %v1847 = vsel %vm561, %v449, 0
    %v1850 = vsel %vm561, %v450, 0
    %v1853 = vsel %vm561, %v451, 0
    %v1856 = vsel %vm561, %v452, 0
    %v1859 = vsel %vm561, %v453, 0
    %v1862 = vsel %vm561, %v454, 0
    %v1865 = vsel %vm561, %v455, 0
    %v1868 = vsel %vm561, %v456, 0
    %v1871 = vsel %vm561, %v457, 0
    %v1874 = vsel %vm561, %v458, 0
    %v1877 = vsel %vm561, %v459, 0
    %v1880 = vsel %vm561, %v460, 0
    %v1883 = vsel %vm561, %v461, 0
    %v1886 = vsel %vm561, %v462, 0
    %v1889 = vsel %vm561, %v463, 0
    %v1892 = vsel %vm561, %v464, 0
    %v1895 = vsel %vm561, %v465, 0
    %v1898 = vsel %vm561, %v466, 0
    %v1901 = vsel %vm561, %v467, 0
    %v1904 = vsel %vm561, %v468, 0
    %v1907 = vsel %vm561, %v469, 0
    %v1910 = vsel %vm561, %v470, 0
    %v1913 = vsel %vm561, %v471, 0
    %v1916 = vsel %vm561, %v472, 0
    %v1919 = vsel %vm561, %v473, 0
    %v1922 = vsel %vm561, %v474, 0
    %v1925 = vsel %vm561, %v475, 0
    %v1928 = vsel %vm561, %v476, 0
    %v1931 = vsel %vm561, %v477, 0
    %v1934 = vsel %vm561, %v478, 0
    %v1937 = vsel %vm561, %v479, 0
    %v1940 = vsel %vm561, %v480, 0
    %v1943 = vsel %vm561, %v481, 0
    %v1946 = vsel %vm561, %v482, 0
    %v1949 = vsel %vm561, %v483, 0
    %v1952 = vsel %vm561, %v484, 0
    %v1955 = vsel %vm561, %v485, 0
    %v1958 = vsel %vm561, %v486, 0
    %v1961 = vsel %vm561, %v487, 0
    %v1964 = vsel %vm561, %v488, 0
    %v1967 = vsel %vm561, %v489, 0
    %v1970 = vsel %vm561, %v490, 0
    %v1973 = vsel %vm561, %v491, 0
    %v1976 = vsel %vm561, %v492, 0
    %v1979 = vsel %vm561, %v493, 0
    %v1982 = vsel %vm561, %v494, 0
    %v1985 = vsel %vm561, %v495, 0
    %v1988 = vsel %vm561, %v496, 0
    %v1991 = vsel %vm561, %v497, 0
    %v1994 = vsel %vm561, %v498, 0
    %v1997 = vsel %vm561, %v499, 0
    %v2000 = vsel %vm561, %v500, 0
    %v2003 = vsel %vm561, %v501, 0
    %v2006 = vsel %vm561, %v502, 0
    %v2009 = vsel %vm561, %v503, 0
    %v2012 = vsel %vm561, %v504, 0
    %v2015 = vsel %vm561, %v505, 0
    %v2018 = vsel %vm561, %v506, 0
    %v2021 = vsel %vm561, %v507, 0
    %v2024 = vsel %vm561, %v508, 0
    %v2027 = vsel %vm561, %v509, 0
    %v2030 = vsel %vm561, %v510, 0
    %v2033 = vsel %vm561, %v511, 0
    %v2036 = vsel %vm561, %v512, 0
    %v2039 = vsel %vm561, %v513, 0
    %v2042 = vsel %vm561, %v514, 0
    %v2045 = vsel %vm561, %v515, 0
    %v2048 = vsel %vm561, %v516, 0
    %v2051 = vsel %vm561, %v517, 0
    %v2054 = vsel %vm561, %v518, 0
    %v2057 = vsel %vm561, %v519, 0
    %v2060 = vsel %vm561, %v520, 0
    %v2063 = vsel %vm561, %v521, 0
    %v2066 = vsel %vm561, %v522, 0
    %v2069 = vsel %vm561, %v523, 0
    %v2072 = vsel %vm561, %v524, 0
    %v2075 = vsel %vm561, %v525, 0
    %v2078 = vsel %vm561, %v526, 0
    %v2081 = vsel %vm561, %v527, 0
    %v2084 = vsel %vm561, %v528, 0
    %v2087 = vsel %vm561, %v529, 0
    %v2090 = vsel %vm561, %v530, 0
    %v2093 = vsel %vm561, %v531, 0
    %v2096 = vsel %vm561, %v532, 0
    %v2099 = vsel %vm561, %v533, 0
    %v2102 = vsel %vm561, %v534, 0
    %v2105 = vsel %vm561, %v535, 0
    %v2108 = vsel %vm561, %v536, 0
    %2110 = vmatprep.subr.mxu0 0.0
    %2111 = vmatpush1.xpose.msra.mxu0 %v575
    %2112 = vmatprep.subr.mxu0 0.0
    %2113 = vmatpush1.xpose.msra.mxu0 %v578
    %2114 = vmatprep.subr.mxu0 0.0
    %2115 = vmatpush1.xpose.msra.mxu0 %v581
    %2116 = vmatprep.subr.mxu0 0.0
    %2117 = vmatpush1.xpose.msra.mxu0 %v584
    %2118 = vmatprep.subr.mxu0 0.0
    %2119 = vmatpush1.xpose.msra.mxu0 %v587
    %2120 = vmatprep.subr.mxu0 0.0
    %2121 = vmatpush1.xpose.msra.mxu0 %v590
    %2122 = vmatprep.subr.mxu0 0.0
    %2123 = vmatpush1.xpose.msra.mxu0 %v593
    %2124 = vmatprep.subr.mxu0 0.0
    %2125 = vmatpush1.xpose.msra.mxu0 %v596
    %2126 = vmatprep.subr.mxu0 0.0
    %2127 = vmatpush1.xpose.msra.mxu0 %v599
    %2128 = vmatprep.subr.mxu0 0.0
    %2129 = vmatpush1.xpose.msra.mxu0 %v602
    %2130 = vmatprep.subr.mxu0 0.0
    %2131 = vmatpush1.xpose.msra.mxu0 %v605
    %2132 = vmatprep.subr.mxu0 0.0
    %2133 = vmatpush1.xpose.msra.mxu0 %v608
    %2134 = vmatprep.subr.mxu0 0.0
    %2135 = vmatpush1.xpose.msra.mxu0 %v611
    %2136 = vmatprep.subr.mxu0 0.0
    %2137 = vmatpush1.xpose.msra.mxu0 %v614
    %2138 = vmatprep.subr.mxu0 0.0
    %2139 = vmatpush1.xpose.msra.mxu0 %v617
    %2140 = vmatprep.subr.mxu0 0.0
    %2141 = vmatpush1.xpose.msra.mxu0 %v620
    %2142 = vmatprep.subr.mxu0 0.0
    %2143 = vmatpush1.xpose.msra.mxu0 %v623
    %2144 = vmatprep.subr.mxu0 0.0
    %2145 = vmatpush1.xpose.msra.mxu0 %v626
    %2146 = vmatprep.subr.mxu0 0.0
    %2147 = vmatpush1.xpose.msra.mxu0 %v629
    %2148 = vmatprep.subr.mxu0 0.0
    %2149 = vmatpush1.xpose.msra.mxu0 %v632
    %2150 = vmatprep.subr.mxu0 0.0
    %2151 = vmatpush1.xpose.msra.mxu0 %v635
    %2152 = vmatprep.subr.mxu0 0.0
    %2153 = vmatpush1.xpose.msra.mxu0 %v638
    %2154 = vmatprep.subr.mxu0 0.0
    %2155 = vmatpush1.xpose.msra.mxu0 %v641
    %2156 = vmatprep.subr.mxu0 0.0
    %2157 = vmatpush1.xpose.msra.mxu0 %v644
    %2158 = vmatprep.subr.mxu0 0.0
    %2159 = vmatpush1.xpose.msra.mxu0 %v647
    %2160 = vmatprep.subr.mxu0 0.0
    %2161 = vmatpush1.xpose.msra.mxu0 %v650
    %2162 = vmatprep.subr.mxu0 0.0
    %2163 = vmatpush1.xpose.msra.mxu0 %v653
    %2164 = vmatprep.subr.mxu0 0.0
    %2165 = vmatpush1.xpose.msra.mxu0 %v656
    %2166 = vmatprep.subr.mxu0 0.0
    %2167 = vmatpush1.xpose.msra.mxu0 %v659
    %2168 = vmatprep.subr.mxu0 0.0
    %2169 = vmatpush1.xpose.msra.mxu0 %v662
    %2170 = vmatprep.subr.mxu0 0.0
    %2171 = vmatpush1.xpose.msra.mxu0 %v665
    %2172 = vmatprep.subr.mxu0 0.0
    %2173 = vmatpush1.xpose.msra.mxu0 %v668
    %2174 = vmatprep.mubr.f32.mxu0 0.0
    %2175 = vmatmul.mubr.f32.gmra.mrb[0].mxu0 %v563
    %v2176 = vpop.f32.mrb[0].mxu0
    %v2177 = vadd.f32 %v544, %v2176
    %v2178 = vpop.f32.mrb[0].mxu0
    %v2179 = vadd.f32 %v544, %v2178
    %2180 = vmatprep.mubr.f32.mxu0 0.0
    %2181 = vmatmul.mubr.f32.gmra.mrb[0].mxu0 %v566
    %v2182 = vpop.f32.mrb[0].mxu0
    %v2183 = vadd.f32 %v549, %v2182
    %v2184 = vpop.f32.mrb[0].mxu0
    %v2185 = vadd.f32 %v549, %v2184
    %2186 = vmatprep.mubr.f32.mxu0 0.0
    %2187 = vmatmul.mubr.f32.gmra.mrb[0].mxu0 %v569
    %v2188 = vpop.f32.mrb[0].mxu0
    %v2189 = vadd.f32 %v554, %v2188
    %v2190 = vpop.f32.mrb[0].mxu0
    %v2191 = vadd.f32 %v554, %v2190
    %2192 = vmatprep.mubr.f32.mxu0 0.0
    %2193 = vmatmul.mubr.f32.gmra.mrb[0].mxu0 %v572
    %v2194 = vpop.f32.mrb[0].mxu0
    %v2195 = vadd.f32 %v559, %v2194
    %v2196 = vpop.f32.mrb[0].mxu0
    %v2197 = vadd.f32 %v559, %v2196
    %2198 = vdwg.mxu0
    %2199 = vmatprep.subr.mxu0 0.0
    %2200 = vmatpush1.xpose.msra.mxu0 %v671
    %2201 = vmatprep.subr.mxu0 0.0
    %2202 = vmatpush1.xpose.msra.mxu0 %v674
    %2203 = vmatprep.subr.mxu0 0.0
    %2204 = vmatpush1.xpose.msra.mxu0 %v677
    %2205 = vmatprep.subr.mxu0 0.0
    %2206 = vmatpush1.xpose.msra.mxu0 %v680
    %2207 = vmatprep.subr.mxu0 0.0
    %2208 = vmatpush1.xpose.msra.mxu0 %v683
    %2209 = vmatprep.subr.mxu0 0.0
    %2210 = vmatpush1.xpose.msra.mxu0 %v686
    %2211 = vmatprep.subr.mxu0 0.0
    %2212 = vmatpush1.xpose.msra.mxu0 %v689
    %2213 = vmatprep.subr.mxu0 0.0
    %2214 = vmatpush1.xpose.msra.mxu0 %v692
    %2215 = vmatprep.subr.mxu0 0.0
    %2216 = vmatpush1.xpose.msra.mxu0 %v695
    %2217 = vmatprep.subr.mxu0 0.0
    %2218 = vmatpush1.xpose.msra.mxu0 %v698
    %2219 = vmatprep.subr.mxu0 0.0
    %2220 = vmatpush1.xpose.msra.mxu0 %v701
    %2221 = vmatprep.subr.mxu0 0.0
    %2222 = vmatpush1.xpose.msra.mxu0 %v704
    %2223 = vmatprep.subr.mxu0 0.0
    %2224 = vmatpush1.xpose.msra.mxu0 %v707
    %2225 = vmatprep.subr.mxu0 0.0
    %2226 = vmatpush1.xpose.msra.mxu0 %v710
    %2227 = vmatprep.subr.mxu0 0.0
    %2228 = vmatpush1.xpose.msra.mxu0 %v713
    %2229 = vmatprep.subr.mxu0 0.0
    %2230 = vmatpush1.xpose.msra.mxu0 %v716
    %2231 = vmatprep.subr.mxu0 0.0
    %2232 = vmatpush1.xpose.msra.mxu0 %v719
    %2233 = vmatprep.subr.mxu0 0.0
    %2234 = vmatpush1.xpose.msra.mxu0 %v722
    %2235 = vmatprep.subr.mxu0 0.0
    %2236 = vmatpush1.xpose.msra.mxu0 %v725
    %2237 = vmatprep.subr.mxu0 0.0
    %2238 = vmatpush1.xpose.msra.mxu0 %v728
    %2239 = vmatprep.subr.mxu0 0.0
    %2240 = vmatpush1.xpose.msra.mxu0 %v731
    %2241 = vmatprep.subr.mxu0 0.0
    %2242 = vmatpush1.xpose.msra.mxu0 %v734
    %2243 = vmatprep.subr.mxu0 0.0
    %2244 = vmatpush1.xpose.msra.mxu0 %v737
    %2245 = vmatprep.subr.mxu0 0.0
    %2246 = vmatpush1.xpose.msra.mxu0 %v740
    %2247 = vmatprep.subr.mxu0 0.0
    %2248 = vmatpush1.xpose.msra.mxu0 %v743
    %2249 = vmatprep.subr.mxu0 0.0
    %2250 = vmatpush1.xpose.msra.mxu0 %v746
    %2251 = vmatprep.subr.mxu0 0.0
    %2252 = vmatpush1.xpose.msra.mxu0 %v749
    %2253 = vmatprep.subr.mxu0 0.0
    %2254 = vmatpush1.xpose.msra.mxu0 %v752
    %2255 = vmatprep.subr.mxu0 0.0
    %2256 = vmatpush1.xpose.msra.mxu0 %v755
    %2257 = vmatprep.subr.mxu0 0.0
    %2258 = vmatpush1.xpose.msra.mxu0 %v758
    %2259 = vmatprep.subr.mxu0 0.0
    %2260 = vmatpush1.xpose.msra.mxu0 %v761
    %2261 = vmatprep.subr.mxu0 0.0
    %2262 = vmatpush1.xpose.msra.mxu0 %v764
    %2263 = vmatprep.mubr.f32.mxu0 0.0
    %2264 = vmatmul.mubr.f32.gmra.mrb[0].mxu0 %v563
    %v2265 = vpop.f32.mrb[0].mxu0
    %v2266 = vadd.f32 %v544, %v2265
    %v2267 = vpop.f32.mrb[0].mxu0
    %v2268 = vadd.f32 %v544, %v2267
    %2269 = vmatprep.mubr.f32.mxu0 0.0
    %2270 = vmatmul.mubr.f32.gmra.mrb[0].mxu0 %v566
    %v2271 = vpop.f32.mrb[0].mxu0
    %v2272 = vadd.f32 %v549, %v2271
    %v2273 = vpop.f32.mrb[0].mxu0
    %v2274 = vadd.f32 %v549, %v2273
    %2275 = vmatprep.mubr.f32.mxu0 0.0
    %2276 = vmatmul.mubr.f32.gmra.mrb[0].mxu0 %v569
    %v2277 = vpop.f32.mrb[0].mxu0
    %v2278 = vadd.f32 %v554, %v2277
    %v2279 = vpop.f32.mrb[0].mxu0
    %v2280 = vadd.f32 %v554, %v2279
    %2281 = vmatprep.mubr.f32.mxu0 0.0
    %2282 = vmatmul.mubr.f32.gmra.mrb[0].mxu0 %v572
    %v2283 = vpop.f32.mrb[0].mxu0
    %v2284 = vadd.f32 %v559, %v2283
    %v2285 = vpop.f32.mrb[0].mxu0
    %v2286 = vadd.f32 %v559, %v2285
    %2287 = vdwg.mxu0
    %2288 = vmatprep.subr.mxu0 0.0
    %2289 = vmatpush1.xpose.msra.mxu0 %v767
    %2290 = vmatprep.subr.mxu0 0.0
    %2291 = vmatpush1.xpose.msra.mxu0 %v770
    %2292 = vmatprep.subr.mxu0 0.0
    %2293 = vmatpush1.xpose.msra.mxu0 %v773
    %2294 = vmatprep.subr.mxu0 0.0
    %2295 = vmatpush1.xpose.msra.mxu0 %v776
    %2296 = vmatprep.subr.mxu0 0.0
    %2297 = vmatpush1.xpose.msra.mxu0 %v779
    %2298 = vmatprep.subr.mxu0 0.0
    %2299 = vmatpush1.xpose.msra.mxu0 %v782
    %2300 = vmatprep.subr.mxu0 0.0
    %2301 = vmatpush1.xpose.msra.mxu0 %v785
    %2302 = vmatprep.subr.mxu0 0.0
    %2303 = vmatpush1.xpose.msra.mxu0 %v788
    %2304 = vmatprep.subr.mxu0 0.0
    %2305 = vmatpush1.xpose.msra.mxu0 %v791
    %2306 = vmatprep.subr.mxu0 0.0
    %2307 = vmatpush1.xpose.msra.mxu0 %v794
    %2308 = vmatprep.subr.mxu0 0.0
    %2309 = vmatpush1.xpose.msra.mxu0 %v797
    %2310 = vmatprep.subr.mxu0 0.0
    %2311 = vmatpush1.xpose.msra.mxu0 %v800
    %2312 = vmatprep.subr.mxu0 0.0
    %2313 = vmatpush1.xpose.msra.mxu0 %v803
    %2314 = vmatprep.subr.mxu0 0.0
    %2315 = vmatpush1.xpose.msra.mxu0 %v806
    %2316 = vmatprep.subr.mxu0 0.0
    %2317 = vmatpush1.xpose.msra.mxu0 %v809
    %2318 = vmatprep.subr.mxu0 0.0
    %2319 = vmatpush1.xpose.msra.mxu0 %v812
    %2320 = vmatprep.subr.mxu0 0.0
    %2321 = vmatpush1.xpose.msra.mxu0 %v815
    %2322 = vmatprep.subr.mxu0 0.0
    %2323 = vmatpush1.xpose.msra.mxu0 %v818
    %2324 = vmatprep.subr.mxu0 0.0
    %2325 = vmatpush1.xpose.msra.mxu0 %v821
    %2326 = vmatprep.subr.mxu0 0.0
    %2327 = vmatpush1.xpose.msra.mxu0 %v824
    %2328 = vmatprep.subr.mxu0 0.0
    %2329 = vmatpush1.xpose.msra.mxu0 %v827
    %2330 = vmatprep.subr.mxu0 0.0
    %2331 = vmatpush1.xpose.msra.mxu0 %v830
    %2332 = vmatprep.subr.mxu0 0.0
    %2333 = vmatpush1.xpose.msra.mxu0 %v833
    %2334 = vmatprep.subr.mxu0 0.0
    %2335 = vmatpush1.xpose.msra.mxu0 %v836
    %2336 = vmatprep.subr.mxu0 0.0
    %2337 = vmatpush1.xpose.msra.mxu0 %v839
    %2338 = vmatprep.subr.mxu0 0.0
    %2339 = vmatpush1.xpose.msra.mxu0 %v842
    %2340 = vmatprep.subr.mxu0 0.0
    %2341 = vmatpush1.xpose.msra.mxu0 %v845
    %2342 = vmatprep.subr.mxu0 0.0
    %2343 = vmatpush1.xpose.msra.mxu0 %v848
    %2344 = vmatprep.subr.mxu0 0.0
    %2345 = vmatpush1.xpose.msra.mxu0 %v851
    %2346 = vmatprep.subr.mxu0 0.0
    %2347 = vmatpush1.xpose.msra.mxu0 %v854
    %2348 = vmatprep.subr.mxu0 0.0
    %2349 = vmatpush1.xpose.msra.mxu0 %v857
    %2350 = vmatprep.subr.mxu0 0.0
    %2351 = vmatpush1.xpose.msra.mxu0 %v860
    %2352 = vmatprep.mubr.f32.mxu0 0.0
    %2353 = vmatmul.mubr.f32.gmra.mrb[0].mxu0 %v563
    %v2354 = vpop.f32.mrb[0].mxu0
    %v2355 = vadd.f32 %v544, %v2354
    %v2356 = vpop.f32.mrb[0].mxu0
    %v2357 = vadd.f32 %v544, %v2356
    %2358 = vmatprep.mubr.f32.mxu0 0.0
    %2359 = vmatmul.mubr.f32.gmra.mrb[0].mxu0 %v566
    %v2360 = vpop.f32.mrb[0].mxu0
    %v2361 = vadd.f32 %v549, %v2360
    %v2362 = vpop.f32.mrb[0].mxu0
    %v2363 = vadd.f32 %v549, %v2362
    %2364 = vmatprep.mubr.f32.mxu0 0.0
    %2365 = vmatmul.mubr.f32.gmra.mrb[0].mxu0 %v569
    %v2366 = vpop.f32.mrb[0].mxu0
    %v2367 = vadd.f32 %v554, %v2366
    %v2368 = vpop.f32.mrb[0].mxu0
    %v2369 = vadd.f32 %v554, %v2368
    %2370 = vmatprep.mubr.f32.mxu0 0.0
    %2371 = vmatmul.mubr.f32.gmra.mrb[0].mxu0 %v572
    %v2372 = vpop.f32.mrb[0].mxu0
    %v2373 = vadd.f32 %v559, %v2372
    %v2374 = vpop.f32.mrb[0].mxu0
    %v2375 = vadd.f32 %v559, %v2374
    %2376 = vdwg.mxu0
    %2377 = vmatprep.subr.mxu0 0.0
    %2378 = vmatpush1.xpose.msra.mxu0 %v863
    %2379 = vmatprep.subr.mxu0 0.0
    %2380 = vmatpush1.xpose.msra.mxu0 %v866
    %2381 = vmatprep.subr.mxu0 0.0
    %2382 = vmatpush1.xpose.msra.mxu0 %v869
    %2383 = vmatprep.subr.mxu0 0.0
    %2384 = vmatpush1.xpose.msra.mxu0 %v872
    %2385 = vmatprep.subr.mxu0 0.0
    %2386 = vmatpush1.xpose.msra.mxu0 %v875
    %2387 = vmatprep.subr.mxu0 0.0
    %2388 = vmatpush1.xpose.msra.mxu0 %v878
    %2389 = vmatprep.subr.mxu0 0.0
    %2390 = vmatpush1.xpose.msra.mxu0 %v881
    %2391 = vmatprep.subr.mxu0 0.0
    %2392 = vmatpush1.xpose.msra.mxu0 %v884
    %2393 = vmatprep.subr.mxu0 0.0
    %2394 = vmatpush1.xpose.msra.mxu0 %v887
    %2395 = vmatprep.subr.mxu0 0.0
    %2396 = vmatpush1.xpose.msra.mxu0 %v890
    %2397 = vmatprep.subr.mxu0 0.0
    %2398 = vmatpush1.xpose.msra.mxu0 %v893
    %2399 = vmatprep.subr.mxu0 0.0
    %2400 = vmatpush1.xpose.msra.mxu0 %v896
    %2401 = vmatprep.subr.mxu0 0.0
    %2402 = vmatpush1.xpose.msra.mxu0 %v899
    %2403 = vmatprep.subr.mxu0 0.0
    %2404 = vmatpush1.xpose.msra.mxu0 %v902
    %2405 = vmatprep.subr.mxu0 0.0
    %2406 = vmatpush1.xpose.msra.mxu0 %v905
    %2407 = vmatprep.subr.mxu0 0.0
    %2408 = vmatpush1.xpose.msra.mxu0 %v908
    %2409 = vmatprep.subr.mxu0 0.0
    %2410 = vmatpush1.xpose.msra.mxu0 %v911
    %2411 = vmatprep.subr.mxu0 0.0
    %2412 = vmatpush1.xpose.msra.mxu0 %v914
    %2413 = vmatprep.subr.mxu0 0.0
    %2414 = vmatpush1.xpose.msra.mxu0 %v917
    %2415 = vmatprep.subr.mxu0 0.0
    %2416 = vmatpush1.xpose.msra.mxu0 %v920
    %2417 = vmatprep.subr.mxu0 0.0
    %2418 = vmatpush1.xpose.msra.mxu0 %v923
    %2419 = vmatprep.subr.mxu0 0.0
    %2420 = vmatpush1.xpose.msra.mxu0 %v926
    %2421 = vmatprep.subr.mxu0 0.0
    %2422 = vmatpush1.xpose.msra.mxu0 %v929
    %2423 = vmatprep.subr.mxu0 0.0
    %2424 = vmatpush1.xpose.msra.mxu0 %v932
    %2425 = vmatprep.subr.mxu0 0.0
    %2426 = vmatpush1.xpose.msra.mxu0 %v935
    %2427 = vmatprep.subr.mxu0 0.0
    %2428 = vmatpush1.xpose.msra.mxu0 %v938
    %2429 = vmatprep.subr.mxu0 0.0
    %2430 = vmatpush1.xpose.msra.mxu0 %v941
    %2431 = vmatprep.subr.mxu0 0.0
    %2432 = vmatpush1.xpose.msra.mxu0 %v944
    %2433 = vmatprep.subr.mxu0 0.0
    %2434 = vmatpush1.xpose.msra.mxu0 %v947
    %2435 = vmatprep.subr.mxu0 0.0
    %2436 = vmatpush1.xpose.msra.mxu0 %v950
    %2437 = vmatprep.subr.mxu0 0.0
    %2438 = vmatpush1.xpose.msra.mxu0 %v953
    %2439 = vmatprep.subr.mxu0 0.0
    %2440 = vmatpush1.xpose.msra.mxu0 %v956
    %2441 = vmatprep.mubr.f32.mxu0 0.0
    %2442 = vmatmul.mubr.f32.gmra.mrb[0].mxu0 %v563
    %v2443 = vpop.f32.mrb[0].mxu0
    %v2444 = vadd.f32 %v544, %v2443
    %v2445 = vpop.f32.mrb[0].mxu0
    %v2446 = vadd.f32 %v544, %v2445
    %2447 = vmatprep.mubr.f32.mxu0 0.0
    %2448 = vmatmul.mubr.f32.gmra.mrb[0].mxu0 %v566
    %v2449 = vpop.f32.mrb[0].mxu0
    %v2450 = vadd.f32 %v549, %v2449
    %v2451 = vpop.f32.mrb[0].mxu0
    %v2452 = vadd.f32 %v549, %v2451
    %2453 = vmatprep.mubr.f32.mxu0 0.0
    %2454 = vmatmul.mubr.f32.gmra.mrb[0].mxu0 %v569
    %v2455 = vpop.f32.mrb[0].mxu0
    %v2456 = vadd.f32 %v554, %v2455
    %v2457 = vpop.f32.mrb[0].mxu0
    %v2458 = vadd.f32 %v554, %v2457
    %2459 = vmatprep.mubr.f32.mxu0 0.0
    %2460 = vmatmul.mubr.f32.gmra.mrb[0].mxu0 %v572
    %v2461 = vpop.f32.mrb[0].mxu0
    %v2462 = vadd.f32 %v559, %v2461
    %v2463 = vpop.f32.mrb[0].mxu0
    %v2464 = vadd.f32 %v559, %v2463
    %2465 = vdwg.mxu0
    %2466 = vmatprep.subr.mxu0 0.0
    %2467 = vmatpush1.xpose.msra.mxu0 %v959
    %2468 = vmatprep.subr.mxu0 0.0
    %2469 = vmatpush1.xpose.msra.mxu0 %v962
    %2470 = vmatprep.subr.mxu0 0.0
    %2471 = vmatpush1.xpose.msra.mxu0 %v965
    %2472 = vmatprep.subr.mxu0 0.0
    %2473 = vmatpush1.xpose.msra.mxu0 %v968
    %2474 = vmatprep.subr.mxu0 0.0
    %2475 = vmatpush1.xpose.msra.mxu0 %v971
    %2476 = vmatprep.subr.mxu0 0.0
    %2477 = vmatpush1.xpose.msra.mxu0 %v974
    %2478 = vmatprep.subr.mxu0 0.0
    %2479 = vmatpush1.xpose.msra.mxu0 %v977
    %2480 = vmatprep.subr.mxu0 0.0
    %2481 = vmatpush1.xpose.msra.mxu0 %v980
    %2482 = vmatprep.subr.mxu0 0.0
    %2483 = vmatpush1.xpose.msra.mxu0 %v983
    %2484 = vmatprep.subr.mxu0 0.0
    %2485 = vmatpush1.xpose.msra.mxu0 %v986
    %2486 = vmatprep.subr.mxu0 0.0
    %2487 = vmatpush1.xpose.msra.mxu0 %v989
    %2488 = vmatprep.subr.mxu0 0.0
    %2489 = vmatpush1.xpose.msra.mxu0 %v992
    %2490 = vmatprep.subr.mxu0 0.0
    %2491 = vmatpush1.xpose.msra.mxu0 %v995
    %2492 = vmatprep.subr.mxu0 0.0
    %2493 = vmatpush1.xpose.msra.mxu0 %v998
    %2494 = vmatprep.subr.mxu0 0.0
    %2495 = vmatpush1.xpose.msra.mxu0 %v1001
    %2496 = vmatprep.subr.mxu0 0.0
    %2497 = vmatpush1.xpose.msra.mxu0 %v1004
    %2498 = vmatprep.subr.mxu0 0.0
    %2499 = vmatpush1.xpose.msra.mxu0 %v1007
    %2500 = vmatprep.subr.mxu0 0.0
    %2501 = vmatpush1.xpose.msra.mxu0 %v1010
    %2502 = vmatprep.subr.mxu0 0.0
    %2503 = vmatpush1.xpose.msra.mxu0 %v1013
    %2504 = vmatprep.subr.mxu0 0.0
    %2505 = vmatpush1.xpose.msra.mxu0 %v1016
    %2506 = vmatprep.subr.mxu0 0.0
    %2507 = vmatpush1.xpose.msra.mxu0 %v1019
    %2508 = vmatprep.subr.mxu0 0.0
    %2509 = vmatpush1.xpose.msra.mxu0 %v1022
    %2510 = vmatprep.subr.mxu0 0.0
    %2511 = vmatpush1.xpose.msra.mxu0 %v1025
    %2512 = vmatprep.subr.mxu0 0.0
    %2513 = vmatpush1.xpose.msra.mxu0 %v1028
    %2514 = vmatprep.subr.mxu0 0.0
    %2515 = vmatpush1.xpose.msra.mxu0 %v1031
    %2516 = vmatprep.subr.mxu0 0.0
    %2517 = vmatpush1.xpose.msra.mxu0 %v1034
    %2518 = vmatprep.subr.mxu0 0.0
    %2519 = vmatpush1.xpose.msra.mxu0 %v1037
    %2520 = vmatprep.subr.mxu0 0.0
    %2521 = vmatpush1.xpose.msra.mxu0 %v1040
    %2522 = vmatprep.subr.mxu0 0.0
    %2523 = vmatpush1.xpose.msra.mxu0 %v1043
    %2524 = vmatprep.subr.mxu0 0.0
    %2525 = vmatpush1.xpose.msra.mxu0 %v1046
    %2526 = vmatprep.subr.mxu0 0.0
    %2527 = vmatpush1.xpose.msra.mxu0 %v1049
    %2528 = vmatprep.subr.mxu0 0.0
    %2529 = vmatpush1.xpose.msra.mxu0 %v1052
    %2530 = vmatprep.mubr.f32.mxu0 0.0
    %2531 = vmatmul.mubr.f32.gmra.mrb[0].mxu0 %v563
    %v2532 = vpop.f32.mrb[0].mxu0
    %v2533 = vadd.f32 %v544, %v2532
    %v2534 = vpop.f32.mrb[0].mxu0
    %v2535 = vadd.f32 %v544, %v2534
    %2536 = vmatprep.mubr.f32.mxu0 0.0
    %2537 = vmatmul.mubr.f32.gmra.mrb[0].mxu0 %v566
    %v2538 = vpop.f32.mrb[0].mxu0
    %v2539 = vadd.f32 %v549, %v2538
    %v2540 = vpop.f32.mrb[0].mxu0
    %v2541 = vadd.f32 %v549, %v2540
    %2542 = vmatprep.mubr.f32.mxu0 0.0
    %2543 = vmatmul.mubr.f32.gmra.mrb[0].mxu0 %v569
    %v2544 = vpop.f32.mrb[0].mxu0
    %v2545 = vadd.f32 %v554, %v2544
    %v2546 = vpop.f32.mrb[0].mxu0
    %v2547 = vadd.f32 %v554, %v2546
    %2548 = vmatprep.mubr.f32.mxu0 0.0
    %2549 = vmatmul.mubr.f32.gmra.mrb[0].mxu0 %v572
    %v2550 = vpop.f32.mrb[0].mxu0
    %v2551 = vadd.f32 %v559, %v2550
    %v2552 = vpop.f32.mrb[0].mxu0
    %v2553 = vadd.f32 %v559, %v2552
    %2554 = vdwg.mxu0
    %2555 = vmatprep.subr.mxu0 0.0
    %2556 = vmatpush1.xpose.msra.mxu0 %v1055
    %2557 = vmatprep.subr.mxu0 0.0
    %2558 = vmatpush1.xpose.msra.mxu0 %v1058
    %2559 = vmatprep.subr.mxu0 0.0
    %2560 = vmatpush1.xpose.msra.mxu0 %v1061
    %2561 = vmatprep.subr.mxu0 0.0
    %2562 = vmatpush1.xpose.msra.mxu0 %v1064
    %2563 = vmatprep.subr.mxu0 0.0
    %2564 = vmatpush1.xpose.msra.mxu0 %v1067
    %2565 = vmatprep.subr.mxu0 0.0
    %2566 = vmatpush1.xpose.msra.mxu0 %v1070
    %2567 = vmatprep.subr.mxu0 0.0
    %2568 = vmatpush1.xpose.msra.mxu0 %v1073
    %2569 = vmatprep.subr.mxu0 0.0
    %2570 = vmatpush1.xpose.msra.mxu0 %v1076
    %2571 = vmatprep.subr.mxu0 0.0
    %2572 = vmatpush1.xpose.msra.mxu0 %v1079
    %2573 = vmatprep.subr.mxu0 0.0
    %2574 = vmatpush1.xpose.msra.mxu0 %v1082
    %2575 = vmatprep.subr.mxu0 0.0
    %2576 = vmatpush1.xpose.msra.mxu0 %v1085
    %2577 = vmatprep.subr.mxu0 0.0
    %2578 = vmatpush1.xpose.msra.mxu0 %v1088
    %2579 = vmatprep.subr.mxu0 0.0
    %2580 = vmatpush1.xpose.msra.mxu0 %v1091
    %2581 = vmatprep.subr.mxu0 0.0
    %2582 = vmatpush1.xpose.msra.mxu0 %v1094
    %2583 = vmatprep.subr.mxu0 0.0
    %2584 = vmatpush1.xpose.msra.mxu0 %v1097
    %2585 = vmatprep.subr.mxu0 0.0
    %2586 = vmatpush1.xpose.msra.mxu0 %v1100
    %2587 = vmatprep.subr.mxu0 0.0
    %2588 = vmatpush1.xpose.msra.mxu0 %v1103
    %2589 = vmatprep.subr.mxu0 0.0
    %2590 = vmatpush1.xpose.msra.mxu0 %v1106
    %2591 = vmatprep.subr.mxu0 0.0
    %2592 = vmatpush1.xpose.msra.mxu0 %v1109
    %2593 = vmatprep.subr.mxu0 0.0
    %2594 = vmatpush1.xpose.msra.mxu0 %v1112
    %2595 = vmatprep.subr.mxu0 0.0
    %2596 = vmatpush1.xpose.msra.mxu0 %v1115
    %2597 = vmatprep.subr.mxu0 0.0
    %2598 = vmatpush1.xpose.msra.mxu0 %v1118
    %2599 = vmatprep.subr.mxu0 0.0
    %2600 = vmatpush1.xpose.msra.mxu0 %v1121
    %2601 = vmatprep.subr.mxu0 0.0
    %2602 = vmatpush1.xpose.msra.mxu0 %v1124
    %2603 = vmatprep.subr.mxu0 0.0
    %2604 = vmatpush1.xpose.msra.mxu0 %v1127
    %2605 = vmatprep.subr.mxu0 0.0
    %2606 = vmatpush1.xpose.msra.mxu0 %v1130
    %2607 = vmatprep.subr.mxu0 0.0
    %2608 = vmatpush1.xpose.msra.mxu0 %v1133
    %2609 = vmatprep.subr.mxu0 0.0
    %2610 = vmatpush1.xpose.msra.mxu0 %v1136
    %2611 = vmatprep.subr.mxu0 0.0
    %2612 = vmatpush1.xpose.msra.mxu0 %v1139
    %2613 = vmatprep.subr.mxu0 0.0
    %2614 = vmatpush1.xpose.msra.mxu0 %v1142
    %2615 = vmatprep.subr.mxu0 0.0
    %2616 = vmatpush1.xpose.msra.mxu0 %v1145
    %2617 = vmatprep.subr.mxu0 0.0
    %2618 = vmatpush1.xpose.msra.mxu0 %v1148
    %2619 = vmatprep.mubr.f32.mxu0 0.0
    %2620 = vmatmul.mubr.f32.gmra.mrb[0].mxu0 %v563
    %v2621 = vpop.f32.mrb[0].mxu0
    %v2622 = vadd.f32 %v544, %v2621
    %v2623 = vpop.f32.mrb[0].mxu0
    %v2624 = vadd.f32 %v544, %v2623
    %2625 = vmatprep.mubr.f32.mxu0 0.0
    %2626 = vmatmul.mubr.f32.gmra.mrb[0].mxu0 %v566
    %v2627 = vpop.f32.mrb[0].mxu0
    %v2628 = vadd.f32 %v549, %v2627
    %v2629 = vpop.f32.mrb[0].mxu0
    %v2630 = vadd.f32 %v549, %v2629
    %2631 = vmatprep.mubr.f32.mxu0 0.0
    %2632 = vmatmul.mubr.f32.gmra.mrb[0].mxu0 %v569
    %v2633 = vpop.f32.mrb[0].mxu0
    %v2634 = vadd.f32 %v554, %v2633
    %v2635 = vpop.f32.mrb[0].mxu0
    %v2636 = vadd.f32 %v554, %v2635
    %2637 = vmatprep.mubr.f32.mxu0 0.0
    %2638 = vmatmul.mubr.f32.gmra.mrb[0].mxu0 %v572
    %v2639 = vpop.f32.mrb[0].mxu0
    %v2640 = vadd.f32 %v559, %v2639
    %v2641 = vpop.f32.mrb[0].mxu0
    %v2642 = vadd.f32 %v559, %v2641
    %2643 = vdwg.mxu0
    %2644 = vmatprep.subr.mxu0 0.0
    %2645 = vmatpush1.xpose.msra.mxu0 %v1151
    %2646 = vmatprep.subr.mxu0 0.0
    %2647 = vmatpush1.xpose.msra.mxu0 %v1154
    %2648 = vmatprep.subr.mxu0 0.0
    %2649 = vmatpush1.xpose.msra.mxu0 %v1157
    %2650 = vmatprep.subr.mxu0 0.0
    %2651 = vmatpush1.xpose.msra.mxu0 %v1160
    %2652 = vmatprep.subr.mxu0 0.0
    %2653 = vmatpush1.xpose.msra.mxu0 %v1163
    %2654 = vmatprep.subr.mxu0 0.0
    %2655 = vmatpush1.xpose.msra.mxu0 %v1166
    %2656 = vmatprep.subr.mxu0 0.0
    %2657 = vmatpush1.xpose.msra.mxu0 %v1169
    %2658 = vmatprep.subr.mxu0 0.0
    %2659 = vmatpush1.xpose.msra.mxu0 %v1172
    %2660 = vmatprep.subr.mxu0 0.0
    %2661 = vmatpush1.xpose.msra.mxu0 %v1175
    %2662 = vmatprep.subr.mxu0 0.0
    %2663 = vmatpush1.xpose.msra.mxu0 %v1178
    %2664 = vmatprep.subr.mxu0 0.0
    %2665 = vmatpush1.xpose.msra.mxu0 %v1181
    %2666 = vmatprep.subr.mxu0 0.0
    %2667 = vmatpush1.xpose.msra.mxu0 %v1184
    %2668 = vmatprep.subr.mxu0 0.0
    %2669 = vmatpush1.xpose.msra.mxu0 %v1187
    %2670 = vmatprep.subr.mxu0 0.0
    %2671 = vmatpush1.xpose.msra.mxu0 %v1190
    %2672 = vmatprep.subr.mxu0 0.0
    %2673 = vmatpush1.xpose.msra.mxu0 %v1193
    %2674 = vmatprep.subr.mxu0 0.0
    %2675 = vmatpush1.xpose.msra.mxu0 %v1196
    %2676 = vmatprep.subr.mxu0 0.0
    %2677 = vmatpush1.xpose.msra.mxu0 %v1199
    %2678 = vmatprep.subr.mxu0 0.0
    %2679 = vmatpush1.xpose.msra.mxu0 %v1202
    %2680 = vmatprep.subr.mxu0 0.0
    %2681 = vmatpush1.xpose.msra.mxu0 %v1205
    %2682 = vmatprep.subr.mxu0 0.0
    %2683 = vmatpush1.xpose.msra.mxu0 %v1208
    %2684 = vmatprep.subr.mxu0 0.0
    %2685 = vmatpush1.xpose.msra.mxu0 %v1211
    %2686 = vmatprep.subr.mxu0 0.0
    %2687 = vmatpush1.xpose.msra.mxu0 %v1214
    %2688 = vmatprep.subr.mxu0 0.0
    %2689 = vmatpush1.xpose.msra.mxu0 %v1217
    %2690 = vmatprep.subr.mxu0 0.0
    %2691 = vmatpush1.xpose.msra.mxu0 %v1220
    %2692 = vmatprep.subr.mxu0 0.0
    %2693 = vmatpush1.xpose.msra.mxu0 %v1223
    %2694 = vmatprep.subr.mxu0 0.0
    %2695 = vmatpush1.xpose.msra.mxu0 %v1226
    %2696 = vmatprep.subr.mxu0 0.0
    %2697 = vmatpush1.xpose.msra.mxu0 %v1229
    %2698 = vmatprep.subr.mxu0 0.0
    %2699 = vmatpush1.xpose.msra.mxu0 %v1232
    %2700 = vmatprep.subr.mxu0 0.0
    %2701 = vmatpush1.xpose.msra.mxu0 %v1235
    %2702 = vmatprep.subr.mxu0 0.0
    %2703 = vmatpush1.xpose.msra.mxu0 %v1238
    %2704 = vmatprep.subr.mxu0 0.0
    %2705 = vmatpush1.xpose.msra.mxu0 %v1241
    %2706 = vmatprep.subr.mxu0 0.0
    %2707 = vmatpush1.xpose.msra.mxu0 %v1244
    %2708 = vmatprep.mubr.f32.mxu0 0.0
    %2709 = vmatmul.mubr.f32.gmra.mrb[0].mxu0 %v563
    %v2710 = vpop.f32.mrb[0].mxu0
    %v2711 = vadd.f32 %v544, %v2710
    %v2712 = vpop.f32.mrb[0].mxu0
    %v2713 = vadd.f32 %v544, %v2712
    %2714 = vmatprep.mubr.f32.mxu0 0.0
    %2715 = vmatmul.mubr.f32.gmra.mrb[0].mxu0 %v566
    %v2716 = vpop.f32.mrb[0].mxu0
    %v2717 = vadd.f32 %v549, %v2716
    %v2718 = vpop.f32.mrb[0].mxu0
    %v2719 = vadd.f32 %v549, %v2718
    %2720 = vmatprep.mubr.f32.mxu0 0.0
    %2721 = vmatmul.mubr.f32.gmra.mrb[0].mxu0 %v569
    %v2722 = vpop.f32.mrb[0].mxu0
    %v2723 = vadd.f32 %v554, %v2722
    %v2724 = vpop.f32.mrb[0].mxu0
    %v2725 = vadd.f32 %v554, %v2724
    %2726 = vmatprep.mubr.f32.mxu0 0.0
    %2727 = vmatmul.mubr.f32.gmra.mrb[0].mxu0 %v572
    %v2728 = vpop.f32.mrb[0].mxu0
    %v2729 = vadd.f32 %v559, %v2728
    %v2730 = vpop.f32.mrb[0].mxu0
    %v2731 = vadd.f32 %v559, %v2730
    %2732 = vdwg.mxu0
    %2733 = vmatprep.subr.mxu0 0.0
    %2734 = vmatpush1.xpose.msra.mxu0 %v1247
    %2735 = vmatprep.subr.mxu0 0.0
    %2736 = vmatpush1.xpose.msra.mxu0 %v1250
    %2737 = vmatprep.subr.mxu0 0.0
    %2738 = vmatpush1.xpose.msra.mxu0 %v1253
    %2739 = vmatprep.subr.mxu0 0.0
    %2740 = vmatpush1.xpose.msra.mxu0 %v1256
    %2741 = vmatprep.subr.mxu0 0.0
    %2742 = vmatpush1.xpose.msra.mxu0 %v1259
    %2743 = vmatprep.subr.mxu0 0.0
    %2744 = vmatpush1.xpose.msra.mxu0 %v1262
    %2745 = vmatprep.subr.mxu0 0.0
    %2746 = vmatpush1.xpose.msra.mxu0 %v1265
    %2747 = vmatprep.subr.mxu0 0.0
    %2748 = vmatpush1.xpose.msra.mxu0 %v1268
    %2749 = vmatprep.subr.mxu0 0.0
    %2750 = vmatpush1.xpose.msra.mxu0 %v1271
    %2751 = vmatprep.subr.mxu0 0.0
    %2752 = vmatpush1.xpose.msra.mxu0 %v1274
    %2753 = vmatprep.subr.mxu0 0.0
    %2754 = vmatpush1.xpose.msra.mxu0 %v1277
    %2755 = vmatprep.subr.mxu0 0.0
    %2756 = vmatpush1.xpose.msra.mxu0 %v1280
    %2757 = vmatprep.subr.mxu0 0.0
    %2758 = vmatpush1.xpose.msra.mxu0 %v1283
    %2759 = vmatprep.subr.mxu0 0.0
    %2760 = vmatpush1.xpose.msra.mxu0 %v1286
    %2761 = vmatprep.subr.mxu0 0.0
    %2762 = vmatpush1.xpose.msra.mxu0 %v1289
    %2763 = vmatprep.subr.mxu0 0.0
    %2764 = vmatpush1.xpose.msra.mxu0 %v1292
    %2765 = vmatprep.subr.mxu0 0.0
    %2766 = vmatpush1.xpose.msra.mxu0 %v1295
    %2767 = vmatprep.subr.mxu0 0.0
    %2768 = vmatpush1.xpose.msra.mxu0 %v1298
    %2769 = vmatprep.subr.mxu0 0.0
    %2770 = vmatpush1.xpose.msra.mxu0 %v1301
    %2771 = vmatprep.subr.mxu0 0.0
    %2772 = vmatpush1.xpose.msra.mxu0 %v1304
    %2773 = vmatprep.subr.mxu0 0.0
    %2774 = vmatpush1.xpose.msra.mxu0 %v1307
    %2775 = vmatprep.subr.mxu0 0.0
    %2776 = vmatpush1.xpose.msra.mxu0 %v1310
    %2777 = vmatprep.subr.mxu0 0.0
    %2778 = vmatpush1.xpose.msra.mxu0 %v1313
    %2779 = vmatprep.subr.mxu0 0.0
    %2780 = vmatpush1.xpose.msra.mxu0 %v1316
    %2781 = vmatprep.subr.mxu0 0.0
    %2782 = vmatpush1.xpose.msra.mxu0 %v1319
    %2783 = vmatprep.subr.mxu0 0.0
    %2784 = vmatpush1.xpose.msra.mxu0 %v1322
    %2785 = vmatprep.subr.mxu0 0.0
    %2786 = vmatpush1.xpose.msra.mxu0 %v1325
    %2787 = vmatprep.subr.mxu0 0.0
    %2788 = vmatpush1.xpose.msra.mxu0 %v1328
    %2789 = vmatprep.subr.mxu0 0.0
    %2790 = vmatpush1.xpose.msra.mxu0 %v1331
    %2791 = vmatprep.subr.mxu0 0.0
    %2792 = vmatpush1.xpose.msra.mxu0 %v1334
    %2793 = vmatprep.subr.mxu0 0.0
    %2794 = vmatpush1.xpose.msra.mxu0 %v1337
    %2795 = vmatprep.subr.mxu0 0.0
    %2796 = vmatpush1.xpose.msra.mxu0 %v1340
    %2797 = vmatprep.mubr.f32.mxu0 0.0
    %2798 = vmatmul.mubr.f32.gmra.mrb[0].mxu0 %v563
    %v2799 = vpop.f32.mrb[0].mxu0
    %v2800 = vadd.f32 %v544, %v2799
    %v2801 = vpop.f32.mrb[0].mxu0
    %v2802 = vadd.f32 %v544, %v2801
    %2803 = vmatprep.mubr.f32.mxu0 0.0
    %2804 = vmatmul.mubr.f32.gmra.mrb[0].mxu0 %v566
    %v2805 = vpop.f32.mrb[0].mxu0
    %v2806 = vadd.f32 %v549, %v2805
    %v2807 = vpop.f32.mrb[0].mxu0
    %v2808 = vadd.f32 %v549, %v2807
    %2809 = vmatprep.mubr.f32.mxu0 0.0
    %2810 = vmatmul.mubr.f32.gmra.mrb[0].mxu0 %v569
    %v2811 = vpop.f32.mrb[0].mxu0
    %v2812 = vadd.f32 %v554, %v2811
    %v2813 = vpop.f32.mrb[0].mxu0
    %v2814 = vadd.f32 %v554, %v2813
    %2815 = vmatprep.mubr.f32.mxu0 0.0
    %2816 = vmatmul.mubr.f32.gmra.mrb[0].mxu0 %v572
    %v2817 = vpop.f32.mrb[0].mxu0
    %v2818 = vadd.f32 %v559, %v2817
    %v2819 = vpop.f32.mrb[0].mxu0
    %v2820 = vadd.f32 %v559, %v2819
    %2821 = vdwg.mxu0
    %2822 = vmatprep.subr.mxu0 0.0
    %2823 = vmatpush1.xpose.msra.mxu0 %v1343
    %2824 = vmatprep.subr.mxu0 0.0
    %2825 = vmatpush1.xpose.msra.mxu0 %v1346
    %2826 = vmatprep.subr.mxu0 0.0
    %2827 = vmatpush1.xpose.msra.mxu0 %v1349
    %2828 = vmatprep.subr.mxu0 0.0
    %2829 = vmatpush1.xpose.msra.mxu0 %v1352
    %2830 = vmatprep.subr.mxu0 0.0
    %2831 = vmatpush1.xpose.msra.mxu0 %v1355
    %2832 = vmatprep.subr.mxu0 0.0
    %2833 = vmatpush1.xpose.msra.mxu0 %v1358
    %2834 = vmatprep.subr.mxu0 0.0
    %2835 = vmatpush1.xpose.msra.mxu0 %v1361
    %2836 = vmatprep.subr.mxu0 0.0
    %2837 = vmatpush1.xpose.msra.mxu0 %v1364
    %2838 = vmatprep.subr.mxu0 0.0
    %2839 = vmatpush1.xpose.msra.mxu0 %v1367
    %2840 = vmatprep.subr.mxu0 0.0
    %2841 = vmatpush1.xpose.msra.mxu0 %v1370
    %2842 = vmatprep.subr.mxu0 0.0
    %2843 = vmatpush1.xpose.msra.mxu0 %v1373
    %2844 = vmatprep.subr.mxu0 0.0
    %2845 = vmatpush1.xpose.msra.mxu0 %v1376
    %2846 = vmatprep.subr.mxu0 0.0
    %2847 = vmatpush1.xpose.msra.mxu0 %v1379
    %2848 = vmatprep.subr.mxu0 0.0
    %2849 = vmatpush1.xpose.msra.mxu0 %v1382
    %2850 = vmatprep.subr.mxu0 0.0
    %2851 = vmatpush1.xpose.msra.mxu0 %v1385
    %2852 = vmatprep.subr.mxu0 0.0
    %2853 = vmatpush1.xpose.msra.mxu0 %v1388
    %2854 = vmatprep.subr.mxu0 0.0
    %2855 = vmatpush1.xpose.msra.mxu0 %v1391
    %2856 = vmatprep.subr.mxu0 0.0
    %2857 = vmatpush1.xpose.msra.mxu0 %v1394
    %2858 = vmatprep.subr.mxu0 0.0
    %2859 = vmatpush1.xpose.msra.mxu0 %v1397
    %2860 = vmatprep.subr.mxu0 0.0
    %2861 = vmatpush1.xpose.msra.mxu0 %v1400
    %2862 = vmatprep.subr.mxu0 0.0
    %2863 = vmatpush1.xpose.msra.mxu0 %v1403
    %2864 = vmatprep.subr.mxu0 0.0
    %2865 = vmatpush1.xpose.msra.mxu0 %v1406
    %2866 = vmatprep.subr.mxu0 0.0
    %2867 = vmatpush1.xpose.msra.mxu0 %v1409
    %2868 = vmatprep.subr.mxu0 0.0
    %2869 = vmatpush1.xpose.msra.mxu0 %v1412
    %2870 = vmatprep.subr.mxu0 0.0
    %2871 = vmatpush1.xpose.msra.mxu0 %v1415
    %2872 = vmatprep.subr.mxu0 0.0
    %2873 = vmatpush1.xpose.msra.mxu0 %v1418
    %2874 = vmatprep.subr.mxu0 0.0
    %2875 = vmatpush1.xpose.msra.mxu0 %v1421
    %2876 = vmatprep.subr.mxu0 0.0
    %2877 = vmatpush1.xpose.msra.mxu0 %v1424
    %2878 = vmatprep.subr.mxu0 0.0
    %2879 = vmatpush1.xpose.msra.mxu0 %v1427
    %2880 = vmatprep.subr.mxu0 0.0
    %2881 = vmatpush1.xpose.msra.mxu0 %v1430
    %2882 = vmatprep.subr.mxu0 0.0
    %2883 = vmatpush1.xpose.msra.mxu0 %v1433
    %2884 = vmatprep.subr.mxu0 0.0
    %2885 = vmatpush1.xpose.msra.mxu0 %v1436
    %2886 = vmatprep.mubr.f32.mxu0 0.0
    %2887 = vmatmul.mubr.f32.gmra.mrb[0].mxu0 %v563
    %v2888 = vpop.f32.mrb[0].mxu0
    %v2889 = vadd.f32 %v544, %v2888
    %v2890 = vpop.f32.mrb[0].mxu0
    %v2891 = vadd.f32 %v544, %v2890
    %2892 = vmatprep.mubr.f32.mxu0 0.0
    %2893 = vmatmul.mubr.f32.gmra.mrb[0].mxu0 %v566
    %v2894 = vpop.f32.mrb[0].mxu0
    %v2895 = vadd.f32 %v549, %v2894
    %v2896 = vpop.f32.mrb[0].mxu0
    %v2897 = vadd.f32 %v549, %v2896
    %2898 = vmatprep.mubr.f32.mxu0 0.0
    %2899 = vmatmul.mubr.f32.gmra.mrb[0].mxu0 %v569
    %v2900 = vpop.f32.mrb[0].mxu0
    %v2901 = vadd.f32 %v554, %v2900
    %v2902 = vpop.f32.mrb[0].mxu0
    %v2903 = vadd.f32 %v554, %v2902
    %2904 = vmatprep.mubr.f32.mxu0 0.0
    %2905 = vmatmul.mubr.f32.gmra.mrb[0].mxu0 %v572
    %v2906 = vpop.f32.mrb[0].mxu0
    %v2907 = vadd.f32 %v559, %v2906
    %v2908 = vpop.f32.mrb[0].mxu0
    %v2909 = vadd.f32 %v559, %v2908
    %2910 = vdwg.mxu0
    %2911 = vmatprep.subr.mxu0 0.0
    %2912 = vmatpush1.xpose.msra.mxu0 %v1439
    %2913 = vmatprep.subr.mxu0 0.0
    %2914 = vmatpush1.xpose.msra.mxu0 %v1442
    %2915 = vmatprep.subr.mxu0 0.0
    %2916 = vmatpush1.xpose.msra.mxu0 %v1445
    %2917 = vmatprep.subr.mxu0 0.0
    %2918 = vmatpush1.xpose.msra.mxu0 %v1448
    %2919 = vmatprep.subr.mxu0 0.0
    %2920 = vmatpush1.xpose.msra.mxu0 %v1451
    %2921 = vmatprep.subr.mxu0 0.0
    %2922 = vmatpush1.xpose.msra.mxu0 %v1454
    %2923 = vmatprep.subr.mxu0 0.0
    %2924 = vmatpush1.xpose.msra.mxu0 %v1457
    %2925 = vmatprep.subr.mxu0 0.0
    %2926 = vmatpush1.xpose.msra.mxu0 %v1460
    %2927 = vmatprep.subr.mxu0 0.0
    %2928 = vmatpush1.xpose.msra.mxu0 %v1463
    %2929 = vmatprep.subr.mxu0 0.0
    %2930 = vmatpush1.xpose.msra.mxu0 %v1466
    %2931 = vmatprep.subr.mxu0 0.0
    %2932 = vmatpush1.xpose.msra.mxu0 %v1469
    %2933 = vmatprep.subr.mxu0 0.0
    %2934 = vmatpush1.xpose.msra.mxu0 %v1472
    %2935 = vmatprep.subr.mxu0 0.0
    %2936 = vmatpush1.xpose.msra.mxu0 %v1475
    %2937 = vmatprep.subr.mxu0 0.0
    %2938 = vmatpush1.xpose.msra.mxu0 %v1478
    %2939 = vmatprep.subr.mxu0 0.0
    %2940 = vmatpush1.xpose.msra.mxu0 %v1481
    %2941 = vmatprep.subr.mxu0 0.0
    %2942 = vmatpush1.xpose.msra.mxu0 %v1484
    %2943 = vmatprep.subr.mxu0 0.0
    %2944 = vmatpush1.xpose.msra.mxu0 %v1487
    %2945 = vmatprep.subr.mxu0 0.0
    %2946 = vmatpush1.xpose.msra.mxu0 %v1490
    %2947 = vmatprep.subr.mxu0 0.0
    %2948 = vmatpush1.xpose.msra.mxu0 %v1493
    %2949 = vmatprep.subr.mxu0 0.0
    %2950 = vmatpush1.xpose.msra.mxu0 %v1496
    %2951 = vmatprep.subr.mxu0 0.0
    %2952 = vmatpush1.xpose.msra.mxu0 %v1499
    %2953 = vmatprep.subr.mxu0 0.0
    %2954 = vmatpush1.xpose.msra.mxu0 %v1502
    %2955 = vmatprep.subr.mxu0 0.0
    %2956 = vmatpush1.xpose.msra.mxu0 %v1505
    %2957 = vmatprep.subr.mxu0 0.0
    %2958 = vmatpush1.xpose.msra.mxu0 %v1508
    %2959 = vmatprep.subr.mxu0 0.0
    %2960 = vmatpush1.xpose.msra.mxu0 %v1511
    %2961 = vmatprep.subr.mxu0 0.0
    %2962 = vmatpush1.xpose.msra.mxu0 %v1514
    %2963 = vmatprep.subr.mxu0 0.0
    %2964 = vmatpush1.xpose.msra.mxu0 %v1517
    %2965 = vmatprep.subr.mxu0 0.0
    %2966 = vmatpush1.xpose.msra.mxu0 %v1520
    %2967 = vmatprep.subr.mxu0 0.0
    %2968 = vmatpush1.xpose.msra.mxu0 %v1523
    %2969 = vmatprep.subr.mxu0 0.0
    %2970 = vmatpush1.xpose.msra.mxu0 %v1526
    %2971 = vmatprep.subr.mxu0 0.0
    %2972 = vmatpush1.xpose.msra.mxu0 %v1529
    %2973 = vmatprep.subr.mxu0 0.0
    %2974 = vmatpush1.xpose.msra.mxu0 %v1532
    %2975 = vmatprep.mubr.f32.mxu0 0.0
    %2976 = vmatmul.mubr.f32.gmra.mrb[0].mxu0 %v563
    %v2977 = vpop.f32.mrb[0].mxu0
    %v2978 = vadd.f32 %v544, %v2977
    %v2979 = vpop.f32.mrb[0].mxu0
    %v2980 = vadd.f32 %v544, %v2979
    %2981 = vmatprep.mubr.f32.mxu0 0.0
    %2982 = vmatmul.mubr.f32.gmra.mrb[0].mxu0 %v566
    %v2983 = vpop.f32.mrb[0].mxu0
    %v2984 = vadd.f32 %v549, %v2983
    %v2985 = vpop.f32.mrb[0].mxu0
    %v2986 = vadd.f32 %v549, %v2985
    %2987 = vmatprep.mubr.f32.mxu0 0.0
    %2988 = vmatmul.mubr.f32.gmra.mrb[0].mxu0 %v569
    %v2989 = vpop.f32.mrb[0].mxu0
    %v2990 = vadd.f32 %v554, %v2989
    %v2991 = vpop.f32.mrb[0].mxu0
    %v2992 = vadd.f32 %v554, %v2991
    %2993 = vmatprep.mubr.f32.mxu0 0.0
    %2994 = vmatmul.mubr.f32.gmra.mrb[0].mxu0 %v572
    %v2995 = vpop.f32.mrb[0].mxu0
    %v2996 = vadd.f32 %v559, %v2995
    %v2997 = vpop.f32.mrb[0].mxu0
    %v2998 = vadd.f32 %v559, %v2997
    %2999 = vdwg.mxu0
    %3000 = vmatprep.subr.mxu0 0.0
    %3001 = vmatpush1.xpose.msra.mxu0 %v1535
    %3002 = vmatprep.subr.mxu0 0.0
    %3003 = vmatpush1.xpose.msra.mxu0 %v1538
    %3004 = vmatprep.subr.mxu0 0.0
    %3005 = vmatpush1.xpose.msra.mxu0 %v1541
    %3006 = vmatprep.subr.mxu0 0.0
    %3007 = vmatpush1.xpose.msra.mxu0 %v1544
    %3008 = vmatprep.subr.mxu0 0.0
    %3009 = vmatpush1.xpose.msra.mxu0 %v1547
    %3010 = vmatprep.subr.mxu0 0.0
    %3011 = vmatpush1.xpose.msra.mxu0 %v1550
    %3012 = vmatprep.subr.mxu0 0.0
    %3013 = vmatpush1.xpose.msra.mxu0 %v1553
    %3014 = vmatprep.subr.mxu0 0.0
    %3015 = vmatpush1.xpose.msra.mxu0 %v1556
    %3016 = vmatprep.subr.mxu0 0.0
    %3017 = vmatpush1.xpose.msra.mxu0 %v1559
    %3018 = vmatprep.subr.mxu0 0.0
    %3019 = vmatpush1.xpose.msra.mxu0 %v1562
    %3020 = vmatprep.subr.mxu0 0.0
    %3021 = vmatpush1.xpose.msra.mxu0 %v1565
    %3022 = vmatprep.subr.mxu0 0.0
    %3023 = vmatpush1.xpose.msra.mxu0 %v1568
    %3024 = vmatprep.subr.mxu0 0.0
    %3025 = vmatpush1.xpose.msra.mxu0 %v1571
    %3026 = vmatprep.subr.mxu0 0.0
    %3027 = vmatpush1.xpose.msra.mxu0 %v1574
    %3028 = vmatprep.subr.mxu0 0.0
    %3029 = vmatpush1.xpose.msra.mxu0 %v1577
    %3030 = vmatprep.subr.mxu0 0.0
    %3031 = vmatpush1.xpose.msra.mxu0 %v1580
    %3032 = vmatprep.subr.mxu0 0.0
    %3033 = vmatpush1.xpose.msra.mxu0 %v1583
    %3034 = vmatprep.subr.mxu0 0.0
    %3035 = vmatpush1.xpose.msra.mxu0 %v1586
    %3036 = vmatprep.subr.mxu0 0.0
    %3037 = vmatpush1.xpose.msra.mxu0 %v1589
    %3038 = vmatprep.subr.mxu0 0.0
    %3039 = vmatpush1.xpose.msra.mxu0 %v1592
    %3040 = vmatprep.subr.mxu0 0.0
    %3041 = vmatpush1.xpose.msra.mxu0 %v1595
    %3042 = vmatprep.subr.mxu0 0.0
    %3043 = vmatpush1.xpose.msra.mxu0 %v1598
    %3044 = vmatprep.subr.mxu0 0.0
    %3045 = vmatpush1.xpose.msra.mxu0 %v1601
    %3046 = vmatprep.subr.mxu0 0.0
    %3047 = vmatpush1.xpose.msra.mxu0 %v1604
    %3048 = vmatprep.subr.mxu0 0.0
    %3049 = vmatpush1.xpose.msra.mxu0 %v1607
    %3050 = vmatprep.subr.mxu0 0.0
    %3051 = vmatpush1.xpose.msra.mxu0 %v1610
    %3052 = vmatprep.subr.mxu0 0.0
    %3053 = vmatpush1.xpose.msra.mxu0 %v1613
    %3054 = vmatprep.subr.mxu0 0.0
    %3055 = vmatpush1.xpose.msra.mxu0 %v1616
    %3056 = vmatprep.subr.mxu0 0.0
    %3057 = vmatpush1.xpose.msra.mxu0 %v1619
    %3058 = vmatprep.subr.mxu0 0.0
    %3059 = vmatpush1.xpose.msra.mxu0 %v1622
    %3060 = vmatprep.subr.mxu0 0.0
    %3061 = vmatpush1.xpose.msra.mxu0 %v1625
    %3062 = vmatprep.subr.mxu0 0.0
    %3063 = vmatpush1.xpose.msra.mxu0 %v1628
    %3064 = vmatprep.mubr.f32.mxu0 0.0
    %3065 = vmatmul.mubr.f32.gmra.mrb[0].mxu0 %v563
    %v3066 = vpop.f32.mrb[0].mxu0
    %v3067 = vadd.f32 %v544, %v3066
    %v3068 = vpop.f32.mrb[0].mxu0
    %v3069 = vadd.f32 %v544, %v3068
    %3070 = vmatprep.mubr.f32.mxu0 0.0
    %3071 = vmatmul.mubr.f32.gmra.mrb[0].mxu0 %v566
    %v3072 = vpop.f32.mrb[0].mxu0
    %v3073 = vadd.f32 %v549, %v3072
    %v3074 = vpop.f32.mrb[0].mxu0
    %v3075 = vadd.f32 %v549, %v3074
    %3076 = vmatprep.mubr.f32.mxu0 0.0
    %3077 = vmatmul.mubr.f32.gmra.mrb[0].mxu0 %v569
    %v3078 = vpop.f32.mrb[0].mxu0
    %v3079 = vadd.f32 %v554, %v3078
    %v3080 = vpop.f32.mrb[0].mxu0
    %v3081 = vadd.f32 %v554, %v3080
    %3082 = vmatprep.mubr.f32.mxu0 0.0
    %3083 = vmatmul.mubr.f32.gmra.mrb[0].mxu0 %v572
    %v3084 = vpop.f32.mrb[0].mxu0
    %v3085 = vadd.f32 %v559, %v3084
    %v3086 = vpop.f32.mrb[0].mxu0
    %v3087 = vadd.f32 %v559, %v3086
    %3088 = vdwg.mxu0
    %3089 = vmatprep.subr.mxu0 0.0
    %3090 = vmatpush1.xpose.msra.mxu0 %v1631
    %3091 = vmatprep.subr.mxu0 0.0
    %3092 = vmatpush1.xpose.msra.mxu0 %v1634
    %3093 = vmatprep.subr.mxu0 0.0
    %3094 = vmatpush1.xpose.msra.mxu0 %v1637
    %3095 = vmatprep.subr.mxu0 0.0
    %3096 = vmatpush1.xpose.msra.mxu0 %v1640
    %3097 = vmatprep.subr.mxu0 0.0
    %3098 = vmatpush1.xpose.msra.mxu0 %v1643
    %3099 = vmatprep.subr.mxu0 0.0
    %3100 = vmatpush1.xpose.msra.mxu0 %v1646
    %3101 = vmatprep.subr.mxu0 0.0
    %3102 = vmatpush1.xpose.msra.mxu0 %v1649
    %3103 = vmatprep.subr.mxu0 0.0
    %3104 = vmatpush1.xpose.msra.mxu0 %v1652
    %3105 = vmatprep.subr.mxu0 0.0
    %3106 = vmatpush1.xpose.msra.mxu0 %v1655
    %3107 = vmatprep.subr.mxu0 0.0
    %3108 = vmatpush1.xpose.msra.mxu0 %v1658
    %3109 = vmatprep.subr.mxu0 0.0
    %3110 = vmatpush1.xpose.msra.mxu0 %v1661
    %3111 = vmatprep.subr.mxu0 0.0
    %3112 = vmatpush1.xpose.msra.mxu0 %v1664
    %3113 = vmatprep.subr.mxu0 0.0
    %3114 = vmatpush1.xpose.msra.mxu0 %v1667
    %3115 = vmatprep.subr.mxu0 0.0
    %3116 = vmatpush1.xpose.msra.mxu0 %v1670
    %3117 = vmatprep.subr.mxu0 0.0
    %3118 = vmatpush1.xpose.msra.mxu0 %v1673
    %3119 = vmatprep.subr.mxu0 0.0
    %3120 = vmatpush1.xpose.msra.mxu0 %v1676
    %3121 = vmatprep.subr.mxu0 0.0
    %3122 = vmatpush1.xpose.msra.mxu0 %v1679
    %3123 = vmatprep.subr.mxu0 0.0
    %3124 = vmatpush1.xpose.msra.mxu0 %v1682
    %3125 = vmatprep.subr.mxu0 0.0
    %3126 = vmatpush1.xpose.msra.mxu0 %v1685
    %3127 = vmatprep.subr.mxu0 0.0
    %3128 = vmatpush1.xpose.msra.mxu0 %v1688
    %3129 = vmatprep.subr.mxu0 0.0
    %3130 = vmatpush1.xpose.msra.mxu0 %v1691
    %3131 = vmatprep.subr.mxu0 0.0
    %3132 = vmatpush1.xpose.msra.mxu0 %v1694
    %3133 = vmatprep.subr.mxu0 0.0
    %3134 = vmatpush1.xpose.msra.mxu0 %v1697
    %3135 = vmatprep.subr.mxu0 0.0
    %3136 = vmatpush1.xpose.msra.mxu0 %v1700
    %3137 = vmatprep.subr.mxu0 0.0
    %3138 = vmatpush1.xpose.msra.mxu0 %v1703
    %3139 = vmatprep.subr.mxu0 0.0
    %3140 = vmatpush1.xpose.msra.mxu0 %v1706
    %3141 = vmatprep.subr.mxu0 0.0
    %3142 = vmatpush1.xpose.msra.mxu0 %v1709
    %3143 = vmatprep.subr.mxu0 0.0
    %3144 = vmatpush1.xpose.msra.mxu0 %v1712
    %3145 = vmatprep.subr.mxu0 0.0
    %3146 = vmatpush1.xpose.msra.mxu0 %v1715
    %3147 = vmatprep.subr.mxu0 0.0
    %3148 = vmatpush1.xpose.msra.mxu0 %v1718
    %3149 = vmatprep.subr.mxu0 0.0
    %3150 = vmatpush1.xpose.msra.mxu0 %v1721
    %3151 = vmatprep.subr.mxu0 0.0
    %3152 = vmatpush1.xpose.msra.mxu0 %v1724
    %3153 = vmatprep.mubr.f32.mxu0 0.0
    %3154 = vmatmul.mubr.f32.gmra.mrb[0].mxu0 %v563
    %v3155 = vpop.f32.mrb[0].mxu0
    %v3156 = vadd.f32 %v544, %v3155
    %v3157 = vpop.f32.mrb[0].mxu0
    %v3158 = vadd.f32 %v544, %v3157
    %3159 = vmatprep.mubr.f32.mxu0 0.0
    %3160 = vmatmul.mubr.f32.gmra.mrb[0].mxu0 %v566
    %v3161 = vpop.f32.mrb[0].mxu0
    %v3162 = vadd.f32 %v549, %v3161
    %v3163 = vpop.f32.mrb[0].mxu0
    %v3164 = vadd.f32 %v549, %v3163
    %3165 = vmatprep.mubr.f32.mxu0 0.0
    %3166 = vmatmul.mubr.f32.gmra.mrb[0].mxu0 %v569
    %v3167 = vpop.f32.mrb[0].mxu0
    %v3168 = vadd.f32 %v554, %v3167
    %v3169 = vpop.f32.mrb[0].mxu0
    %v3170 = vadd.f32 %v554, %v3169
    %3171 = vmatprep.mubr.f32.mxu0 0.0
    %3172 = vmatmul.mubr.f32.gmra.mrb[0].mxu0 %v572
    %v3173 = vpop.f32.mrb[0].mxu0
    %v3174 = vadd.f32 %v559, %v3173
    %v3175 = vpop.f32.mrb[0].mxu0
    %v3176 = vadd.f32 %v559, %v3175
    %3177 = vdwg.mxu0
    %3178 = vmatprep.subr.mxu0 0.0
    %3179 = vmatpush1.xpose.msra.mxu0 %v1727
    %3180 = vmatprep.subr.mxu0 0.0
    %3181 = vmatpush1.xpose.msra.mxu0 %v1730
    %3182 = vmatprep.subr.mxu0 0.0
    %3183 = vmatpush1.xpose.msra.mxu0 %v1733
    %3184 = vmatprep.subr.mxu0 0.0
    %3185 = vmatpush1.xpose.msra.mxu0 %v1736
    %3186 = vmatprep.subr.mxu0 0.0
    %3187 = vmatpush1.xpose.msra.mxu0 %v1739
    %3188 = vmatprep.subr.mxu0 0.0
    %3189 = vmatpush1.xpose.msra.mxu0 %v1742
    %3190 = vmatprep.subr.mxu0 0.0
    %3191 = vmatpush1.xpose.msra.mxu0 %v1745
    %3192 = vmatprep.subr.mxu0 0.0
    %3193 = vmatpush1.xpose.msra.mxu0 %v1748
    %3194 = vmatprep.subr.mxu0 0.0
    %3195 = vmatpush1.xpose.msra.mxu0 %v1751
    %3196 = vmatprep.subr.mxu0 0.0
    %3197 = vmatpush1.xpose.msra.mxu0 %v1754
    %3198 = vmatprep.subr.mxu0 0.0
    %3199 = vmatpush1.xpose.msra.mxu0 %v1757
    %3200 = vmatprep.subr.mxu0 0.0
    %3201 = vmatpush1.xpose.msra.mxu0 %v1760
    %3202 = vmatprep.subr.mxu0 0.0
    %3203 = vmatpush1.xpose.msra.mxu0 %v1763
    %3204 = vmatprep.subr.mxu0 0.0
    %3205 = vmatpush1.xpose.msra.mxu0 %v1766
    %3206 = vmatprep.subr.mxu0 0.0
    %3207 = vmatpush1.xpose.msra.mxu0 %v1769
    %3208 = vmatprep.subr.mxu0 0.0
    %3209 = vmatpush1.xpose.msra.mxu0 %v1772
    %3210 = vmatprep.subr.mxu0 0.0
    %3211 = vmatpush1.xpose.msra.mxu0 %v1775
    %3212 = vmatprep.subr.mxu0 0.0
    %3213 = vmatpush1.xpose.msra.mxu0 %v1778
    %3214 = vmatprep.subr.mxu0 0.0
    %3215 = vmatpush1.xpose.msra.mxu0 %v1781
    %3216 = vmatprep.subr.mxu0 0.0
    %3217 = vmatpush1.xpose.msra.mxu0 %v1784
    %3218 = vmatprep.subr.mxu0 0.0
    %3219 = vmatpush1.xpose.msra.mxu0 %v1787
    %3220 = vmatprep.subr.mxu0 0.0
    %3221 = vmatpush1.xpose.msra.mxu0 %v1790
    %3222 = vmatprep.subr.mxu0 0.0
    %3223 = vmatpush1.xpose.msra.mxu0 %v1793
    %3224 = vmatprep.subr.mxu0 0.0
    %3225 = vmatpush1.xpose.msra.mxu0 %v1796
    %3226 = vmatprep.subr.mxu0 0.0
    %3227 = vmatpush1.xpose.msra.mxu0 %v1799
    %3228 = vmatprep.subr.mxu0 0.0
    %3229 = vmatpush1.xpose.msra.mxu0 %v1802
    %3230 = vmatprep.subr.mxu0 0.0
    %3231 = vmatpush1.xpose.msra.mxu0 %v1805
    %3232 = vmatprep.subr.mxu0 0.0
    %3233 = vmatpush1.xpose.msra.mxu0 %v1808
    %3234 = vmatprep.subr.mxu0 0.0
    %3235 = vmatpush1.xpose.msra.mxu0 %v1811
    %3236 = vmatprep.subr.mxu0 0.0
    %3237 = vmatpush1.xpose.msra.mxu0 %v1814
    %3238 = vmatprep.subr.mxu0 0.0
    %3239 = vmatpush1.xpose.msra.mxu0 %v1817
    %3240 = vmatprep.subr.mxu0 0.0
    %3241 = vmatpush1.xpose.msra.mxu0 %v1820
    %3242 = vmatprep.mubr.f32.mxu0 0.0
    %3243 = vmatmul.mubr.f32.gmra.mrb[0].mxu0 %v563
    %v3244 = vpop.f32.mrb[0].mxu0
    %v3245 = vadd.f32 %v544, %v3244
    %v3246 = vpop.f32.mrb[0].mxu0
    %v3247 = vadd.f32 %v544, %v3246
    %3248 = vmatprep.mubr.f32.mxu0 0.0
    %3249 = vmatmul.mubr.f32.gmra.mrb[0].mxu0 %v566
    %v3250 = vpop.f32.mrb[0].mxu0
    %v3251 = vadd.f32 %v549, %v3250
    %v3252 = vpop.f32.mrb[0].mxu0
    %v3253 = vadd.f32 %v549, %v3252
    %3254 = vmatprep.mubr.f32.mxu0 0.0
    %3255 = vmatmul.mubr.f32.gmra.mrb[0].mxu0 %v569
    %v3256 = vpop.f32.mrb[0].mxu0
    %v3257 = vadd.f32 %v554, %v3256
    %v3258 = vpop.f32.mrb[0].mxu0
    %v3259 = vadd.f32 %v554, %v3258
    %3260 = vmatprep.mubr.f32.mxu0 0.0
    %3261 = vmatmul.mubr.f32.gmra.mrb[0].mxu0 %v572
    %v3262 = vpop.f32.mrb[0].mxu0
    %v3263 = vadd.f32 %v559, %v3262
    %v3264 = vpop.f32.mrb[0].mxu0
    %v3265 = vadd.f32 %v559, %v3264
    %3266 = vdwg.mxu0
    %3267 = vmatprep.subr.mxu0 0.0
    %3268 = vmatpush1.xpose.msra.mxu0 %v1823
    %3269 = vmatprep.subr.mxu0 0.0
    %3270 = vmatpush1.xpose.msra.mxu0 %v1826
    %3271 = vmatprep.subr.mxu0 0.0
    %3272 = vmatpush1.xpose.msra.mxu0 %v1829
    %3273 = vmatprep.subr.mxu0 0.0
    %3274 = vmatpush1.xpose.msra.mxu0 %v1832
    %3275 = vmatprep.subr.mxu0 0.0
    %3276 = vmatpush1.xpose.msra.mxu0 %v1835
    %3277 = vmatprep.subr.mxu0 0.0
    %3278 = vmatpush1.xpose.msra.mxu0 %v1838
    %3279 = vmatprep.subr.mxu0 0.0
    %3280 = vmatpush1.xpose.msra.mxu0 %v1841
    %3281 = vmatprep.subr.mxu0 0.0
    %3282 = vmatpush1.xpose.msra.mxu0 %v1844
    %3283 = vmatprep.subr.mxu0 0.0
    %3284 = vmatpush1.xpose.msra.mxu0 %v1847
    %3285 = vmatprep.subr.mxu0 0.0
    %3286 = vmatpush1.xpose.msra.mxu0 %v1850
    %3287 = vmatprep.subr.mxu0 0.0
    %3288 = vmatpush1.xpose.msra.mxu0 %v1853
    %3289 = vmatprep.subr.mxu0 0.0
    %3290 = vmatpush1.xpose.msra.mxu0 %v1856
    %3291 = vmatprep.subr.mxu0 0.0
    %3292 = vmatpush1.xpose.msra.mxu0 %v1859
    %3293 = vmatprep.subr.mxu0 0.0
    %3294 = vmatpush1.xpose.msra.mxu0 %v1862
    %3295 = vmatprep.subr.mxu0 0.0
    %3296 = vmatpush1.xpose.msra.mxu0 %v1865
    %3297 = vmatprep.subr.mxu0 0.0
    %3298 = vmatpush1.xpose.msra.mxu0 %v1868
    %3299 = vmatprep.subr.mxu0 0.0
    %3300 = vmatpush1.xpose.msra.mxu0 %v1871
    %3301 = vmatprep.subr.mxu0 0.0
    %3302 = vmatpush1.xpose.msra.mxu0 %v1874
    %3303 = vmatprep.subr.mxu0 0.0
    %3304 = vmatpush1.xpose.msra.mxu0 %v1877
    %3305 = vmatprep.subr.mxu0 0.0
    %3306 = vmatpush1.xpose.msra.mxu0 %v1880
    %3307 = vmatprep.subr.mxu0 0.0
    %3308 = vmatpush1.xpose.msra.mxu0 %v1883
    %3309 = vmatprep.subr.mxu0 0.0
    %3310 = vmatpush1.xpose.msra.mxu0 %v1886
    %3311 = vmatprep.subr.mxu0 0.0
    %3312 = vmatpush1.xpose.msra.mxu0 %v1889
    %3313 = vmatprep.subr.mxu0 0.0
    %3314 = vmatpush1.xpose.msra.mxu0 %v1892
    %3315 = vmatprep.subr.mxu0 0.0
    %3316 = vmatpush1.xpose.msra.mxu0 %v1895
    %3317 = vmatprep.subr.mxu0 0.0
    %3318 = vmatpush1.xpose.msra.mxu0 %v1898
    %3319 = vmatprep.subr.mxu0 0.0
    %3320 = vmatpush1.xpose.msra.mxu0 %v1901
    %3321 = vmatprep.subr.mxu0 0.0
    %3322 = vmatpush1.xpose.msra.mxu0 %v1904
    %3323 = vmatprep.subr.mxu0 0.0
    %3324 = vmatpush1.xpose.msra.mxu0 %v1907
    %3325 = vmatprep.subr.mxu0 0.0
    %3326 = vmatpush1.xpose.msra.mxu0 %v1910
    %3327 = vmatprep.subr.mxu0 0.0
    %3328 = vmatpush1.xpose.msra.mxu0 %v1913
    %3329 = vmatprep.subr.mxu0 0.0
    %3330 = vmatpush1.xpose.msra.mxu0 %v1916
    %3331 = vmatprep.mubr.f32.mxu0 0.0
    %3332 = vmatmul.mubr.f32.gmra.mrb[0].mxu0 %v563
    %v3333 = vpop.f32.mrb[0].mxu0
    %v3334 = vadd.f32 %v544, %v3333
    %v3335 = vpop.f32.mrb[0].mxu0
    %v3336 = vadd.f32 %v544, %v3335
    %3337 = vmatprep.mubr.f32.mxu0 0.0
    %3338 = vmatmul.mubr.f32.gmra.mrb[0].mxu0 %v566
    %v3339 = vpop.f32.mrb[0].mxu0
    %v3340 = vadd.f32 %v549, %v3339
    %v3341 = vpop.f32.mrb[0].mxu0
    %v3342 = vadd.f32 %v549, %v3341
    %3343 = vmatprep.mubr.f32.mxu0 0.0
    %3344 = vmatmul.mubr.f32.gmra.mrb[0].mxu0 %v569
    %v3345 = vpop.f32.mrb[0].mxu0
    %v3346 = vadd.f32 %v554, %v3345
    %v3347 = vpop.f32.mrb[0].mxu0
    %v3348 = vadd.f32 %v554, %v3347
    %3349 = vmatprep.mubr.f32.mxu0 0.0
    %3350 = vmatmul.mubr.f32.gmra.mrb[0].mxu0 %v572
    %v3351 = vpop.f32.mrb[0].mxu0
    %v3352 = vadd.f32 %v559, %v3351
    %v3353 = vpop.f32.mrb[0].mxu0
    %v3354 = vadd.f32 %v559, %v3353
    %3355 = vdwg.mxu0
    %3356 = vmatprep.subr.mxu0 0.0
    %3357 = vmatpush1.xpose.msra.mxu0 %v1919
    %3358 = vmatprep.subr.mxu0 0.0
    %3359 = vmatpush1.xpose.msra.mxu0 %v1922
    %3360 = vmatprep.subr.mxu0 0.0
    %3361 = vmatpush1.xpose.msra.mxu0 %v1925
    %3362 = vmatprep.subr.mxu0 0.0
    %3363 = vmatpush1.xpose.msra.mxu0 %v1928
    %3364 = vmatprep.subr.mxu0 0.0
    %3365 = vmatpush1.xpose.msra.mxu0 %v1931
    %3366 = vmatprep.subr.mxu0 0.0
    %3367 = vmatpush1.xpose.msra.mxu0 %v1934
    %3368 = vmatprep.subr.mxu0 0.0
    %3369 = vmatpush1.xpose.msra.mxu0 %v1937
    %3370 = vmatprep.subr.mxu0 0.0
    %3371 = vmatpush1.xpose.msra.mxu0 %v1940
    %3372 = vmatprep.subr.mxu0 0.0
    %3373 = vmatpush1.xpose.msra.mxu0 %v1943
    %3374 = vmatprep.subr.mxu0 0.0
    %3375 = vmatpush1.xpose.msra.mxu0 %v1946
    %3376 = vmatprep.subr.mxu0 0.0
    %3377 = vmatpush1.xpose.msra.mxu0 %v1949
    %3378 = vmatprep.subr.mxu0 0.0
    %3379 = vmatpush1.xpose.msra.mxu0 %v1952
    %3380 = vmatprep.subr.mxu0 0.0
    %3381 = vmatpush1.xpose.msra.mxu0 %v1955
    %3382 = vmatprep.subr.mxu0 0.0
    %3383 = vmatpush1.xpose.msra.mxu0 %v1958
    %3384 = vmatprep.subr.mxu0 0.0
    %3385 = vmatpush1.xpose.msra.mxu0 %v1961
    %3386 = vmatprep.subr.mxu0 0.0
    %3387 = vmatpush1.xpose.msra.mxu0 %v1964
    %3388 = vmatprep.subr.mxu0 0.0
    %3389 = vmatpush1.xpose.msra.mxu0 %v1967
    %3390 = vmatprep.subr.mxu0 0.0
    %3391 = vmatpush1.xpose.msra.mxu0 %v1970
    %3392 = vmatprep.subr.mxu0 0.0
    %3393 = vmatpush1.xpose.msra.mxu0 %v1973
    %3394 = vmatprep.subr.mxu0 0.0
    %3395 = vmatpush1.xpose.msra.mxu0 %v1976
    %3396 = vmatprep.subr.mxu0 0.0
    %3397 = vmatpush1.xpose.msra.mxu0 %v1979
    %3398 = vmatprep.subr.mxu0 0.0
    %3399 = vmatpush1.xpose.msra.mxu0 %v1982
    %3400 = vmatprep.subr.mxu0 0.0
    %3401 = vmatpush1.xpose.msra.mxu0 %v1985
    %3402 = vmatprep.subr.mxu0 0.0
    %3403 = vmatpush1.xpose.msra.mxu0 %v1988
    %3404 = vmatprep.subr.mxu0 0.0
    %3405 = vmatpush1.xpose.msra.mxu0 %v1991
    %3406 = vmatprep.subr.mxu0 0.0
    %3407 = vmatpush1.xpose.msra.mxu0 %v1994
    %3408 = vmatprep.subr.mxu0 0.0
    %3409 = vmatpush1.xpose.msra.mxu0 %v1997
    %3410 = vmatprep.subr.mxu0 0.0
    %3411 = vmatpush1.xpose.msra.mxu0 %v2000
    %3412 = vmatprep.subr.mxu0 0.0
    %3413 = vmatpush1.xpose.msra.mxu0 %v2003
    %3414 = vmatprep.subr.mxu0 0.0
    %3415 = vmatpush1.xpose.msra.mxu0 %v2006
    %3416 = vmatprep.subr.mxu0 0.0
    %3417 = vmatpush1.xpose.msra.mxu0 %v2009
    %3418 = vmatprep.subr.mxu0 0.0
    %3419 = vmatpush1.xpose.msra.mxu0 %v2012
    %3420 = vmatprep.mubr.f32.mxu0 0.0
    %3421 = vmatmul.mubr.f32.gmra.mrb[0].mxu0 %v563
    %v3422 = vpop.f32.mrb[0].mxu0
    %v3423 = vadd.f32 %v544, %v3422
    %v3424 = vpop.f32.mrb[0].mxu0
    %v3425 = vadd.f32 %v544, %v3424
    %3426 = vmatprep.mubr.f32.mxu0 0.0
    %3427 = vmatmul.mubr.f32.gmra.mrb[0].mxu0 %v566
    %v3428 = vpop.f32.mrb[0].mxu0
    %v3429 = vadd.f32 %v549, %v3428
    %v3430 = vpop.f32.mrb[0].mxu0
    %v3431 = vadd.f32 %v549, %v3430
    %3432 = vmatprep.mubr.f32.mxu0 0.0
    %3433 = vmatmul.mubr.f32.gmra.mrb[0].mxu0 %v569
    %v3434 = vpop.f32.mrb[0].mxu0
    %v3435 = vadd.f32 %v554, %v3434
    %v3436 = vpop.f32.mrb[0].mxu0
    %v3437 = vadd.f32 %v554, %v3436
    %3438 = vmatprep.mubr.f32.mxu0 0.0
    %3439 = vmatmul.mubr.f32.gmra.mrb[0].mxu0 %v572
    %v3440 = vpop.f32.mrb[0].mxu0
    %v3441 = vadd.f32 %v559, %v3440
    %v3442 = vpop.f32.mrb[0].mxu0
    %v3443 = vadd.f32 %v559, %v3442
    %3444 = vdwg.mxu0
    %3445 = vmatprep.subr.mxu0 0.0
    %3446 = vmatpush1.xpose.msra.mxu0 %v2015
    %3447 = vmatprep.subr.mxu0 0.0
    %3448 = vmatpush1.xpose.msra.mxu0 %v2018
    %3449 = vmatprep.subr.mxu0 0.0
    %3450 = vmatpush1.xpose.msra.mxu0 %v2021
    %3451 = vmatprep.subr.mxu0 0.0
    %3452 = vmatpush1.xpose.msra.mxu0 %v2024
    %3453 = vmatprep.subr.mxu0 0.0
    %3454 = vmatpush1.xpose.msra.mxu0 %v2027
    %3455 = vmatprep.subr.mxu0 0.0
    %3456 = vmatpush1.xpose.msra.mxu0 %v2030
    %3457 = vmatprep.subr.mxu0 0.0
    %3458 = vmatpush1.xpose.msra.mxu0 %v2033
    %3459 = vmatprep.subr.mxu0 0.0
    %3460 = vmatpush1.xpose.msra.mxu0 %v2036
    %3461 = vmatprep.subr.mxu0 0.0
    %3462 = vmatpush1.xpose.msra.mxu0 %v2039
    %3463 = vmatprep.subr.mxu0 0.0
    %3464 = vmatpush1.xpose.msra.mxu0 %v2042
    %3465 = vmatprep.subr.mxu0 0.0
    %3466 = vmatpush1.xpose.msra.mxu0 %v2045
    %3467 = vmatprep.subr.mxu0 0.0
    %3468 = vmatpush1.xpose.msra.mxu0 %v2048
    %3469 = vmatprep.subr.mxu0 0.0
    %3470 = vmatpush1.xpose.msra.mxu0 %v2051
    %3471 = vmatprep.subr.mxu0 0.0
    %3472 = vmatpush1.xpose.msra.mxu0 %v2054
    %3473 = vmatprep.subr.mxu0 0.0
    %3474 = vmatpush1.xpose.msra.mxu0 %v2057
    %3475 = vmatprep.subr.mxu0 0.0
    %3476 = vmatpush1.xpose.msra.mxu0 %v2060
    %3477 = vmatprep.subr.mxu0 0.0
    %3478 = vmatpush1.xpose.msra.mxu0 %v2063
    %3479 = vmatprep.subr.mxu0 0.0
    %3480 = vmatpush1.xpose.msra.mxu0 %v2066
    %3481 = vmatprep.subr.mxu0 0.0
    %3482 = vmatpush1.xpose.msra.mxu0 %v2069
    %3483 = vmatprep.subr.mxu0 0.0
    %3484 = vmatpush1.xpose.msra.mxu0 %v2072
    %3485 = vmatprep.subr.mxu0 0.0
    %3486 = vmatpush1.xpose.msra.mxu0 %v2075
    %3487 = vmatprep.subr.mxu0 0.0
    %3488 = vmatpush1.xpose.msra.mxu0 %v2078
    %3489 = vmatprep.subr.mxu0 0.0
    %3490 = vmatpush1.xpose.msra.mxu0 %v2081
    %3491 = vmatprep.subr.mxu0 0.0
    %3492 = vmatpush1.xpose.msra.mxu0 %v2084
    %3493 = vmatprep.subr.mxu0 0.0
    %3494 = vmatpush1.xpose.msra.mxu0 %v2087
    %3495 = vmatprep.subr.mxu0 0.0
    %3496 = vmatpush1.xpose.msra.mxu0 %v2090
    %3497 = vmatprep.subr.mxu0 0.0
    %3498 = vmatpush1.xpose.msra.mxu0 %v2093
    %3499 = vmatprep.subr.mxu0 0.0
    %3500 = vmatpush1.xpose.msra.mxu0 %v2096
    %3501 = vmatprep.subr.mxu0 0.0
    %3502 = vmatpush1.xpose.msra.mxu0 %v2099
    %3503 = vmatprep.subr.mxu0 0.0
    %3504 = vmatpush1.xpose.msra.mxu0 %v2102
    %3505 = vmatprep.subr.mxu0 0.0
    %3506 = vmatpush1.xpose.msra.mxu0 %v2105
    %3507 = vmatprep.subr.mxu0 0.0
    %3508 = vmatpush1.xpose.msra.mxu0 %v2108
    %3509 = vmatprep.mubr.f32.mxu0 0.0
    %3510 = vmatmul.mubr.f32.gmra.mrb[0].mxu0 %v563
    %v3511 = vpop.f32.mrb[0].mxu0
    %v3512 = vadd.f32 %v544, %v3511
    %v3513 = vpop.f32.mrb[0].mxu0
    %v3514 = vadd.f32 %v544, %v3513
    %3515 = vmatprep.mubr.f32.mxu0 0.0
    %3516 = vmatmul.mubr.f32.gmra.mrb[0].mxu0 %v566
    %v3517 = vpop.f32.mrb[0].mxu0
    %v3518 = vadd.f32 %v549, %v3517
    %v3519 = vpop.f32.mrb[0].mxu0
    %v3520 = vadd.f32 %v549, %v3519
    %3521 = vmatprep.mubr.f32.mxu0 0.0
    %3522 = vmatmul.mubr.f32.gmra.mrb[0].mxu0 %v569
    %v3523 = vpop.f32.mrb[0].mxu0
    %v3524 = vadd.f32 %v554, %v3523
    %v3525 = vpop.f32.mrb[0].mxu0
    %v3526 = vadd.f32 %v554, %v3525
    %3527 = vmatprep.mubr.f32.mxu0 0.0
    %3528 = vmatmul.mubr.f32.gmra.mrb[0].mxu0 %v572
    %v3529 = vpop.f32.mrb[0].mxu0
    %v3530 = vadd.f32 %v559, %v3529
    %v3531 = vpop.f32.mrb[0].mxu0
    %v3532 = vadd.f32 %v559, %v3531
    %3533 = vdwg.mxu0
    %v3534 = vmax.f32 %v2177, 0.0
    %v3535 = vmax.f32 %v2179, 0.0
    %v3536 = vmax.f32 %v2266, 0.0
    %v3537 = vmax.f32 %v2268, 0.0
    %v3538 = vmax.f32 %v2355, 0.0
    %v3539 = vmax.f32 %v2357, 0.0
    %v3540 = vmax.f32 %v2444, 0.0
    %v3541 = vmax.f32 %v2446, 0.0
    %v3542 = vmax.f32 %v2533, 0.0
    %v3543 = vmax.f32 %v2535, 0.0
    %v3544 = vmax.f32 %v2622, 0.0
    %v3545 = vmax.f32 %v2624, 0.0
    %v3546 = vmax.f32 %v2711, 0.0
    %v3547 = vmax.f32 %v2713, 0.0
    %v3548 = vmax.f32 %v2800, 0.0
    %v3549 = vmax.f32 %v2802, 0.0
    %v3550 = vmax.f32 %v2889, 0.0
    %v3551 = vmax.f32 %v2891, 0.0
    %v3552 = vmax.f32 %v2978, 0.0
    %v3553 = vmax.f32 %v2980, 0.0
    %v3554 = vmax.f32 %v3067, 0.0
    %v3555 = vmax.f32 %v3069, 0.0
    %v3556 = vmax.f32 %v3156, 0.0
    %v3557 = vmax.f32 %v3158, 0.0
    %v3558 = vmax.f32 %v3245, 0.0
    %v3559 = vmax.f32 %v3247, 0.0
    %v3560 = vmax.f32 %v3334, 0.0
    %v3561 = vmax.f32 %v3336, 0.0
    %v3562 = vmax.f32 %v3423, 0.0
    %v3563 = vmax.f32 %v3425, 0.0
    %v3564 = vmax.f32 %v3512, 0.0
    %v3565 = vmax.f32 %v3514, 0.0
    %v3566 = vmax.f32 %v2183, 0.0
    %v3567 = vmax.f32 %v2185, 0.0
    %v3568 = vmax.f32 %v2272, 0.0
    %v3569 = vmax.f32 %v2274, 0.0
    %v3570 = vmax.f32 %v2361, 0.0
    %v3571 = vmax.f32 %v2363, 0.0
    %v3572 = vmax.f32 %v2450, 0.0
    %v3573 = vmax.f32 %v2452, 0.0
    %v3574 = vmax.f32 %v2539, 0.0
    %v3575 = vmax.f32 %v2541, 0.0
    %v3576 = vmax.f32 %v2628, 0.0
    %v3577 = vmax.f32 %v2630, 0.0
    %v3578 = vmax.f32 %v2717, 0.0
    %v3579 = vmax.f32 %v2719, 0.0
    %v3580 = vmax.f32 %v2806, 0.0
    %v3581 = vmax.f32 %v2808, 0.0
    %v3582 = vmax.f32 %v2895, 0.0
    %v3583 = vmax.f32 %v2897, 0.0
    %v3584 = vmax.f32 %v2984, 0.0
    %v3585 = vmax.f32 %v2986, 0.0
    %v3586 = vmax.f32 %v3073, 0.0
    %v3587 = vmax.f32 %v3075, 0.0
    %v3588 = vmax.f32 %v3162, 0.0
    %v3589 = vmax.f32 %v3164, 0.0
    %v3590 = vmax.f32 %v3251, 0.0
    %v3591 = vmax.f32 %v3253, 0.0
    %v3592 = vmax.f32 %v3340, 0.0
    %v3593 = vmax.f32 %v3342, 0.0
    %v3594 = vmax.f32 %v3429, 0.0
    %v3595 = vmax.f32 %v3431, 0.0
    %v3596 = vmax.f32 %v3518, 0.0
    %v3597 = vmax.f32 %v3520, 0.0
    %v3598 = vmax.f32 %v2189, 0.0
    %v3599 = vmax.f32 %v2191, 0.0
    %v3600 = vmax.f32 %v2278, 0.0
    %v3601 = vmax.f32 %v2280, 0.0
    %v3602 = vmax.f32 %v2367, 0.0
    %v3603 = vmax.f32 %v2369, 0.0
    %v3604 = vmax.f32 %v2456, 0.0
    %v3605 = vmax.f32 %v2458, 0.0
    %v3606 = vmax.f32 %v2545, 0.0
    %v3607 = vmax.f32 %v2547, 0.0
    %v3608 = vmax.f32 %v2634, 0.0
    %v3609 = vmax.f32 %v2636, 0.0
    %v3610 = vmax.f32 %v2723, 0.0
    %v3611 = vmax.f32 %v2725, 0.0
    %v3612 = vmax.f32 %v2812, 0.0
    %v3613 = vmax.f32 %v2814, 0.0
    %v3614 = vmax.f32 %v2901, 0.0
    %v3615 = vmax.f32 %v2903, 0.0
    %v3616 = vmax.f32 %v2990, 0.0
    %v3617 = vmax.f32 %v2992, 0.0
    %v3618 = vmax.f32 %v3079, 0.0
    %v3619 = vmax.f32 %v3081, 0.0
    %v3620 = vmax.f32 %v3168, 0.0
    %v3621 = vmax.f32 %v3170, 0.0
    %v3622 = vmax.f32 %v3257, 0.0
    %v3623 = vmax.f32 %v3259, 0.0
    %v3624 = vmax.f32 %v3346, 0.0
    %v3625 = vmax.f32 %v3348, 0.0
    %v3626 = vmax.f32 %v3435, 0.0
    %v3627 = vmax.f32 %v3437, 0.0
    %v3628 = vmax.f32 %v3524, 0.0
    %v3629 = vmax.f32 %v3526, 0.0
    %v3630 = vmax.f32 %v2195, 0.0
    %v3631 = vmax.f32 %v2197, 0.0
    %v3632 = vmax.f32 %v2284, 0.0
    %v3633 = vmax.f32 %v2286, 0.0
    %v3634 = vmax.f32 %v2373, 0.0
    %v3635 = vmax.f32 %v2375, 0.0
    %v3636 = vmax.f32 %v2462, 0.0
    %v3637 = vmax.f32 %v2464, 0.0
    %v3638 = vmax.f32 %v2551, 0.0
    %v3639 = vmax.f32 %v2553, 0.0
    %v3640 = vmax.f32 %v2640, 0.0
    %v3641 = vmax.f32 %v2642, 0.0
    %v3642 = vmax.f32 %v2729, 0.0
    %v3643 = vmax.f32 %v2731, 0.0
    %v3644 = vmax.f32 %v2818, 0.0
    %v3645 = vmax.f32 %v2820, 0.0
    %v3646 = vmax.f32 %v2907, 0.0
    %v3647 = vmax.f32 %v2909, 0.0
    %v3648 = vmax.f32 %v2996, 0.0
    %v3649 = vmax.f32 %v2998, 0.0
    %v3650 = vmax.f32 %v3085, 0.0
    %v3651 = vmax.f32 %v3087, 0.0
    %v3652 = vmax.f32 %v3174, 0.0
    %v3653 = vmax.f32 %v3176, 0.0
    %v3654 = vmax.f32 %v3263, 0.0
    %v3655 = vmax.f32 %v3265, 0.0
    %v3656 = vmax.f32 %v3352, 0.0
    %v3657 = vmax.f32 %v3354, 0.0
    %v3658 = vmax.f32 %v3441, 0.0
    %v3659 = vmax.f32 %v3443, 0.0
    %v3660 = vmax.f32 %v3530, 0.0
    %v3661 = vmax.f32 %v3532, 0.0
    %v3662 = vld [vmem:[%s3] sm:$0xff]
    %v3663 = vld [vmem:[%s3 + $0x8] sm:$0xff]
    %v3664 = vld [vmem:[%s4] sm:$0xff]
    %v3665 = vld [vmem:[%s4 + $0x8] sm:$0xff]
    %3667 = vset.pattern.permute.xlu0 0
    %3668 = vperm.xlu0 %3667, %v3664
    %v3669 = vpop.permute.xlu0 %3668
    %3672 = vset.pattern.permute.xlu0 0
    %3673 = vperm.xlu0 %3672, %v3665
    %v3674 = vpop.permute.xlu0 %3673
    %vm3676 = vcmask 261120
    %v3678 = vsel %vm3676, %v3662, 0
    %v3681 = vsel %vm3676, %v3663, 0
    %3683 = vmatprep.subr.mxu0 %v3535
    %3684 = vmatpush1.msra.mxu0 %v3534
    %3685 = vmatprep.subr.mxu0 %v3567
    %3686 = vmatpush1.msra.mxu0 %v3566
    %3687 = vmatprep.subr.mxu0 %v3599
    %3688 = vmatpush1.msra.mxu0 %v3598
    %3689 = vmatprep.subr.mxu0 %v3631
    %3690 = vmatpush1.msra.mxu0 %v3630
    %3691 = vmatprep.subr.mxu0 0.0
    %3692 = vmatpush1.msra.mxu0 0.0
    %3693 = vmatprep.subr.mxu0 0.0
    %3694 = vmatpush1.msra.mxu0 0.0
    %3695 = vmatprep.subr.mxu0 0.0
    %3696 = vmatpush1.msra.mxu0 0.0
    %3697 = vmatprep.subr.mxu0 0.0
    %3698 = vmatpush1.msra.mxu0 0.0
    %3699 = vmatprep.subr.mxu0 0.0
    %3700 = vmatpush1.msra.mxu0 0.0
    %3701 = vmatprep.subr.mxu0 0.0
    %3702 = vmatpush1.msra.mxu0 0.0
    %3703 = vmatprep.subr.mxu0 0.0
    %3704 = vmatpush1.msra.mxu0 0.0
    %3705 = vmatprep.subr.mxu0 0.0
    %3706 = vmatpush1.msra.mxu0 0.0
    %3707 = vmatprep.subr.mxu0 0.0
    %3708 = vmatpush1.msra.mxu0 0.0
    %3709 = vmatprep.subr.mxu0 0.0
    %3710 = vmatpush1.msra.mxu0 0.0
    %3711 = vmatprep.subr.mxu0 0.0
    %3712 = vmatpush1.msra.mxu0 0.0
    %3713 = vmatprep.subr.mxu0 0.0
    %3714 = vmatpush1.msra.mxu0 0.0
    %3715 = vmatprep.subr.mxu0 0.0
    %3716 = vmatpush1.msra.mxu0 0.0
    %3717 = vmatprep.subr.mxu0 0.0
    %3718 = vmatpush1.msra.mxu0 0.0
    %3719 = vmatprep.subr.mxu0 0.0
    %3720 = vmatpush1.msra.mxu0 0.0
    %3721 = vmatprep.subr.mxu0 0.0
    %3722 = vmatpush1.msra.mxu0 0.0
    %3723 = vmatprep.subr.mxu0 0.0
    %3724 = vmatpush1.msra.mxu0 0.0
    %3725 = vmatprep.subr.mxu0 0.0
    %3726 = vmatpush1.msra.mxu0 0.0
    %3727 = vmatprep.subr.mxu0 0.0
    %3728 = vmatpush1.msra.mxu0 0.0
    %3729 = vmatprep.subr.mxu0 0.0
    %3730 = vmatpush1.msra.mxu0 0.0
    %3731 = vmatprep.subr.mxu0 0.0
    %3732 = vmatpush1.msra.mxu0 0.0
    %3733 = vmatprep.subr.mxu0 0.0
    %3734 = vmatpush1.msra.mxu0 0.0
    %3735 = vmatprep.subr.mxu0 0.0
    %3736 = vmatpush1.msra.mxu0 0.0
    %3737 = vmatprep.subr.mxu0 0.0
    %3738 = vmatpush1.msra.mxu0 0.0
    %3739 = vmatprep.subr.mxu0 0.0
    %3740 = vmatpush1.msra.mxu0 0.0
    %3741 = vmatprep.subr.mxu0 0.0
    %3742 = vmatpush1.msra.mxu0 0.0
    %3743 = vmatprep.subr.mxu0 0.0
    %3744 = vmatpush1.msra.mxu0 0.0
    %3745 = vmatprep.subr.mxu0 0.0
    %3746 = vmatpush1.msra.mxu0 0.0
    %3747 = vmatprep.mubr.f32.mxu0 0.0
    %3748 = vmatmul.mubr.f32.gmra.mrb[0].mxu0 %v3678
    %v3749 = vpop.f32.mrb[0].mxu0
    %v3750 = vadd.f32 %v3669, %v3749
    %v3751 = vpop.f32.mrb[0].mxu0
    %v3752 = vadd.f32 %v3669, %v3751
    %3753 = vmatprep.mubr.f32.mxu0 0.0
    %3754 = vmatmul.mubr.f32.gmra.mrb[0].mxu0 %v3681
    %v3755 = vpop.f32.mrb[0].mxu0
    %v3756 = vadd.f32 %v3674, %v3755
    %v3757 = vpop.f32.mrb[0].mxu0
    %v3758 = vadd.f32 %v3674, %v3757
    %3759 = vdwg.mxu0
    %3760 = vmatprep.subr.mxu0 %v3537
    %3761 = vmatpush1.msra.mxu0 %v3536
    %3762 = vmatprep.subr.mxu0 %v3569
    %3763 = vmatpush1.msra.mxu0 %v3568
    %3764 = vmatprep.subr.mxu0 %v3601
    %3765 = vmatpush1.msra.mxu0 %v3600
    %3766 = vmatprep.subr.mxu0 %v3633
    %3767 = vmatpush1.msra.mxu0 %v3632
    %3768 = vmatprep.subr.mxu0 0.0
    %3769 = vmatpush1.msra.mxu0 0.0
    %3770 = vmatprep.subr.mxu0 0.0
    %3771 = vmatpush1.msra.mxu0 0.0
    %3772 = vmatprep.subr.mxu0 0.0
    %3773 = vmatpush1.msra.mxu0 0.0
    %3774 = vmatprep.subr.mxu0 0.0
    %3775 = vmatpush1.msra.mxu0 0.0
    %3776 = vmatprep.subr.mxu0 0.0
    %3777 = vmatpush1.msra.mxu0 0.0
    %3778 = vmatprep.subr.mxu0 0.0
    %3779 = vmatpush1.msra.mxu0 0.0
    %3780 = vmatprep.subr.mxu0 0.0
    %3781 = vmatpush1.msra.mxu0 0.0
    %3782 = vmatprep.subr.mxu0 0.0
    %3783 = vmatpush1.msra.mxu0 0.0
    %3784 = vmatprep.subr.mxu0 0.0
    %3785 = vmatpush1.msra.mxu0 0.0
    %3786 = vmatprep.subr.mxu0 0.0
    %3787 = vmatpush1.msra.mxu0 0.0
    %3788 = vmatprep.subr.mxu0 0.0
    %3789 = vmatpush1.msra.mxu0 0.0
    %3790 = vmatprep.subr.mxu0 0.0
    %3791 = vmatpush1.msra.mxu0 0.0
    %3792 = vmatprep.subr.mxu0 0.0
    %3793 = vmatpush1.msra.mxu0 0.0
    %3794 = vmatprep.subr.mxu0 0.0
    %3795 = vmatpush1.msra.mxu0 0.0
    %3796 = vmatprep.subr.mxu0 0.0
    %3797 = vmatpush1.msra.mxu0 0.0
    %3798 = vmatprep.subr.mxu0 0.0
    %3799 = vmatpush1.msra.mxu0 0.0
    %3800 = vmatprep.subr.mxu0 0.0
    %3801 = vmatpush1.msra.mxu0 0.0
    %3802 = vmatprep.subr.mxu0 0.0
    %3803 = vmatpush1.msra.mxu0 0.0
    %3804 = vmatprep.subr.mxu0 0.0
    %3805 = vmatpush1.msra.mxu0 0.0
    %3806 = vmatprep.subr.mxu0 0.0
    %3807 = vmatpush1.msra.mxu0 0.0
    %3808 = vmatprep.subr.mxu0 0.0
    %3809 = vmatpush1.msra.mxu0 0.0
    %3810 = vmatprep.subr.mxu0 0.0
    %3811 = vmatpush1.msra.mxu0 0.0
    %3812 = vmatprep.subr.mxu0 0.0
    %3813 = vmatpush1.msra.mxu0 0.0
    %3814 = vmatprep.subr.mxu0 0.0
    %3815 = vmatpush1.msra.mxu0 0.0
    %3816 = vmatprep.subr.mxu0 0.0
    %3817 = vmatpush1.msra.mxu0 0.0
    %3818 = vmatprep.subr.mxu0 0.0
    %3819 = vmatpush1.msra.mxu0 0.0
    %3820 = vmatprep.subr.mxu0 0.0
    %3821 = vmatpush1.msra.mxu0 0.0
    %3822 = vmatprep.subr.mxu0 0.0
    %3823 = vmatpush1.msra.mxu0 0.0
    %3824 = vmatprep.mubr.f32.mxu0 0.0
    %3825 = vmatmul.mubr.f32.gmra.mrb[0].mxu0 %v3678
    %v3826 = vpop.f32.mrb[0].mxu0
    %v3827 = vadd.f32 %v3669, %v3826
    %v3828 = vpop.f32.mrb[0].mxu0
    %v3829 = vadd.f32 %v3669, %v3828
    %3830 = vmatprep.mubr.f32.mxu0 0.0
    %3831 = vmatmul.mubr.f32.gmra.mrb[0].mxu0 %v3681
    %v3832 = vpop.f32.mrb[0].mxu0
    %v3833 = vadd.f32 %v3674, %v3832
    %v3834 = vpop.f32.mrb[0].mxu0
    %v3835 = vadd.f32 %v3674, %v3834
    %3836 = vdwg.mxu0
    %3837 = vmatprep.subr.mxu0 %v3539
    %3838 = vmatpush1.msra.mxu0 %v3538
    %3839 = vmatprep.subr.mxu0 %v3571
    %3840 = vmatpush1.msra.mxu0 %v3570
    %3841 = vmatprep.subr.mxu0 %v3603
    %3842 = vmatpush1.msra.mxu0 %v3602
    %3843 = vmatprep.subr.mxu0 %v3635
    %3844 = vmatpush1.msra.mxu0 %v3634
    %3845 = vmatprep.subr.mxu0 0.0
    %3846 = vmatpush1.msra.mxu0 0.0
    %3847 = vmatprep.subr.mxu0 0.0
    %3848 = vmatpush1.msra.mxu0 0.0
    %3849 = vmatprep.subr.mxu0 0.0
    %3850 = vmatpush1.msra.mxu0 0.0
    %3851 = vmatprep.subr.mxu0 0.0
    %3852 = vmatpush1.msra.mxu0 0.0
    %3853 = vmatprep.subr.mxu0 0.0
    %3854 = vmatpush1.msra.mxu0 0.0
    %3855 = vmatprep.subr.mxu0 0.0
    %3856 = vmatpush1.msra.mxu0 0.0
    %3857 = vmatprep.subr.mxu0 0.0
    %3858 = vmatpush1.msra.mxu0 0.0
    %3859 = vmatprep.subr.mxu0 0.0
    %3860 = vmatpush1.msra.mxu0 0.0
    %3861 = vmatprep.subr.mxu0 0.0
    %3862 = vmatpush1.msra.mxu0 0.0
    %3863 = vmatprep.subr.mxu0 0.0
    %3864 = vmatpush1.msra.mxu0 0.0
    %3865 = vmatprep.subr.mxu0 0.0
    %3866 = vmatpush1.msra.mxu0 0.0
    %3867 = vmatprep.subr.mxu0 0.0
    %3868 = vmatpush1.msra.mxu0 0.0
    %3869 = vmatprep.subr.mxu0 0.0
    %3870 = vmatpush1.msra.mxu0 0.0
    %3871 = vmatprep.subr.mxu0 0.0
    %3872 = vmatpush1.msra.mxu0 0.0
    %3873 = vmatprep.subr.mxu0 0.0
    %3874 = vmatpush1.msra.mxu0 0.0
    %3875 = vmatprep.subr.mxu0 0.0
    %3876 = vmatpush1.msra.mxu0 0.0
    %3877 = vmatprep.subr.mxu0 0.0
    %3878 = vmatpush1.msra.mxu0 0.0
    %3879 = vmatprep.subr.mxu0 0.0
    %3880 = vmatpush1.msra.mxu0 0.0
    %3881 = vmatprep.subr.mxu0 0.0
    %3882 = vmatpush1.msra.mxu0 0.0
    %3883 = vmatprep.subr.mxu0 0.0
    %3884 = vmatpush1.msra.mxu0 0.0
    %3885 = vmatprep.subr.mxu0 0.0
    %3886 = vmatpush1.msra.mxu0 0.0
    %3887 = vmatprep.subr.mxu0 0.0
    %3888 = vmatpush1.msra.mxu0 0.0
    %3889 = vmatprep.subr.mxu0 0.0
    %3890 = vmatpush1.msra.mxu0 0.0
    %3891 = vmatprep.subr.mxu0 0.0
    %3892 = vmatpush1.msra.mxu0 0.0
    %3893 = vmatprep.subr.mxu0 0.0
    %3894 = vmatpush1.msra.mxu0 0.0
    %3895 = vmatprep.subr.mxu0 0.0
    %3896 = vmatpush1.msra.mxu0 0.0
    %3897 = vmatprep.subr.mxu0 0.0
    %3898 = vmatpush1.msra.mxu0 0.0
    %3899 = vmatprep.subr.mxu0 0.0
    %3900 = vmatpush1.msra.mxu0 0.0
    %3901 = vmatprep.mubr.f32.mxu0 0.0
    %3902 = vmatmul.mubr.f32.gmra.mrb[0].mxu0 %v3678
    %v3903 = vpop.f32.mrb[0].mxu0
    %v3904 = vadd.f32 %v3669, %v3903
    %v3905 = vpop.f32.mrb[0].mxu0
    %v3906 = vadd.f32 %v3669, %v3905
    %3907 = vmatprep.mubr.f32.mxu0 0.0
    %3908 = vmatmul.mubr.f32.gmra.mrb[0].mxu0 %v3681
    %v3909 = vpop.f32.mrb[0].mxu0
    %v3910 = vadd.f32 %v3674, %v3909
    %v3911 = vpop.f32.mrb[0].mxu0
    %v3912 = vadd.f32 %v3674, %v3911
    %3913 = vdwg.mxu0
    %3914 = vmatprep.subr.mxu0 %v3541
    %3915 = vmatpush1.msra.mxu0 %v3540
    %3916 = vmatprep.subr.mxu0 %v3573
    %3917 = vmatpush1.msra.mxu0 %v3572
    %3918 = vmatprep.subr.mxu0 %v3605
    %3919 = vmatpush1.msra.mxu0 %v3604
    %3920 = vmatprep.subr.mxu0 %v3637
    %3921 = vmatpush1.msra.mxu0 %v3636
    %3922 = vmatprep.subr.mxu0 0.0
    %3923 = vmatpush1.msra.mxu0 0.0
    %3924 = vmatprep.subr.mxu0 0.0
    %3925 = vmatpush1.msra.mxu0 0.0
    %3926 = vmatprep.subr.mxu0 0.0
    %3927 = vmatpush1.msra.mxu0 0.0
    %3928 = vmatprep.subr.mxu0 0.0
    %3929 = vmatpush1.msra.mxu0 0.0
    %3930 = vmatprep.subr.mxu0 0.0
    %3931 = vmatpush1.msra.mxu0 0.0
    %3932 = vmatprep.subr.mxu0 0.0
    %3933 = vmatpush1.msra.mxu0 0.0
    %3934 = vmatprep.subr.mxu0 0.0
    %3935 = vmatpush1.msra.mxu0 0.0
    %3936 = vmatprep.subr.mxu0 0.0
    %3937 = vmatpush1.msra.mxu0 0.0
    %3938 = vmatprep.subr.mxu0 0.0
    %3939 = vmatpush1.msra.mxu0 0.0
    %3940 = vmatprep.subr.mxu0 0.0
    %3941 = vmatpush1.msra.mxu0 0.0
    %3942 = vmatprep.subr.mxu0 0.0
    %3943 = vmatpush1.msra.mxu0 0.0
    %3944 = vmatprep.subr.mxu0 0.0
    %3945 = vmatpush1.msra.mxu0 0.0
    %3946 = vmatprep.subr.mxu0 0.0
    %3947 = vmatpush1.msra.mxu0 0.0
    %3948 = vmatprep.subr.mxu0 0.0
    %3949 = vmatpush1.msra.mxu0 0.0
    %3950 = vmatprep.subr.mxu0 0.0
    %3951 = vmatpush1.msra.mxu0 0.0
    %3952 = vmatprep.subr.mxu0 0.0
    %3953 = vmatpush1.msra.mxu0 0.0
    %3954 = vmatprep.subr.mxu0 0.0
    %3955 = vmatpush1.msra.mxu0 0.0
    %3956 = vmatprep.subr.mxu0 0.0
    %3957 = vmatpush1.msra.mxu0 0.0
    %3958 = vmatprep.subr.mxu0 0.0
    %3959 = vmatpush1.msra.mxu0 0.0
    %3960 = vmatprep.subr.mxu0 0.0
    %3961 = vmatpush1.msra.mxu0 0.0
    %3962 = vmatprep.subr.mxu0 0.0
    %3963 = vmatpush1.msra.mxu0 0.0
    %3964 = vmatprep.subr.mxu0 0.0
    %3965 = vmatpush1.msra.mxu0 0.0
    %3966 = vmatprep.subr.mxu0 0.0
    %3967 = vmatpush1.msra.mxu0 0.0
    %3968 = vmatprep.subr.mxu0 0.0
    %3969 = vmatpush1.msra.mxu0 0.0
    %3970 = vmatprep.subr.mxu0 0.0
    %3971 = vmatpush1.msra.mxu0 0.0
    %3972 = vmatprep.subr.mxu0 0.0
    %3973 = vmatpush1.msra.mxu0 0.0
    %3974 = vmatprep.subr.mxu0 0.0
    %3975 = vmatpush1.msra.mxu0 0.0
    %3976 = vmatprep.subr.mxu0 0.0
    %3977 = vmatpush1.msra.mxu0 0.0
    %3978 = vmatprep.mubr.f32.mxu0 0.0
    %3979 = vmatmul.mubr.f32.gmra.mrb[0].mxu0 %v3678
    %v3980 = vpop.f32.mrb[0].mxu0
    %v3981 = vadd.f32 %v3669, %v3980
    %v3982 = vpop.f32.mrb[0].mxu0
    %v3983 = vadd.f32 %v3669, %v3982
    %3984 = vmatprep.mubr.f32.mxu0 0.0
    %3985 = vmatmul.mubr.f32.gmra.mrb[0].mxu0 %v3681
    %v3986 = vpop.f32.mrb[0].mxu0
    %v3987 = vadd.f32 %v3674, %v3986
    %v3988 = vpop.f32.mrb[0].mxu0
    %v3989 = vadd.f32 %v3674, %v3988
    %3990 = vdwg.mxu0
    %3991 = vmatprep.subr.mxu0 %v3543
    %3992 = vmatpush1.msra.mxu0 %v3542
    %3993 = vmatprep.subr.mxu0 %v3575
    %3994 = vmatpush1.msra.mxu0 %v3574
    %3995 = vmatprep.subr.mxu0 %v3607
    %3996 = vmatpush1.msra.mxu0 %v3606
    %3997 = vmatprep.subr.mxu0 %v3639
    %3998 = vmatpush1.msra.mxu0 %v3638
    %3999 = vmatprep.subr.mxu0 0.0
    %4000 = vmatpush1.msra.mxu0 0.0
    %4001 = vmatprep.subr.mxu0 0.0
    %4002 = vmatpush1.msra.mxu0 0.0
    %4003 = vmatprep.subr.mxu0 0.0
    %4004 = vmatpush1.msra.mxu0 0.0
    %4005 = vmatprep.subr.mxu0 0.0
    %4006 = vmatpush1.msra.mxu0 0.0
    %4007 = vmatprep.subr.mxu0 0.0
    %4008 = vmatpush1.msra.mxu0 0.0
    %4009 = vmatprep.subr.mxu0 0.0
    %4010 = vmatpush1.msra.mxu0 0.0
    %4011 = vmatprep.subr.mxu0 0.0
    %4012 = vmatpush1.msra.mxu0 0.0
    %4013 = vmatprep.subr.mxu0 0.0
    %4014 = vmatpush1.msra.mxu0 0.0
    %4015 = vmatprep.subr.mxu0 0.0
    %4016 = vmatpush1.msra.mxu0 0.0
    %4017 = vmatprep.subr.mxu0 0.0
    %4018 = vmatpush1.msra.mxu0 0.0
    %4019 = vmatprep.subr.mxu0 0.0
    %4020 = vmatpush1.msra.mxu0 0.0
    %4021 = vmatprep.subr.mxu0 0.0
    %4022 = vmatpush1.msra.mxu0 0.0
    %4023 = vmatprep.subr.mxu0 0.0
    %4024 = vmatpush1.msra.mxu0 0.0
    %4025 = vmatprep.subr.mxu0 0.0
    %4026 = vmatpush1.msra.mxu0 0.0
    %4027 = vmatprep.subr.mxu0 0.0
    %4028 = vmatpush1.msra.mxu0 0.0
    %4029 = vmatprep.subr.mxu0 0.0
    %4030 = vmatpush1.msra.mxu0 0.0
    %4031 = vmatprep.subr.mxu0 0.0
    %4032 = vmatpush1.msra.mxu0 0.0
    %4033 = vmatprep.subr.mxu0 0.0
    %4034 = vmatpush1.msra.mxu0 0.0
    %4035 = vmatprep.subr.mxu0 0.0
    %4036 = vmatpush1.msra.mxu0 0.0
    %4037 = vmatprep.subr.mxu0 0.0
    %4038 = vmatpush1.msra.mxu0 0.0
    %4039 = vmatprep.subr.mxu0 0.0
    %4040 = vmatpush1.msra.mxu0 0.0
    %4041 = vmatprep.subr.mxu0 0.0
    %4042 = vmatpush1.msra.mxu0 0.0
    %4043 = vmatprep.subr.mxu0 0.0
    %4044 = vmatpush1.msra.mxu0 0.0
    %4045 = vmatprep.subr.mxu0 0.0
    %4046 = vmatpush1.msra.mxu0 0.0
    %4047 = vmatprep.subr.mxu0 0.0
    %4048 = vmatpush1.msra.mxu0 0.0
    %4049 = vmatprep.subr.mxu0 0.0
    %4050 = vmatpush1.msra.mxu0 0.0
    %4051 = vmatprep.subr.mxu0 0.0
    %4052 = vmatpush1.msra.mxu0 0.0
    %4053 = vmatprep.subr.mxu0 0.0
    %4054 = vmatpush1.msra.mxu0 0.0
    %4055 = vmatprep.mubr.f32.mxu0 0.0
    %4056 = vmatmul.mubr.f32.gmra.mrb[0].mxu0 %v3678
    %v4057 = vpop.f32.mrb[0].mxu0
    %v4058 = vadd.f32 %v3669, %v4057
    %v4059 = vpop.f32.mrb[0].mxu0
    %v4060 = vadd.f32 %v3669, %v4059
    %4061 = vmatprep.mubr.f32.mxu0 0.0
    %4062 = vmatmul.mubr.f32.gmra.mrb[0].mxu0 %v3681
    %v4063 = vpop.f32.mrb[0].mxu0
    %v4064 = vadd.f32 %v3674, %v4063
    %v4065 = vpop.f32.mrb[0].mxu0
    %v4066 = vadd.f32 %v3674, %v4065
    %4067 = vdwg.mxu0
    %4068 = vmatprep.subr.mxu0 %v3545
    %4069 = vmatpush1.msra.mxu0 %v3544
    %4070 = vmatprep.subr.mxu0 %v3577
    %4071 = vmatpush1.msra.mxu0 %v3576
    %4072 = vmatprep.subr.mxu0 %v3609
    %4073 = vmatpush1.msra.mxu0 %v3608
    %4074 = vmatprep.subr.mxu0 %v3641
    %4075 = vmatpush1.msra.mxu0 %v3640
    %4076 = vmatprep.subr.mxu0 0.0
    %4077 = vmatpush1.msra.mxu0 0.0
    %4078 = vmatprep.subr.mxu0 0.0
    %4079 = vmatpush1.msra.mxu0 0.0
    %4080 = vmatprep.subr.mxu0 0.0
    %4081 = vmatpush1.msra.mxu0 0.0
    %4082 = vmatprep.subr.mxu0 0.0
    %4083 = vmatpush1.msra.mxu0 0.0
    %4084 = vmatprep.subr.mxu0 0.0
    %4085 = vmatpush1.msra.mxu0 0.0
    %4086 = vmatprep.subr.mxu0 0.0
    %4087 = vmatpush1.msra.mxu0 0.0
    %4088 = vmatprep.subr.mxu0 0.0
    %4089 = vmatpush1.msra.mxu0 0.0
    %4090 = vmatprep.subr.mxu0 0.0
    %4091 = vmatpush1.msra.mxu0 0.0
    %4092 = vmatprep.subr.mxu0 0.0
    %4093 = vmatpush1.msra.mxu0 0.0
    %4094 = vmatprep.subr.mxu0 0.0
    %4095 = vmatpush1.msra.mxu0 0.0
    %4096 = vmatprep.subr.mxu0 0.0
    %4097 = vmatpush1.msra.mxu0 0.0
    %4098 = vmatprep.subr.mxu0 0.0
    %4099 = vmatpush1.msra.mxu0 0.0
    %4100 = vmatprep.subr.mxu0 0.0
    %4101 = vmatpush1.msra.mxu0 0.0
    %4102 = vmatprep.subr.mxu0 0.0
    %4103 = vmatpush1.msra.mxu0 0.0
    %4104 = vmatprep.subr.mxu0 0.0
    %4105 = vmatpush1.msra.mxu0 0.0
    %4106 = vmatprep.subr.mxu0 0.0
    %4107 = vmatpush1.msra.mxu0 0.0
    %4108 = vmatprep.subr.mxu0 0.0
    %4109 = vmatpush1.msra.mxu0 0.0
    %4110 = vmatprep.subr.mxu0 0.0
    %4111 = vmatpush1.msra.mxu0 0.0
    %4112 = vmatprep.subr.mxu0 0.0
    %4113 = vmatpush1.msra.mxu0 0.0
    %4114 = vmatprep.subr.mxu0 0.0
    %4115 = vmatpush1.msra.mxu0 0.0
    %4116 = vmatprep.subr.mxu0 0.0
    %4117 = vmatpush1.msra.mxu0 0.0
    %4118 = vmatprep.subr.mxu0 0.0
    %4119 = vmatpush1.msra.mxu0 0.0
    %4120 = vmatprep.subr.mxu0 0.0
    %4121 = vmatpush1.msra.mxu0 0.0
    %4122 = vmatprep.subr.mxu0 0.0
    %4123 = vmatpush1.msra.mxu0 0.0
    %4124 = vmatprep.subr.mxu0 0.0
    %4125 = vmatpush1.msra.mxu0 0.0
    %4126 = vmatprep.subr.mxu0 0.0
    %4127 = vmatpush1.msra.mxu0 0.0
    %4128 = vmatprep.subr.mxu0 0.0
    %4129 = vmatpush1.msra.mxu0 0.0
    %4130 = vmatprep.subr.mxu0 0.0
    %4131 = vmatpush1.msra.mxu0 0.0
    %4132 = vmatprep.mubr.f32.mxu0 0.0
    %4133 = vmatmul.mubr.f32.gmra.mrb[0].mxu0 %v3678
    %v4134 = vpop.f32.mrb[0].mxu0
    %v4135 = vadd.f32 %v3669, %v4134
    %v4136 = vpop.f32.mrb[0].mxu0
    %v4137 = vadd.f32 %v3669, %v4136
    %4138 = vmatprep.mubr.f32.mxu0 0.0
    %4139 = vmatmul.mubr.f32.gmra.mrb[0].mxu0 %v3681
    %v4140 = vpop.f32.mrb[0].mxu0
    %v4141 = vadd.f32 %v3674, %v4140
    %v4142 = vpop.f32.mrb[0].mxu0
    %v4143 = vadd.f32 %v3674, %v4142
    %4144 = vdwg.mxu0
    %4145 = vmatprep.subr.mxu0 %v3547
    %4146 = vmatpush1.msra.mxu0 %v3546
    %4147 = vmatprep.subr.mxu0 %v3579
    %4148 = vmatpush1.msra.mxu0 %v3578
    %4149 = vmatprep.subr.mxu0 %v3611
    %4150 = vmatpush1.msra.mxu0 %v3610
    %4151 = vmatprep.subr.mxu0 %v3643
    %4152 = vmatpush1.msra.mxu0 %v3642
    %4153 = vmatprep.subr.mxu0 0.0
    %4154 = vmatpush1.msra.mxu0 0.0
    %4155 = vmatprep.subr.mxu0 0.0
    %4156 = vmatpush1.msra.mxu0 0.0
    %4157 = vmatprep.subr.mxu0 0.0
    %4158 = vmatpush1.msra.mxu0 0.0
    %4159 = vmatprep.subr.mxu0 0.0
    %4160 = vmatpush1.msra.mxu0 0.0
    %4161 = vmatprep.subr.mxu0 0.0
    %4162 = vmatpush1.msra.mxu0 0.0
    %4163 = vmatprep.subr.mxu0 0.0
    %4164 = vmatpush1.msra.mxu0 0.0
    %4165 = vmatprep.subr.mxu0 0.0
    %4166 = vmatpush1.msra.mxu0 0.0
    %4167 = vmatprep.subr.mxu0 0.0
    %4168 = vmatpush1.msra.mxu0 0.0
    %4169 = vmatprep.subr.mxu0 0.0
    %4170 = vmatpush1.msra.mxu0 0.0
    %4171 = vmatprep.subr.mxu0 0.0
    %4172 = vmatpush1.msra.mxu0 0.0
    %4173 = vmatprep.subr.mxu0 0.0
    %4174 = vmatpush1.msra.mxu0 0.0
    %4175 = vmatprep.subr.mxu0 0.0
    %4176 = vmatpush1.msra.mxu0 0.0
    %4177 = vmatprep.subr.mxu0 0.0
    %4178 = vmatpush1.msra.mxu0 0.0
    %4179 = vmatprep.subr.mxu0 0.0
    %4180 = vmatpush1.msra.mxu0 0.0
    %4181 = vmatprep.subr.mxu0 0.0
    %4182 = vmatpush1.msra.mxu0 0.0
    %4183 = vmatprep.subr.mxu0 0.0
    %4184 = vmatpush1.msra.mxu0 0.0
    %4185 = vmatprep.subr.mxu0 0.0
    %4186 = vmatpush1.msra.mxu0 0.0
    %4187 = vmatprep.subr.mxu0 0.0
    %4188 = vmatpush1.msra.mxu0 0.0
    %4189 = vmatprep.subr.mxu0 0.0
    %4190 = vmatpush1.msra.mxu0 0.0
    %4191 = vmatprep.subr.mxu0 0.0
    %4192 = vmatpush1.msra.mxu0 0.0
    %4193 = vmatprep.subr.mxu0 0.0
    %4194 = vmatpush1.msra.mxu0 0.0
    %4195 = vmatprep.subr.mxu0 0.0
    %4196 = vmatpush1.msra.mxu0 0.0
    %4197 = vmatprep.subr.mxu0 0.0
    %4198 = vmatpush1.msra.mxu0 0.0
    %4199 = vmatprep.subr.mxu0 0.0
    %4200 = vmatpush1.msra.mxu0 0.0
    %4201 = vmatprep.subr.mxu0 0.0
    %4202 = vmatpush1.msra.mxu0 0.0
    %4203 = vmatprep.subr.mxu0 0.0
    %4204 = vmatpush1.msra.mxu0 0.0
    %4205 = vmatprep.subr.mxu0 0.0
    %4206 = vmatpush1.msra.mxu0 0.0
    %4207 = vmatprep.subr.mxu0 0.0
    %4208 = vmatpush1.msra.mxu0 0.0
    %4209 = vmatprep.mubr.f32.mxu0 0.0
    %4210 = vmatmul.mubr.f32.gmra.mrb[0].mxu0 %v3678
    %v4211 = vpop.f32.mrb[0].mxu0
    %v4212 = vadd.f32 %v3669, %v4211
    %v4213 = vpop.f32.mrb[0].mxu0
    %v4214 = vadd.f32 %v3669, %v4213
    %4215 = vmatprep.mubr.f32.mxu0 0.0
    %4216 = vmatmul.mubr.f32.gmra.mrb[0].mxu0 %v3681
    %v4217 = vpop.f32.mrb[0].mxu0
    %v4218 = vadd.f32 %v3674, %v4217
    %v4219 = vpop.f32.mrb[0].mxu0
    %v4220 = vadd.f32 %v3674, %v4219
    %4221 = vdwg.mxu0
    %4222 = vmatprep.subr.mxu0 %v3549
    %4223 = vmatpush1.msra.mxu0 %v3548
    %4224 = vmatprep.subr.mxu0 %v3581
    %4225 = vmatpush1.msra.mxu0 %v3580
    %4226 = vmatprep.subr.mxu0 %v3613
    %4227 = vmatpush1.msra.mxu0 %v3612
    %4228 = vmatprep.subr.mxu0 %v3645
    %4229 = vmatpush1.msra.mxu0 %v3644
    %4230 = vmatprep.subr.mxu0 0.0
    %4231 = vmatpush1.msra.mxu0 0.0
    %4232 = vmatprep.subr.mxu0 0.0
    %4233 = vmatpush1.msra.mxu0 0.0
    %4234 = vmatprep.subr.mxu0 0.0
    %4235 = vmatpush1.msra.mxu0 0.0
    %4236 = vmatprep.subr.mxu0 0.0
    %4237 = vmatpush1.msra.mxu0 0.0
    %4238 = vmatprep.subr.mxu0 0.0
    %4239 = vmatpush1.msra.mxu0 0.0
    %4240 = vmatprep.subr.mxu0 0.0
    %4241 = vmatpush1.msra.mxu0 0.0
    %4242 = vmatprep.subr.mxu0 0.0
    %4243 = vmatpush1.msra.mxu0 0.0
    %4244 = vmatprep.subr.mxu0 0.0
    %4245 = vmatpush1.msra.mxu0 0.0
    %4246 = vmatprep.subr.mxu0 0.0
    %4247 = vmatpush1.msra.mxu0 0.0
    %4248 = vmatprep.subr.mxu0 0.0
    %4249 = vmatpush1.msra.mxu0 0.0
    %4250 = vmatprep.subr.mxu0 0.0
    %4251 = vmatpush1.msra.mxu0 0.0
    %4252 = vmatprep.subr.mxu0 0.0
    %4253 = vmatpush1.msra.mxu0 0.0
    %4254 = vmatprep.subr.mxu0 0.0
    %4255 = vmatpush1.msra.mxu0 0.0
    %4256 = vmatprep.subr.mxu0 0.0
    %4257 = vmatpush1.msra.mxu0 0.0
    %4258 = vmatprep.subr.mxu0 0.0
    %4259 = vmatpush1.msra.mxu0 0.0
    %4260 = vmatprep.subr.mxu0 0.0
    %4261 = vmatpush1.msra.mxu0 0.0
    %4262 = vmatprep.subr.mxu0 0.0
    %4263 = vmatpush1.msra.mxu0 0.0
    %4264 = vmatprep.subr.mxu0 0.0
    %4265 = vmatpush1.msra.mxu0 0.0
    %4266 = vmatprep.subr.mxu0 0.0
    %4267 = vmatpush1.msra.mxu0 0.0
    %4268 = vmatprep.subr.mxu0 0.0
    %4269 = vmatpush1.msra.mxu0 0.0
    %4270 = vmatprep.subr.mxu0 0.0
    %4271 = vmatpush1.msra.mxu0 0.0
    %4272 = vmatprep.subr.mxu0 0.0
    %4273 = vmatpush1.msra.mxu0 0.0
    %4274 = vmatprep.subr.mxu0 0.0
    %4275 = vmatpush1.msra.mxu0 0.0
    %4276 = vmatprep.subr.mxu0 0.0
    %4277 = vmatpush1.msra.mxu0 0.0
    %4278 = vmatprep.subr.mxu0 0.0
    %4279 = vmatpush1.msra.mxu0 0.0
    %4280 = vmatprep.subr.mxu0 0.0
    %4281 = vmatpush1.msra.mxu0 0.0
    %4282 = vmatprep.subr.mxu0 0.0
    %4283 = vmatpush1.msra.mxu0 0.0
    %4284 = vmatprep.subr.mxu0 0.0
    %4285 = vmatpush1.msra.mxu0 0.0
    %4286 = vmatprep.mubr.f32.mxu0 0.0
    %4287 = vmatmul.mubr.f32.gmra.mrb[0].mxu0 %v3678
    %v4288 = vpop.f32.mrb[0].mxu0
    %v4289 = vadd.f32 %v3669, %v4288
    %v4290 = vpop.f32.mrb[0].mxu0
    %v4291 = vadd.f32 %v3669, %v4290
    %4292 = vmatprep.mubr.f32.mxu0 0.0
    %4293 = vmatmul.mubr.f32.gmra.mrb[0].mxu0 %v3681
    %v4294 = vpop.f32.mrb[0].mxu0
    %v4295 = vadd.f32 %v3674, %v4294
    %v4296 = vpop.f32.mrb[0].mxu0
    %v4297 = vadd.f32 %v3674, %v4296
    %4298 = vdwg.mxu0
    %4299 = vmatprep.subr.mxu0 %v3551
    %4300 = vmatpush1.msra.mxu0 %v3550
    %4301 = vmatprep.subr.mxu0 %v3583
    %4302 = vmatpush1.msra.mxu0 %v3582
    %4303 = vmatprep.subr.mxu0 %v3615
    %4304 = vmatpush1.msra.mxu0 %v3614
    %4305 = vmatprep.subr.mxu0 %v3647
    %4306 = vmatpush1.msra.mxu0 %v3646
    %4307 = vmatprep.subr.mxu0 0.0
    %4308 = vmatpush1.msra.mxu0 0.0
    %4309 = vmatprep.subr.mxu0 0.0
    %4310 = vmatpush1.msra.mxu0 0.0
    %4311 = vmatprep.subr.mxu0 0.0
    %4312 = vmatpush1.msra.mxu0 0.0
    %4313 = vmatprep.subr.mxu0 0.0
    %4314 = vmatpush1.msra.mxu0 0.0
    %4315 = vmatprep.subr.mxu0 0.0
    %4316 = vmatpush1.msra.mxu0 0.0
    %4317 = vmatprep.subr.mxu0 0.0
    %4318 = vmatpush1.msra.mxu0 0.0
    %4319 = vmatprep.subr.mxu0 0.0
    %4320 = vmatpush1.msra.mxu0 0.0
    %4321 = vmatprep.subr.mxu0 0.0
    %4322 = vmatpush1.msra.mxu0 0.0
    %4323 = vmatprep.subr.mxu0 0.0
    %4324 = vmatpush1.msra.mxu0 0.0
    %4325 = vmatprep.subr.mxu0 0.0
    %4326 = vmatpush1.msra.mxu0 0.0
    %4327 = vmatprep.subr.mxu0 0.0
    %4328 = vmatpush1.msra.mxu0 0.0
    %4329 = vmatprep.subr.mxu0 0.0
    %4330 = vmatpush1.msra.mxu0 0.0
    %4331 = vmatprep.subr.mxu0 0.0
    %4332 = vmatpush1.msra.mxu0 0.0
    %4333 = vmatprep.subr.mxu0 0.0
    %4334 = vmatpush1.msra.mxu0 0.0
    %4335 = vmatprep.subr.mxu0 0.0
    %4336 = vmatpush1.msra.mxu0 0.0
    %4337 = vmatprep.subr.mxu0 0.0
    %4338 = vmatpush1.msra.mxu0 0.0
    %4339 = vmatprep.subr.mxu0 0.0
    %4340 = vmatpush1.msra.mxu0 0.0
    %4341 = vmatprep.subr.mxu0 0.0
    %4342 = vmatpush1.msra.mxu0 0.0
    %4343 = vmatprep.subr.mxu0 0.0
    %4344 = vmatpush1.msra.mxu0 0.0
    %4345 = vmatprep.subr.mxu0 0.0
    %4346 = vmatpush1.msra.mxu0 0.0
    %4347 = vmatprep.subr.mxu0 0.0
    %4348 = vmatpush1.msra.mxu0 0.0
    %4349 = vmatprep.subr.mxu0 0.0
    %4350 = vmatpush1.msra.mxu0 0.0
    %4351 = vmatprep.subr.mxu0 0.0
    %4352 = vmatpush1.msra.mxu0 0.0
    %4353 = vmatprep.subr.mxu0 0.0
    %4354 = vmatpush1.msra.mxu0 0.0
    %4355 = vmatprep.subr.mxu0 0.0
    %4356 = vmatpush1.msra.mxu0 0.0
    %4357 = vmatprep.subr.mxu0 0.0
    %4358 = vmatpush1.msra.mxu0 0.0
    %4359 = vmatprep.subr.mxu0 0.0
    %4360 = vmatpush1.msra.mxu0 0.0
    %4361 = vmatprep.subr.mxu0 0.0
    %4362 = vmatpush1.msra.mxu0 0.0
    %4363 = vmatprep.mubr.f32.mxu0 0.0
    %4364 = vmatmul.mubr.f32.gmra.mrb[0].mxu0 %v3678
    %v4365 = vpop.f32.mrb[0].mxu0
    %v4366 = vadd.f32 %v3669, %v4365
    %v4367 = vpop.f32.mrb[0].mxu0
    %v4368 = vadd.f32 %v3669, %v4367
    %4369 = vmatprep.mubr.f32.mxu0 0.0
    %4370 = vmatmul.mubr.f32.gmra.mrb[0].mxu0 %v3681
    %v4371 = vpop.f32.mrb[0].mxu0
    %v4372 = vadd.f32 %v3674, %v4371
    %v4373 = vpop.f32.mrb[0].mxu0
    %v4374 = vadd.f32 %v3674, %v4373
    %4375 = vdwg.mxu0
    %4376 = vmatprep.subr.mxu0 %v3553
    %4377 = vmatpush1.msra.mxu0 %v3552
    %4378 = vmatprep.subr.mxu0 %v3585
    %4379 = vmatpush1.msra.mxu0 %v3584
    %4380 = vmatprep.subr.mxu0 %v3617
    %4381 = vmatpush1.msra.mxu0 %v3616
    %4382 = vmatprep.subr.mxu0 %v3649
    %4383 = vmatpush1.msra.mxu0 %v3648
    %4384 = vmatprep.subr.mxu0 0.0
    %4385 = vmatpush1.msra.mxu0 0.0
    %4386 = vmatprep.subr.mxu0 0.0
    %4387 = vmatpush1.msra.mxu0 0.0
    %4388 = vmatprep.subr.mxu0 0.0
    %4389 = vmatpush1.msra.mxu0 0.0
    %4390 = vmatprep.subr.mxu0 0.0
    %4391 = vmatpush1.msra.mxu0 0.0
    %4392 = vmatprep.subr.mxu0 0.0
    %4393 = vmatpush1.msra.mxu0 0.0
    %4394 = vmatprep.subr.mxu0 0.0
    %4395 = vmatpush1.msra.mxu0 0.0
    %4396 = vmatprep.subr.mxu0 0.0
    %4397 = vmatpush1.msra.mxu0 0.0
    %4398 = vmatprep.subr.mxu0 0.0
    %4399 = vmatpush1.msra.mxu0 0.0
    %4400 = vmatprep.subr.mxu0 0.0
    %4401 = vmatpush1.msra.mxu0 0.0
    %4402 = vmatprep.subr.mxu0 0.0
    %4403 = vmatpush1.msra.mxu0 0.0
    %4404 = vmatprep.subr.mxu0 0.0
    %4405 = vmatpush1.msra.mxu0 0.0
    %4406 = vmatprep.subr.mxu0 0.0
    %4407 = vmatpush1.msra.mxu0 0.0
    %4408 = vmatprep.subr.mxu0 0.0
    %4409 = vmatpush1.msra.mxu0 0.0
    %4410 = vmatprep.subr.mxu0 0.0
    %4411 = vmatpush1.msra.mxu0 0.0
    %4412 = vmatprep.subr.mxu0 0.0
    %4413 = vmatpush1.msra.mxu0 0.0
    %4414 = vmatprep.subr.mxu0 0.0
    %4415 = vmatpush1.msra.mxu0 0.0
    %4416 = vmatprep.subr.mxu0 0.0
    %4417 = vmatpush1.msra.mxu0 0.0
    %4418 = vmatprep.subr.mxu0 0.0
    %4419 = vmatpush1.msra.mxu0 0.0
    %4420 = vmatprep.subr.mxu0 0.0
    %4421 = vmatpush1.msra.mxu0 0.0
    %4422 = vmatprep.subr.mxu0 0.0
    %4423 = vmatpush1.msra.mxu0 0.0
    %4424 = vmatprep.subr.mxu0 0.0
    %4425 = vmatpush1.msra.mxu0 0.0
    %4426 = vmatprep.subr.mxu0 0.0
    %4427 = vmatpush1.msra.mxu0 0.0
    %4428 = vmatprep.subr.mxu0 0.0
    %4429 = vmatpush1.msra.mxu0 0.0
    %4430 = vmatprep.subr.mxu0 0.0
    %4431 = vmatpush1.msra.mxu0 0.0
    %4432 = vmatprep.subr.mxu0 0.0
    %4433 = vmatpush1.msra.mxu0 0.0
    %4434 = vmatprep.subr.mxu0 0.0
    %4435 = vmatpush1.msra.mxu0 0.0
    %4436 = vmatprep.subr.mxu0 0.0
    %4437 = vmatpush1.msra.mxu0 0.0
    %4438 = vmatprep.subr.mxu0 0.0
    %4439 = vmatpush1.msra.mxu0 0.0
    %4440 = vmatprep.mubr.f32.mxu0 0.0
    %4441 = vmatmul.mubr.f32.gmra.mrb[0].mxu0 %v3678
    %v4442 = vpop.f32.mrb[0].mxu0
    %v4443 = vadd.f32 %v3669, %v4442
    %v4444 = vpop.f32.mrb[0].mxu0
    %v4445 = vadd.f32 %v3669, %v4444
    %4446 = vmatprep.mubr.f32.mxu0 0.0
    %4447 = vmatmul.mubr.f32.gmra.mrb[0].mxu0 %v3681
    %v4448 = vpop.f32.mrb[0].mxu0
    %v4449 = vadd.f32 %v3674, %v4448
    %v4450 = vpop.f32.mrb[0].mxu0
    %v4451 = vadd.f32 %v3674, %v4450
    %4452 = vdwg.mxu0
    %4453 = vmatprep.subr.mxu0 %v3555
    %4454 = vmatpush1.msra.mxu0 %v3554
    %4455 = vmatprep.subr.mxu0 %v3587
    %4456 = vmatpush1.msra.mxu0 %v3586
    %4457 = vmatprep.subr.mxu0 %v3619
    %4458 = vmatpush1.msra.mxu0 %v3618
    %4459 = vmatprep.subr.mxu0 %v3651
    %4460 = vmatpush1.msra.mxu0 %v3650
    %4461 = vmatprep.subr.mxu0 0.0
    %4462 = vmatpush1.msra.mxu0 0.0
    %4463 = vmatprep.subr.mxu0 0.0
    %4464 = vmatpush1.msra.mxu0 0.0
    %4465 = vmatprep.subr.mxu0 0.0
    %4466 = vmatpush1.msra.mxu0 0.0
    %4467 = vmatprep.subr.mxu0 0.0
    %4468 = vmatpush1.msra.mxu0 0.0
    %4469 = vmatprep.subr.mxu0 0.0
    %4470 = vmatpush1.msra.mxu0 0.0
    %4471 = vmatprep.subr.mxu0 0.0
    %4472 = vmatpush1.msra.mxu0 0.0
    %4473 = vmatprep.subr.mxu0 0.0
    %4474 = vmatpush1.msra.mxu0 0.0
    %4475 = vmatprep.subr.mxu0 0.0
    %4476 = vmatpush1.msra.mxu0 0.0
    %4477 = vmatprep.subr.mxu0 0.0
    %4478 = vmatpush1.msra.mxu0 0.0
    %4479 = vmatprep.subr.mxu0 0.0
    %4480 = vmatpush1.msra.mxu0 0.0
    %4481 = vmatprep.subr.mxu0 0.0
    %4482 = vmatpush1.msra.mxu0 0.0
    %4483 = vmatprep.subr.mxu0 0.0
    %4484 = vmatpush1.msra.mxu0 0.0
    %4485 = vmatprep.subr.mxu0 0.0
    %4486 = vmatpush1.msra.mxu0 0.0
    %4487 = vmatprep.subr.mxu0 0.0
    %4488 = vmatpush1.msra.mxu0 0.0
    %4489 = vmatprep.subr.mxu0 0.0
    %4490 = vmatpush1.msra.mxu0 0.0
    %4491 = vmatprep.subr.mxu0 0.0
    %4492 = vmatpush1.msra.mxu0 0.0
    %4493 = vmatprep.subr.mxu0 0.0
    %4494 = vmatpush1.msra.mxu0 0.0
    %4495 = vmatprep.subr.mxu0 0.0
    %4496 = vmatpush1.msra.mxu0 0.0
    %4497 = vmatprep.subr.mxu0 0.0
    %4498 = vmatpush1.msra.mxu0 0.0
    %4499 = vmatprep.subr.mxu0 0.0
    %4500 = vmatpush1.msra.mxu0 0.0
    %4501 = vmatprep.subr.mxu0 0.0
    %4502 = vmatpush1.msra.mxu0 0.0
    %4503 = vmatprep.subr.mxu0 0.0
    %4504 = vmatpush1.msra.mxu0 0.0
    %4505 = vmatprep.subr.mxu0 0.0
    %4506 = vmatpush1.msra.mxu0 0.0
    %4507 = vmatprep.subr.mxu0 0.0
    %4508 = vmatpush1.msra.mxu0 0.0
    %4509 = vmatprep.subr.mxu0 0.0
    %4510 = vmatpush1.msra.mxu0 0.0
    %4511 = vmatprep.subr.mxu0 0.0
    %4512 = vmatpush1.msra.mxu0 0.0
    %4513 = vmatprep.subr.mxu0 0.0
    %4514 = vmatpush1.msra.mxu0 0.0
    %4515 = vmatprep.subr.mxu0 0.0
    %4516 = vmatpush1.msra.mxu0 0.0
    %4517 = vmatprep.mubr.f32.mxu0 0.0
    %4518 = vmatmul.mubr.f32.gmra.mrb[0].mxu0 %v3678
    %v4519 = vpop.f32.mrb[0].mxu0
    %v4520 = vadd.f32 %v3669, %v4519
    %v4521 = vpop.f32.mrb[0].mxu0
    %v4522 = vadd.f32 %v3669, %v4521
    %4523 = vmatprep.mubr.f32.mxu0 0.0
    %4524 = vmatmul.mubr.f32.gmra.mrb[0].mxu0 %v3681
    %v4525 = vpop.f32.mrb[0].mxu0
    %v4526 = vadd.f32 %v3674, %v4525
    %v4527 = vpop.f32.mrb[0].mxu0
    %v4528 = vadd.f32 %v3674, %v4527
    %4529 = vdwg.mxu0
    %4530 = vmatprep.subr.mxu0 %v3557
    %4531 = vmatpush1.msra.mxu0 %v3556
    %4532 = vmatprep.subr.mxu0 %v3589
    %4533 = vmatpush1.msra.mxu0 %v3588
    %4534 = vmatprep.subr.mxu0 %v3621
    %4535 = vmatpush1.msra.mxu0 %v3620
    %4536 = vmatprep.subr.mxu0 %v3653
    %4537 = vmatpush1.msra.mxu0 %v3652
    %4538 = vmatprep.subr.mxu0 0.0
    %4539 = vmatpush1.msra.mxu0 0.0
    %4540 = vmatprep.subr.mxu0 0.0
    %4541 = vmatpush1.msra.mxu0 0.0
    %4542 = vmatprep.subr.mxu0 0.0
    %4543 = vmatpush1.msra.mxu0 0.0
    %4544 = vmatprep.subr.mxu0 0.0
    %4545 = vmatpush1.msra.mxu0 0.0
    %4546 = vmatprep.subr.mxu0 0.0
    %4547 = vmatpush1.msra.mxu0 0.0
    %4548 = vmatprep.subr.mxu0 0.0
    %4549 = vmatpush1.msra.mxu0 0.0
    %4550 = vmatprep.subr.mxu0 0.0
    %4551 = vmatpush1.msra.mxu0 0.0
    %4552 = vmatprep.subr.mxu0 0.0
    %4553 = vmatpush1.msra.mxu0 0.0
    %4554 = vmatprep.subr.mxu0 0.0
    %4555 = vmatpush1.msra.mxu0 0.0
    %4556 = vmatprep.subr.mxu0 0.0
    %4557 = vmatpush1.msra.mxu0 0.0
    %4558 = vmatprep.subr.mxu0 0.0
    %4559 = vmatpush1.msra.mxu0 0.0
    %4560 = vmatprep.subr.mxu0 0.0
    %4561 = vmatpush1.msra.mxu0 0.0
    %4562 = vmatprep.subr.mxu0 0.0
    %4563 = vmatpush1.msra.mxu0 0.0
    %4564 = vmatprep.subr.mxu0 0.0
    %4565 = vmatpush1.msra.mxu0 0.0
    %4566 = vmatprep.subr.mxu0 0.0
    %4567 = vmatpush1.msra.mxu0 0.0
    %4568 = vmatprep.subr.mxu0 0.0
    %4569 = vmatpush1.msra.mxu0 0.0
    %4570 = vmatprep.subr.mxu0 0.0
    %4571 = vmatpush1.msra.mxu0 0.0
    %4572 = vmatprep.subr.mxu0 0.0
    %4573 = vmatpush1.msra.mxu0 0.0
    %4574 = vmatprep.subr.mxu0 0.0
    %4575 = vmatpush1.msra.mxu0 0.0
    %4576 = vmatprep.subr.mxu0 0.0
    %4577 = vmatpush1.msra.mxu0 0.0
    %4578 = vmatprep.subr.mxu0 0.0
    %4579 = vmatpush1.msra.mxu0 0.0
    %4580 = vmatprep.subr.mxu0 0.0
    %4581 = vmatpush1.msra.mxu0 0.0
    %4582 = vmatprep.subr.mxu0 0.0
    %4583 = vmatpush1.msra.mxu0 0.0
    %4584 = vmatprep.subr.mxu0 0.0
    %4585 = vmatpush1.msra.mxu0 0.0
    %4586 = vmatprep.subr.mxu0 0.0
    %4587 = vmatpush1.msra.mxu0 0.0
    %4588 = vmatprep.subr.mxu0 0.0
    %4589 = vmatpush1.msra.mxu0 0.0
    %4590 = vmatprep.subr.mxu0 0.0
    %4591 = vmatpush1.msra.mxu0 0.0
    %4592 = vmatprep.subr.mxu0 0.0
    %4593 = vmatpush1.msra.mxu0 0.0
    %4594 = vmatprep.mubr.f32.mxu0 0.0
    %4595 = vmatmul.mubr.f32.gmra.mrb[0].mxu0 %v3678
    %v4596 = vpop.f32.mrb[0].mxu0
    %v4597 = vadd.f32 %v3669, %v4596
    %v4598 = vpop.f32.mrb[0].mxu0
    %v4599 = vadd.f32 %v3669, %v4598
    %4600 = vmatprep.mubr.f32.mxu0 0.0
    %4601 = vmatmul.mubr.f32.gmra.mrb[0].mxu0 %v3681
    %v4602 = vpop.f32.mrb[0].mxu0
    %v4603 = vadd.f32 %v3674, %v4602
    %v4604 = vpop.f32.mrb[0].mxu0
    %v4605 = vadd.f32 %v3674, %v4604
    %4606 = vdwg.mxu0
    %4607 = vmatprep.subr.mxu0 %v3559
    %4608 = vmatpush1.msra.mxu0 %v3558
    %4609 = vmatprep.subr.mxu0 %v3591
    %4610 = vmatpush1.msra.mxu0 %v3590
    %4611 = vmatprep.subr.mxu0 %v3623
    %4612 = vmatpush1.msra.mxu0 %v3622
    %4613 = vmatprep.subr.mxu0 %v3655
    %4614 = vmatpush1.msra.mxu0 %v3654
    %4615 = vmatprep.subr.mxu0 0.0
    %4616 = vmatpush1.msra.mxu0 0.0
    %4617 = vmatprep.subr.mxu0 0.0
    %4618 = vmatpush1.msra.mxu0 0.0
    %4619 = vmatprep.subr.mxu0 0.0
    %4620 = vmatpush1.msra.mxu0 0.0
    %4621 = vmatprep.subr.mxu0 0.0
    %4622 = vmatpush1.msra.mxu0 0.0
    %4623 = vmatprep.subr.mxu0 0.0
    %4624 = vmatpush1.msra.mxu0 0.0
    %4625 = vmatprep.subr.mxu0 0.0
    %4626 = vmatpush1.msra.mxu0 0.0
    %4627 = vmatprep.subr.mxu0 0.0
    %4628 = vmatpush1.msra.mxu0 0.0
    %4629 = vmatprep.subr.mxu0 0.0
    %4630 = vmatpush1.msra.mxu0 0.0
    %4631 = vmatprep.subr.mxu0 0.0
    %4632 = vmatpush1.msra.mxu0 0.0
    %4633 = vmatprep.subr.mxu0 0.0
    %4634 = vmatpush1.msra.mxu0 0.0
    %4635 = vmatprep.subr.mxu0 0.0
    %4636 = vmatpush1.msra.mxu0 0.0
    %4637 = vmatprep.subr.mxu0 0.0
    %4638 = vmatpush1.msra.mxu0 0.0
    %4639 = vmatprep.subr.mxu0 0.0
    %4640 = vmatpush1.msra.mxu0 0.0
    %4641 = vmatprep.subr.mxu0 0.0
    %4642 = vmatpush1.msra.mxu0 0.0
    %4643 = vmatprep.subr.mxu0 0.0
    %4644 = vmatpush1.msra.mxu0 0.0
    %4645 = vmatprep.subr.mxu0 0.0
    %4646 = vmatpush1.msra.mxu0 0.0
    %4647 = vmatprep.subr.mxu0 0.0
    %4648 = vmatpush1.msra.mxu0 0.0
    %4649 = vmatprep.subr.mxu0 0.0
    %4650 = vmatpush1.msra.mxu0 0.0
    %4651 = vmatprep.subr.mxu0 0.0
    %4652 = vmatpush1.msra.mxu0 0.0
    %4653 = vmatprep.subr.mxu0 0.0
    %4654 = vmatpush1.msra.mxu0 0.0
    %4655 = vmatprep.subr.mxu0 0.0
    %4656 = vmatpush1.msra.mxu0 0.0
    %4657 = vmatprep.subr.mxu0 0.0
    %4658 = vmatpush1.msra.mxu0 0.0
    %4659 = vmatprep.subr.mxu0 0.0
    %4660 = vmatpush1.msra.mxu0 0.0
    %4661 = vmatprep.subr.mxu0 0.0
    %4662 = vmatpush1.msra.mxu0 0.0
    %4663 = vmatprep.subr.mxu0 0.0
    %4664 = vmatpush1.msra.mxu0 0.0
    %4665 = vmatprep.subr.mxu0 0.0
    %4666 = vmatpush1.msra.mxu0 0.0
    %4667 = vmatprep.subr.mxu0 0.0
    %4668 = vmatpush1.msra.mxu0 0.0
    %4669 = vmatprep.subr.mxu0 0.0
    %4670 = vmatpush1.msra.mxu0 0.0
    %4671 = vmatprep.mubr.f32.mxu0 0.0
    %4672 = vmatmul.mubr.f32.gmra.mrb[0].mxu0 %v3678
    %v4673 = vpop.f32.mrb[0].mxu0
    %v4674 = vadd.f32 %v3669, %v4673
    %v4675 = vpop.f32.mrb[0].mxu0
    %v4676 = vadd.f32 %v3669, %v4675
    %4677 = vmatprep.mubr.f32.mxu0 0.0
    %4678 = vmatmul.mubr.f32.gmra.mrb[0].mxu0 %v3681
    %v4679 = vpop.f32.mrb[0].mxu0
    %v4680 = vadd.f32 %v3674, %v4679
    %v4681 = vpop.f32.mrb[0].mxu0
    %v4682 = vadd.f32 %v3674, %v4681
    %4683 = vdwg.mxu0
    %4684 = vmatprep.subr.mxu0 %v3561
    %4685 = vmatpush1.msra.mxu0 %v3560
    %4686 = vmatprep.subr.mxu0 %v3593
    %4687 = vmatpush1.msra.mxu0 %v3592
    %4688 = vmatprep.subr.mxu0 %v3625
    %4689 = vmatpush1.msra.mxu0 %v3624
    %4690 = vmatprep.subr.mxu0 %v3657
    %4691 = vmatpush1.msra.mxu0 %v3656
    %4692 = vmatprep.subr.mxu0 0.0
    %4693 = vmatpush1.msra.mxu0 0.0
    %4694 = vmatprep.subr.mxu0 0.0
    %4695 = vmatpush1.msra.mxu0 0.0
    %4696 = vmatprep.subr.mxu0 0.0
    %4697 = vmatpush1.msra.mxu0 0.0
    %4698 = vmatprep.subr.mxu0 0.0
    %4699 = vmatpush1.msra.mxu0 0.0
    %4700 = vmatprep.subr.mxu0 0.0
    %4701 = vmatpush1.msra.mxu0 0.0
    %4702 = vmatprep.subr.mxu0 0.0
    %4703 = vmatpush1.msra.mxu0 0.0
    %4704 = vmatprep.subr.mxu0 0.0
    %4705 = vmatpush1.msra.mxu0 0.0
    %4706 = vmatprep.subr.mxu0 0.0
    %4707 = vmatpush1.msra.mxu0 0.0
    %4708 = vmatprep.subr.mxu0 0.0
    %4709 = vmatpush1.msra.mxu0 0.0
    %4710 = vmatprep.subr.mxu0 0.0
    %4711 = vmatpush1.msra.mxu0 0.0
    %4712 = vmatprep.subr.mxu0 0.0
    %4713 = vmatpush1.msra.mxu0 0.0
    %4714 = vmatprep.subr.mxu0 0.0
    %4715 = vmatpush1.msra.mxu0 0.0
    %4716 = vmatprep.subr.mxu0 0.0
    %4717 = vmatpush1.msra.mxu0 0.0
    %4718 = vmatprep.subr.mxu0 0.0
    %4719 = vmatpush1.msra.mxu0 0.0
    %4720 = vmatprep.subr.mxu0 0.0
    %4721 = vmatpush1.msra.mxu0 0.0
    %4722 = vmatprep.subr.mxu0 0.0
    %4723 = vmatpush1.msra.mxu0 0.0
    %4724 = vmatprep.subr.mxu0 0.0
    %4725 = vmatpush1.msra.mxu0 0.0
    %4726 = vmatprep.subr.mxu0 0.0
    %4727 = vmatpush1.msra.mxu0 0.0
    %4728 = vmatprep.subr.mxu0 0.0
    %4729 = vmatpush1.msra.mxu0 0.0
    %4730 = vmatprep.subr.mxu0 0.0
    %4731 = vmatpush1.msra.mxu0 0.0
    %4732 = vmatprep.subr.mxu0 0.0
    %4733 = vmatpush1.msra.mxu0 0.0
    %4734 = vmatprep.subr.mxu0 0.0
    %4735 = vmatpush1.msra.mxu0 0.0
    %4736 = vmatprep.subr.mxu0 0.0
    %4737 = vmatpush1.msra.mxu0 0.0
    %4738 = vmatprep.subr.mxu0 0.0
    %4739 = vmatpush1.msra.mxu0 0.0
    %4740 = vmatprep.subr.mxu0 0.0
    %4741 = vmatpush1.msra.mxu0 0.0
    %4742 = vmatprep.subr.mxu0 0.0
    %4743 = vmatpush1.msra.mxu0 0.0
    %4744 = vmatprep.subr.mxu0 0.0
    %4745 = vmatpush1.msra.mxu0 0.0
    %4746 = vmatprep.subr.mxu0 0.0
    %4747 = vmatpush1.msra.mxu0 0.0
    %4748 = vmatprep.mubr.f32.mxu0 0.0
    %4749 = vmatmul.mubr.f32.gmra.mrb[0].mxu0 %v3678
    %v4750 = vpop.f32.mrb[0].mxu0
    %v4751 = vadd.f32 %v3669, %v4750
    %v4752 = vpop.f32.mrb[0].mxu0
    %v4753 = vadd.f32 %v3669, %v4752
    %4754 = vmatprep.mubr.f32.mxu0 0.0
    %4755 = vmatmul.mubr.f32.gmra.mrb[0].mxu0 %v3681
    %v4756 = vpop.f32.mrb[0].mxu0
    %v4757 = vadd.f32 %v3674, %v4756
    %v4758 = vpop.f32.mrb[0].mxu0
    %v4759 = vadd.f32 %v3674, %v4758
    %4760 = vdwg.mxu0
    %4761 = vmatprep.subr.mxu0 %v3563
    %4762 = vmatpush1.msra.mxu0 %v3562
    %4763 = vmatprep.subr.mxu0 %v3595
    %4764 = vmatpush1.msra.mxu0 %v3594
    %4765 = vmatprep.subr.mxu0 %v3627
    %4766 = vmatpush1.msra.mxu0 %v3626
    %4767 = vmatprep.subr.mxu0 %v3659
    %4768 = vmatpush1.msra.mxu0 %v3658
    %4769 = vmatprep.subr.mxu0 0.0
    %4770 = vmatpush1.msra.mxu0 0.0
    %4771 = vmatprep.subr.mxu0 0.0
    %4772 = vmatpush1.msra.mxu0 0.0
    %4773 = vmatprep.subr.mxu0 0.0
    %4774 = vmatpush1.msra.mxu0 0.0
    %4775 = vmatprep.subr.mxu0 0.0
    %4776 = vmatpush1.msra.mxu0 0.0
    %4777 = vmatprep.subr.mxu0 0.0
    %4778 = vmatpush1.msra.mxu0 0.0
    %4779 = vmatprep.subr.mxu0 0.0
    %4780 = vmatpush1.msra.mxu0 0.0
    %4781 = vmatprep.subr.mxu0 0.0
    %4782 = vmatpush1.msra.mxu0 0.0
    %4783 = vmatprep.subr.mxu0 0.0
    %4784 = vmatpush1.msra.mxu0 0.0
    %4785 = vmatprep.subr.mxu0 0.0
    %4786 = vmatpush1.msra.mxu0 0.0
    %4787 = vmatprep.subr.mxu0 0.0
    %4788 = vmatpush1.msra.mxu0 0.0
    %4789 = vmatprep.subr.mxu0 0.0
    %4790 = vmatpush1.msra.mxu0 0.0
    %4791 = vmatprep.subr.mxu0 0.0
    %4792 = vmatpush1.msra.mxu0 0.0
    %4793 = vmatprep.subr.mxu0 0.0
    %4794 = vmatpush1.msra.mxu0 0.0
    %4795 = vmatprep.subr.mxu0 0.0
    %4796 = vmatpush1.msra.mxu0 0.0
    %4797 = vmatprep.subr.mxu0 0.0
    %4798 = vmatpush1.msra.mxu0 0.0
    %4799 = vmatprep.subr.mxu0 0.0
    %4800 = vmatpush1.msra.mxu0 0.0
    %4801 = vmatprep.subr.mxu0 0.0
    %4802 = vmatpush1.msra.mxu0 0.0
    %4803 = vmatprep.subr.mxu0 0.0
    %4804 = vmatpush1.msra.mxu0 0.0
    %4805 = vmatprep.subr.mxu0 0.0
    %4806 = vmatpush1.msra.mxu0 0.0
    %4807 = vmatprep.subr.mxu0 0.0
    %4808 = vmatpush1.msra.mxu0 0.0
    %4809 = vmatprep.subr.mxu0 0.0
    %4810 = vmatpush1.msra.mxu0 0.0
    %4811 = vmatprep.subr.mxu0 0.0
    %4812 = vmatpush1.msra.mxu0 0.0
    %4813 = vmatprep.subr.mxu0 0.0
    %4814 = vmatpush1.msra.mxu0 0.0
    %4815 = vmatprep.subr.mxu0 0.0
    %4816 = vmatpush1.msra.mxu0 0.0
    %4817 = vmatprep.subr.mxu0 0.0
    %4818 = vmatpush1.msra.mxu0 0.0
    %4819 = vmatprep.subr.mxu0 0.0
    %4820 = vmatpush1.msra.mxu0 0.0
    %4821 = vmatprep.subr.mxu0 0.0
    %4822 = vmatpush1.msra.mxu0 0.0
    %4823 = vmatprep.subr.mxu0 0.0
    %4824 = vmatpush1.msra.mxu0 0.0
    %4825 = vmatprep.mubr.f32.mxu0 0.0
    %4826 = vmatmul.mubr.f32.gmra.mrb[0].mxu0 %v3678
    %v4827 = vpop.f32.mrb[0].mxu0
    %v4828 = vadd.f32 %v3669, %v4827
    %v4829 = vpop.f32.mrb[0].mxu0
    %v4830 = vadd.f32 %v3669, %v4829
    %4831 = vmatprep.mubr.f32.mxu0 0.0
    %4832 = vmatmul.mubr.f32.gmra.mrb[0].mxu0 %v3681
    %v4833 = vpop.f32.mrb[0].mxu0
    %v4834 = vadd.f32 %v3674, %v4833
    %v4835 = vpop.f32.mrb[0].mxu0
    %v4836 = vadd.f32 %v3674, %v4835
    %4837 = vdwg.mxu0
    %4838 = vmatprep.subr.mxu0 %v3565
    %4839 = vmatpush1.msra.mxu0 %v3564
    %4840 = vmatprep.subr.mxu0 %v3597
    %4841 = vmatpush1.msra.mxu0 %v3596
    %4842 = vmatprep.subr.mxu0 %v3629
    %4843 = vmatpush1.msra.mxu0 %v3628
    %4844 = vmatprep.subr.mxu0 %v3661
    %4845 = vmatpush1.msra.mxu0 %v3660
    %4846 = vmatprep.subr.mxu0 0.0
    %4847 = vmatpush1.msra.mxu0 0.0
    %4848 = vmatprep.subr.mxu0 0.0
    %4849 = vmatpush1.msra.mxu0 0.0
    %4850 = vmatprep.subr.mxu0 0.0
    %4851 = vmatpush1.msra.mxu0 0.0
    %4852 = vmatprep.subr.mxu0 0.0
    %4853 = vmatpush1.msra.mxu0 0.0
    %4854 = vmatprep.subr.mxu0 0.0
    %4855 = vmatpush1.msra.mxu0 0.0
    %4856 = vmatprep.subr.mxu0 0.0
    %4857 = vmatpush1.msra.mxu0 0.0
    %4858 = vmatprep.subr.mxu0 0.0
    %4859 = vmatpush1.msra.mxu0 0.0
    %4860 = vmatprep.subr.mxu0 0.0
    %4861 = vmatpush1.msra.mxu0 0.0
    %4862 = vmatprep.subr.mxu0 0.0
    %4863 = vmatpush1.msra.mxu0 0.0
    %4864 = vmatprep.subr.mxu0 0.0
    %4865 = vmatpush1.msra.mxu0 0.0
    %4866 = vmatprep.subr.mxu0 0.0
    %4867 = vmatpush1.msra.mxu0 0.0
    %4868 = vmatprep.subr.mxu0 0.0
    %4869 = vmatpush1.msra.mxu0 0.0
    %4870 = vmatprep.subr.mxu0 0.0
    %4871 = vmatpush1.msra.mxu0 0.0
    %4872 = vmatprep.subr.mxu0 0.0
    %4873 = vmatpush1.msra.mxu0 0.0
    %4874 = vmatprep.subr.mxu0 0.0
    %4875 = vmatpush1.msra.mxu0 0.0
    %4876 = vmatprep.subr.mxu0 0.0
    %4877 = vmatpush1.msra.mxu0 0.0
    %4878 = vmatprep.subr.mxu0 0.0
    %4879 = vmatpush1.msra.mxu0 0.0
    %4880 = vmatprep.subr.mxu0 0.0
    %4881 = vmatpush1.msra.mxu0 0.0
    %4882 = vmatprep.subr.mxu0 0.0
    %4883 = vmatpush1.msra.mxu0 0.0
    %4884 = vmatprep.subr.mxu0 0.0
    %4885 = vmatpush1.msra.mxu0 0.0
    %4886 = vmatprep.subr.mxu0 0.0
    %4887 = vmatpush1.msra.mxu0 0.0
    %4888 = vmatprep.subr.mxu0 0.0
    %4889 = vmatpush1.msra.mxu0 0.0
    %4890 = vmatprep.subr.mxu0 0.0
    %4891 = vmatpush1.msra.mxu0 0.0
    %4892 = vmatprep.subr.mxu0 0.0
    %4893 = vmatpush1.msra.mxu0 0.0
    %4894 = vmatprep.subr.mxu0 0.0
    %4895 = vmatpush1.msra.mxu0 0.0
    %4896 = vmatprep.subr.mxu0 0.0
    %4897 = vmatpush1.msra.mxu0 0.0
    %4898 = vmatprep.subr.mxu0 0.0
    %4899 = vmatpush1.msra.mxu0 0.0
    %4900 = vmatprep.subr.mxu0 0.0
    %4901 = vmatpush1.msra.mxu0 0.0
    %4902 = vmatprep.mubr.f32.mxu0 0.0
    %4903 = vmatmul.mubr.f32.gmra.mrb[0].mxu0 %v3678
    %v4904 = vpop.f32.mrb[0].mxu0
    %v4905 = vadd.f32 %v3669, %v4904
    %v4906 = vpop.f32.mrb[0].mxu0
    %v4907 = vadd.f32 %v3669, %v4906
    %4908 = vmatprep.mubr.f32.mxu0 0.0
    %4909 = vmatmul.mubr.f32.gmra.mrb[0].mxu0 %v3681
    %v4910 = vpop.f32.mrb[0].mxu0
    %v4911 = vadd.f32 %v3674, %v4910
    %v4912 = vpop.f32.mrb[0].mxu0
    %v4913 = vadd.f32 %v3674, %v4912
    %4914 = vdwg.mxu0
    %v4915 = vmax.f32 %v3750, 0.0
    %v4916 = vmax.f32 %v3752, 0.0
    %v4917 = vmax.f32 %v3827, 0.0
    %v4918 = vmax.f32 %v3829, 0.0
    %v4919 = vmax.f32 %v3904, 0.0
    %v4920 = vmax.f32 %v3906, 0.0
    %v4921 = vmax.f32 %v3981, 0.0
    %v4922 = vmax.f32 %v3983, 0.0
    %v4923 = vmax.f32 %v4058, 0.0
    %v4924 = vmax.f32 %v4060, 0.0
    %v4925 = vmax.f32 %v4135, 0.0
    %v4926 = vmax.f32 %v4137, 0.0
    %v4927 = vmax.f32 %v4212, 0.0
    %v4928 = vmax.f32 %v4214, 0.0
    %v4929 = vmax.f32 %v4289, 0.0
    %v4930 = vmax.f32 %v4291, 0.0
    %v4931 = vmax.f32 %v4366, 0.0
    %v4932 = vmax.f32 %v4368, 0.0
    %v4933 = vmax.f32 %v4443, 0.0
    %v4934 = vmax.f32 %v4445, 0.0
    %v4935 = vmax.f32 %v4520, 0.0
    %v4936 = vmax.f32 %v4522, 0.0
    %v4937 = vmax.f32 %v4597, 0.0
    %v4938 = vmax.f32 %v4599, 0.0
    %v4939 = vmax.f32 %v4674, 0.0
    %v4940 = vmax.f32 %v4676, 0.0
    %v4941 = vmax.f32 %v4751, 0.0
    %v4942 = vmax.f32 %v4753, 0.0
    %v4943 = vmax.f32 %v4828, 0.0
    %v4944 = vmax.f32 %v4830, 0.0
    %v4945 = vmax.f32 %v4905, 0.0
    %v4946 = vmax.f32 %v4907, 0.0
    %v4947 = vmax.f32 %v3756, 0.0
    %v4948 = vmax.f32 %v3758, 0.0
    %v4949 = vmax.f32 %v3833, 0.0
    %v4950 = vmax.f32 %v3835, 0.0
    %v4951 = vmax.f32 %v3910, 0.0
    %v4952 = vmax.f32 %v3912, 0.0
    %v4953 = vmax.f32 %v3987, 0.0
    %v4954 = vmax.f32 %v3989, 0.0
    %v4955 = vmax.f32 %v4064, 0.0
    %v4956 = vmax.f32 %v4066, 0.0
    %v4957 = vmax.f32 %v4141, 0.0
    %v4958 = vmax.f32 %v4143, 0.0
    %v4959 = vmax.f32 %v4218, 0.0
    %v4960 = vmax.f32 %v4220, 0.0
    %v4961 = vmax.f32 %v4295, 0.0
    %v4962 = vmax.f32 %v4297, 0.0
    %v4963 = vmax.f32 %v4372, 0.0
    %v4964 = vmax.f32 %v4374, 0.0
    %v4965 = vmax.f32 %v4449, 0.0
    %v4966 = vmax.f32 %v4451, 0.0
    %v4967 = vmax.f32 %v4526, 0.0
    %v4968 = vmax.f32 %v4528, 0.0
    %v4969 = vmax.f32 %v4603, 0.0
    %v4970 = vmax.f32 %v4605, 0.0
    %v4971 = vmax.f32 %v4680, 0.0
    %v4972 = vmax.f32 %v4682, 0.0
    %v4973 = vmax.f32 %v4757, 0.0
    %v4974 = vmax.f32 %v4759, 0.0
    %v4975 = vmax.f32 %v4834, 0.0
    %v4976 = vmax.f32 %v4836, 0.0
    %v4977 = vmax.f32 %v4911, 0.0
    %v4978 = vmax.f32 %v4913, 0.0
    %4979 = vst [vmem:[#allocation2] sm:$0xff] %v4915
    %4980 = vst [vmem:[#allocation2 + $0x8] sm:$0xff] %v4916
    %4981 = vst [vmem:[#allocation2 + $0x10] sm:$0xff] %v4917
    %4982 = vst [vmem:[#allocation2 + $0x18] sm:$0xff] %v4918
    %4983 = vst [vmem:[#allocation2 + $0x20] sm:$0xff] %v4919
    %4984 = vst [vmem:[#allocation2 + $0x28] sm:$0xff] %v4920
    %4985 = vst [vmem:[#allocation2 + $0x30] sm:$0xff] %v4921
    %4986 = vst [vmem:[#allocation2 + $0x38] sm:$0xff] %v4922
    %4987 = vst [vmem:[#allocation2 + $0x40] sm:$0xff] %v4923
    %4988 = vst [vmem:[#allocation2 + $0x48] sm:$0xff] %v4924
    %4989 = vst [vmem:[#allocation2 + $0x50] sm:$0xff] %v4925
    %4990 = vst [vmem:[#allocation2 + $0x58] sm:$0xff] %v4926
    %4991 = vst [vmem:[#allocation2 + $0x60] sm:$0xff] %v4927
    %4992 = vst [vmem:[#allocation2 + $0x68] sm:$0xff] %v4928
    %4993 = vst [vmem:[#allocation2 + $0x70] sm:$0xff] %v4929
    %4994 = vst [vmem:[#allocation2 + $0x78] sm:$0xff] %v4930
    %4995 = vst [vmem:[#allocation2 + $0x80] sm:$0xff] %v4931
    %4996 = vst [vmem:[#allocation2 + $0x88] sm:$0xff] %v4932
    %4997 = vst [vmem:[#allocation2 + $0x90] sm:$0xff] %v4933
    %4998 = vst [vmem:[#allocation2 + $0x98] sm:$0xff] %v4934
    %4999 = vst [vmem:[#allocation2 + $0xa0] sm:$0xff] %v4935
    %5000 = vst [vmem:[#allocation2 + $0xa8] sm:$0xff] %v4936
    %5001 = vst [vmem:[#allocation2 + $0xb0] sm:$0xff] %v4937
    %5002 = vst [vmem:[#allocation2 + $0xb8] sm:$0xff] %v4938
    %5003 = vst [vmem:[#allocation2 + $0xc0] sm:$0xff] %v4939
    %5004 = vst [vmem:[#allocation2 + $0xc8] sm:$0xff] %v4940
    %5005 = vst [vmem:[#allocation2 + $0xd0] sm:$0xff] %v4941
    %5006 = vst [vmem:[#allocation2 + $0xd8] sm:$0xff] %v4942
    %5007 = vst [vmem:[#allocation2 + $0xe0] sm:$0xff] %v4943
    %5008 = vst [vmem:[#allocation2 + $0xe8] sm:$0xff] %v4944
    %5009 = vst [vmem:[#allocation2 + $0xf0] sm:$0xff] %v4945
    %5010 = vst [vmem:[#allocation2 + $0xf8] sm:$0xff] %v4946
    %5011 = vst [vmem:[#allocation2 + $0x100] sm:$0xff] %v4947
    %5012 = vst [vmem:[#allocation2 + $0x108] sm:$0xff] %v4948
    %5013 = vst [vmem:[#allocation2 + $0x110] sm:$0xff] %v4949
    %5014 = vst [vmem:[#allocation2 + $0x118] sm:$0xff] %v4950
    %5015 = vst [vmem:[#allocation2 + $0x120] sm:$0xff] %v4951
    %5016 = vst [vmem:[#allocation2 + $0x128] sm:$0xff] %v4952
    %5017 = vst [vmem:[#allocation2 + $0x130] sm:$0xff] %v4953
    %5018 = vst [vmem:[#allocation2 + $0x138] sm:$0xff] %v4954
    %5019 = vst [vmem:[#allocation2 + $0x140] sm:$0xff] %v4955
    %5020 = vst [vmem:[#allocation2 + $0x148] sm:$0xff] %v4956
    %5021 = vst [vmem:[#allocation2 + $0x150] sm:$0xff] %v4957
    %5022 = vst [vmem:[#allocation2 + $0x158] sm:$0xff] %v4958
    %5023 = vst [vmem:[#allocation2 + $0x160] sm:$0xff] %v4959
    %5024 = vst [vmem:[#allocation2 + $0x168] sm:$0xff] %v4960
    %5025 = vst [vmem:[#allocation2 + $0x170] sm:$0xff] %v4961
    %5026 = vst [vmem:[#allocation2 + $0x178] sm:$0xff] %v4962
    %5027 = vst [vmem:[#allocation2 + $0x180] sm:$0xff] %v4963
    %5028 = vst [vmem:[#allocation2 + $0x188] sm:$0xff] %v4964
    %5029 = vst [vmem:[#allocation2 + $0x190] sm:$0xff] %v4965
    %5030 = vst [vmem:[#allocation2 + $0x198] sm:$0xff] %v4966
    %5031 = vst [vmem:[#allocation2 + $0x1a0] sm:$0xff] %v4967
    %5032 = vst [vmem:[#allocation2 + $0x1a8] sm:$0xff] %v4968
    %5033 = vst [vmem:[#allocation2 + $0x1b0] sm:$0xff] %v4969
    %5034 = vst [vmem:[#allocation2 + $0x1b8] sm:$0xff] %v4970
    %5035 = vst [vmem:[#allocation2 + $0x1c0] sm:$0xff] %v4971
    %5036 = vst [vmem:[#allocation2 + $0x1c8] sm:$0xff] %v4972
    %5037 = vst [vmem:[#allocation2 + $0x1d0] sm:$0xff] %v4973
    %5038 = vst [vmem:[#allocation2 + $0x1d8] sm:$0xff] %v4974
    %5039 = vst [vmem:[#allocation2 + $0x1e0] sm:$0xff] %v4975
    %5040 = vst [vmem:[#allocation2 + $0x1e8] sm:$0xff] %v4976
    %5041 = vst [vmem:[#allocation2 + $0x1f0] sm:$0xff] %v4977
    %5042 = vst [vmem:[#allocation2 + $0x1f8] sm:$0xff] %v4978
    // Predicated region
    $region22: #{particle_encoder.1} parent=1 // pred_check
      _
    $region23: #{particle_encoder.1} parent=1 // pred_check_branch
      %5044 = sbr.rel (0) target = $region25
    $region24: #{particle_encoder.1} parent=1 // pred_region
      %s5046 = ssub.s32 8192, 256
      %5047 = vsyncadd [#allocation3], %s5046
      %s5048 = sshll.u32 [#allocation2], 4
      %s5049 = int_to_ptr.vmem [resolvable:$true] %s5048
      %5054 = dma.vmem_to_hbm [thread:$0]  %s5049, 256, %s5, [#allocation3], 4096, 128, 8
    $region25: #{particle_encoder.1} parent=1 // pred_fallthru
      _
    // Predicated region
    $region26: #{particle_encoder.1} parent=1 // pred_check
      _
    $region27: #{particle_encoder.1} parent=1 // pred_check_branch
      %5056 = sbr.rel (0) target = $region29
    $region28: #{particle_encoder.1} parent=1 // pred_region
      %5057 = dma.done [#allocation3], 8192
    $region29: #{particle_encoder.1} parent=1 // pred_fallthru
      _
    %5058 = vsyncpa [#allocation3], 1

</llo_original>
